<compile_context>
chip_gen: v7x
topology: tpu7x:2x2x1
jax: 0.10.0
libtpu: 0.0.40
codegen_flags: <defaults>
</compile_context>

<pallas_src>
import functools

import jax
import jax.numpy as jnp
from jax.experimental import pallas as pl
from jax.experimental.pallas import tpu as pltpu

EPS = 1e-5          # nn.InstanceNorm2d default eps (affine=False, no running stats)
NEG_SLOPE = 0.2     # LeakyReLU negative slope


def _round_up(v, m):
    return (v + m - 1) // m * m


# --------------------------------- fused kernel --------------------------------- #

def _make_fused_kernel(H, W, Cin, Cout, Nb, HWp_pad, MARGIN, use_res,
                       fuse1, fuse2, compute_dtype):
    Wp = W + 2
    HWe = HWp_pad + 2 * MARGIN
    inv_hw = 1.0 / float(H * W)
    # Flat offset of tap (kh, kw) relative to the output pixel, in padded coords.
    tap_off = tuple(MARGIN + (t // 3 - 1) * Wp + (t % 3 - 1) for t in range(9))

    def leaky_relu(x):
        return jnp.maximum(x, NEG_SLOPE * x)

    def masked_instance_norm(y, mask):
        # y: (C, HWp_pad) f32.  Statistics over the H*W interior only (mask==1, biased
        # variance, matching nn.InstanceNorm2d(affine=False)).  Border and alignment-pad
        # lanes of the result are exactly 0 == correct zero padding for the next conv.
        mean = jnp.sum(y * mask, axis=1, keepdims=True) * inv_hw
        centered = (y - mean) * mask
        var = jnp.sum(centered * centered, axis=1, keepdims=True) * inv_hw
        return centered * jax.lax.rsqrt(var + EPS)

    def conv3x3(w_ref, get_shifted, fuse):
        if fuse:
            # One MXU dot: (Cout, 9*C) @ (9*C, HWp_pad), K stacked tap-major.
            stacked = jnp.concatenate([get_shifted(s) for s in tap_off], axis=0)
            return jnp.dot(w_ref[...], stacked, preferred_element_type=jnp.float32)
        # Per-tap loop (channel count not sublane-tile aligned): init from tap 0.
        acc = jnp.dot(w_ref[0], get_shifted(tap_off[0]),
                      preferred_element_type=jnp.float32)
        for t in range(1, 9):
            acc = acc + jnp.dot(w_ref[t], get_shifted(tap_off[t]),
                                preferred_element_type=jnp.float32)
        return acc

    def body(mask_ref, xpe_ref, w1_ref, w2_ref, w1x1_ref, out_ref, y1e_ref):
        # Zero only the two lane-aligned MARGIN strips of the flat scratch; the interior
        # is fully overwritten per image.  Unconditional (cheap: ~2 vreg stores) so it
        # stays correct if the "parallel" batch axis is split across TensorCores.
        zeros_m = jnp.zeros((Cout, MARGIN), y1e_ref.dtype)
        y1e_ref[:, :MARGIN] = zeros_m
        y1e_ref[:, MARGIN + HWp_pad:] = zeros_m

        mask = mask_ref[...]                       # (1, HWp_pad) f32, 1.0 on interior

        for b in range(Nb):                        # static unroll over the batch block
            xe = xpe_ref[b]                        # (Cin, HWe) compute_dtype

            # ---- conv1 (3x3, bias-free) + InstanceNorm + LeakyReLU ----
            y1 = conv3x3(w1_ref, lambda s: xe[:, s:s + HWp_pad], fuse1)
            y1 = leaky_relu(masked_instance_norm(y1, mask))
            # TODO(synk): nn.Dropout2d channel dropout in training mode; identity here.

            # Stash y1 (borders & alignment pad already exactly 0) in the bf16 flat
            # scratch: conv2's taps become plain static lane slices, no HBM round trip.
            y1e_ref[:, MARGIN:MARGIN + HWp_pad] = y1.astype(y1e_ref.dtype)

            # ---- conv2 (3x3, bias-free) ----
            y2 = conv3x3(w2_ref, lambda s: y1e_ref[:, s:s + HWp_pad], fuse2)

            # ---- residual: 1x1 conv + InstanceNorm (compiled out if unused) ----
            if use_res:
                r = jnp.dot(w1x1_ref[...], xe[:, MARGIN:MARGIN + HWp_pad],
                            preferred_element_type=jnp.float32)
                y2 = y2 + masked_instance_norm(r, mask)

            # ---- layers_out: InstanceNorm + LeakyReLU (+ Dropout2d identity) ----
            out_ref[b] = leaky_relu(masked_instance_norm(y2, mask))

    if use_res:
        def kernel(mask_ref, xpe_ref, w1_ref, w2_ref, w1x1_ref, out_ref, y1e_ref):
            body(mask_ref, xpe_ref, w1_ref, w2_ref, w1x1_ref, out_ref, y1e_ref)
    else:
        def kernel(mask_ref, xpe_ref, w1_ref, w2_ref, out_ref, y1e_ref):
            body(mask_ref, xpe_ref, w1_ref, w2_ref, None, out_ref, y1e_ref)
    return kernel


# ------------------------------------ wrapper ------------------------------------ #

@functools.partial(jax.jit, static_argnames=("use_res", "compute_dtype"))
def conv_block_forward(x, w1, w2, w1x1=None, *, use_res=True,
                       compute_dtype=jnp.bfloat16):
    """x: (N, Cin, H, W); w1: (Cout, Cin, 3, 3); w2: (Cout, Cout, 3, 3);
    w1x1: (Cout, Cin, 1, 1). Returns (N, Cout, H, W) float32."""
    x = x.astype(jnp.float32)
    N, Cin, H, W = x.shape
    Cout = w1.shape[0]
    Hp, Wp = H + 2, W + 2
    HWp = Hp * Wp
    HWp_pad = _round_up(HWp, 128)       # lane-dense / 128-aligned stores & accumulators
    MARGIN = _round_up(Wp + 1, 128)     # flat halo so every 3x3 tap is an in-bounds slice
    HWe = HWp_pad + 2 * MARGIN

    itemsize = jnp.dtype(compute_dtype).itemsize
    sub_tile = 8 * (4 // itemsize)      # sublane tile: 8 for f32, 16 for bf16
    fuse1 = (Cin % sub_tile == 0)       # aligned K-stacking for conv1
    fuse2 = (Cout % sub_tile == 0)      # aligned K-stacking for conv2

    # Zero-pad spatially, flatten, add 128-aligned flat margins (no HBM im2col).
    xp = jnp.pad(x, ((0, 0), (0, 0), (1, 1), (1, 1)))
    xpe = jnp.pad(xp.reshape(N, Cin, HWp),
                  ((0, 0), (0, 0), (MARGIN, HWe - MARGIN - HWp)))
    xpe = xpe.astype(compute_dtype)

    # Interior mask in padded-flat coordinates (covers exactly the H*W interior).
    mask = jnp.pad(jnp.ones((H, W), jnp.float32), ((1, 1), (1, 1))).reshape(1, HWp)
    mask = jnp.pad(mask, ((0, 0), (0, HWp_pad - HWp)))

    # Tap-major weight layouts: (Cout, 9*C) for the single fused dot when aligned,
    # (9, Cout, C) for the per-tap loop otherwise.
    if fuse1:
        w1_t = jnp.transpose(w1, (0, 2, 3, 1)).reshape(Cout, 9 * Cin)
        w1_spec = pl.BlockSpec((Cout, 9 * Cin), lambda n: (0, 0))
    else:
        w1_t = jnp.transpose(w1, (2, 3, 0, 1)).reshape(9, Cout, Cin)
        w1_spec = pl.BlockSpec((9, Cout, Cin), lambda n: (0, 0, 0))
    if fuse2:
        w2_t = jnp.transpose(w2, (0, 2, 3, 1)).reshape(Cout, 9 * Cout)
        w2_spec = pl.BlockSpec((Cout, 9 * Cout), lambda n: (0, 0))
    else:
        w2_t = jnp.transpose(w2, (2, 3, 0, 1)).reshape(9, Cout, Cout)
        w2_spec = pl.BlockSpec((9, Cout, Cout), lambda n: (0, 0, 0))
    w1_t = w1_t.astype(compute_dtype)
    w2_t = w2_t.astype(compute_dtype)

    # Block several images per grid step when the per-image matmuls are tiny.
    per_img_bytes = Cin * HWe * itemsize + Cout * HWp_pad * 4
    Nb = 1
    if Cout <= 32:
        for cand in range(min(N, 8), 0, -1):
            if N % cand == 0 and 2 * cand * per_img_bytes <= (8 << 20):
                Nb = cand
                break
    grid = (N // Nb,)

    inputs = [mask, xpe, w1_t, w2_t]
    in_specs = [
        pl.BlockSpec((1, HWp_pad), lambda n: (0, 0)),
        pl.BlockSpec((Nb, Cin, HWe), lambda n: (n, 0, 0)),
        w1_spec,
        w2_spec,
    ]
    if use_res:
        w1x1_t = w1x1.reshape(Cout, Cin).astype(compute_dtype)
        inputs.append(w1x1_t)
        in_specs.append(pl.BlockSpec((Cout, Cin), lambda n: (0, 0)))

    weight_bytes = (9 * Cout * (Cin + Cout)
                    + (Cout * Cin if use_res else 0)) * itemsize
    vmem_bytes = (2 * Nb * Cin * HWe * itemsize       # double-buffered input block
                  + 2 * Nb * Cout * HWp_pad * 4       # double-buffered output block
                  + 2 * weight_bytes
                  + 2 * HWp_pad * 4                   # mask
                  + Cout * HWe * itemsize)            # bf16 y1e scratch
    vmem_limit = int(min(48 * 1024 * 1024, vmem_bytes + (16 << 20)))

    flops = 2 * N * HWp_pad * Cout * (9 * Cin + 9 * Cout + (Cin if use_res else 0))
    bytes_accessed = (N * Cin * HWe * itemsize                 # activations
                      + N * Cout * HWp_pad * 4                 # output
                      + weight_bytes                           # weights
                      + HWp_pad * 4)                           # mask

    kernel = _make_fused_kernel(H, W, Cin, Cout, Nb, HWp_pad, MARGIN, use_res,
                                fuse1, fuse2, compute_dtype)

    out_pf = pl.pallas_call(
        kernel,
        out_shape=jax.ShapeDtypeStruct((N, Cout, HWp_pad), jnp.float32),
        grid=grid,
        in_specs=in_specs,
        out_specs=pl.BlockSpec((Nb, Cout, HWp_pad), lambda n: (n, 0, 0)),
        scratch_shapes=[pltpu.VMEM((Cout, HWe), compute_dtype)],
        compiler_params=pltpu.CompilerParams(
            dimension_semantics=("parallel",),
            vmem_limit_bytes=vmem_limit),
        cost_estimate=pl.CostEstimate(flops=int(flops),
                                      transcendentals=int(3 * N * Cout),
                                      bytes_accessed=int(bytes_accessed)),
    )(*inputs)

    # Kernel output is lane-dense (Cout, padded-flat-HW); drop alignment + spatial pad.
    return out_pf[:, :, :HWp].reshape(N, Cout, Hp, Wp)[:, :, 1:H + 1, 1:W + 1]


# ------------------------------ pure-JAX reference ------------------------------ #

def _ref_conv_block(x, w1, w2, w1x1, use_res=True):
    dn = ("NCHW", "OIHW", "NCHW")

    def conv(t, w, p):
        return jax.lax.conv_general_dilated(
            t, w, (1, 1), [(p, p), (p, p)], dimension_numbers=dn,
            precision=jax.lax.Precision.HIGHEST)

    def inorm(t):
        m = t.mean(axis=(2, 3), keepdims=True)
        v = ((t - m) ** 2).mean(axis=(2, 3), keepdims=True)
        return (t - m) / jnp.sqrt(v + EPS)

    def lrelu(t):
        return jnp.where(t >= 0, t, NEG_SLOPE * t)

    y = lrelu(inorm(conv(x, w1, 1)))     # conv1 + IN + LeakyReLU (+ dropout=id)
    y = conv(y, w2, 1)                   # conv2
    if use_res:
        y = y + inorm(conv(x, w1x1, 0))  # 1x1 conv + IN residual branch
    return lrelu(inorm(y))               # layers_out (dropout=id)


# ------------------------------------- main -------------------------------------- #

if __name__ == "__main__":
    N, Cin, Cout, H, W = 2, 4, 8, 16, 16
    key = jax.random.PRNGKey(0)
    k_x, k1, k2, k3 = jax.random.split(key, 4)

    x = jax.random.normal(k_x, (N, Cin, H, W), jnp.float32)
    # Deterministic, kaiming-uniform-scaled weights; all convs are bias-free.
    w1 = jax.random.uniform(k1, (Cout, Cin, 3, 3), jnp.float32, -1.0, 1.0) / jnp.sqrt(Cin * 9.0)
    w2 = jax.random.uniform(k2, (Cout, Cout, 3, 3), jnp.float32, -1.0, 1.0) / jnp.sqrt(Cout * 9.0)
    w1x1 = jax.random.uniform(k3, (Cout, Cin, 1, 1), jnp.float32, -1.0, 1.0) / jnp.sqrt(Cin * 1.0)

    # Residual branch enabled (module default).
    out = conv_block_forward(x, w1, w2, w1x1, use_res=True)
    out = jax.block_until_ready(out)
    ref = _ref_conv_block(x, w1, w2, w1x1, use_res=True)
    assert out.shape == (N, Cout, H, W), out.shape
    max_err = float(jnp.max(jnp.abs(out - ref)))
    # bf16 MXU inputs with f32 accumulation vs. an f32 HIGHEST-precision reference.
    assert jnp.allclose(out, ref, atol=3e-2, rtol=3e-2), f"max abs err {max_err}"

    # No-residual variant (residual branch compiled out of the kernel entirely).
    out_nr = conv_block_forward(x, w1, w2, use_res=False)
    out_nr = jax.block_until_ready(out_nr)
    ref_nr = _ref_conv_block(x, w1, w2, None, use_res=False)
    max_err_nr = float(jnp.max(jnp.abs(out_nr - ref_nr)))
    assert jnp.allclose(out_nr, ref_nr, atol=3e-2, rtol=3e-2), f"max abs err {max_err_nr}"

    print("KERNEL_OK")
</pallas_src>

<mosaic_0001>
module attributes {stable_mosaic.version = 11 : i64} {
  func.func @kernel(%arg0: i32, %arg1: memref<1x384xf32, #tpu.memory_space<vmem>>, %arg2: memref<2x4x640xbf16, #tpu.memory_space<vmem>>, %arg3: memref<9x8x4xbf16, #tpu.memory_space<vmem>>, %arg4: memref<9x8x8xbf16, #tpu.memory_space<vmem>>, %arg5: memref<8x4xbf16, #tpu.memory_space<vmem>>, %arg6: memref<2x8x384xf32, #tpu.memory_space<vmem>>, %arg7: memref<8x640xbf16, #tpu.memory_space<vmem>>) attributes {dimension_semantics = [#tpu.dimension_semantics<parallel>], iteration_bounds = array<i64: 1>, scalar_prefetch = 0 : i64, scratch_operands = 1 : i64, tpu.core_type = #tpu.core_type<tc>, window_params = [{pipeline_mode = #tpu.pipeline_mode<synchronous>, transform_indices = @transform_0, window_bounds = array<i64: 1, 384>}, {transform_indices = @transform_1, window_bounds = array<i64: 2, 4, 640>}, {pipeline_mode = #tpu.pipeline_mode<synchronous>, transform_indices = @transform_2, window_bounds = array<i64: 9, 8, 4>}, {pipeline_mode = #tpu.pipeline_mode<synchronous>, transform_indices = @transform_3, window_bounds = array<i64: 9, 8, 8>}, {pipeline_mode = #tpu.pipeline_mode<synchronous>, transform_indices = @transform_4, window_bounds = array<i64: 8, 4>}, {transform_indices = @transform_5, window_bounds = array<i64: 2, 8, 384>}]} {
    %cst = arith.constant 0.000000e+00 : bf16
    %0 = vector.broadcast %cst : bf16 to vector<8x128xbf16>
    %c0 = arith.constant 0 : index
    %c0_0 = arith.constant 0 : index
    %1 = vector.load %arg7[%c0, %c0_0] : memref<8x640xbf16, #tpu.memory_space<vmem>>, vector<8x128xbf16>
    tpu.vector_store %arg7[%c0, %c0_0], %0 {strides = array<i32>} : memref<8x640xbf16, #tpu.memory_space<vmem>>, vector<8x128xbf16>,
    %c0_1 = arith.constant 0 : index
    %c512 = arith.constant 512 : index
    %2 = vector.load %arg7[%c0_1, %c512] : memref<8x640xbf16, #tpu.memory_space<vmem>>, vector<8x128xbf16>
    tpu.vector_store %arg7[%c0_1, %c512], %0 {strides = array<i32>} : memref<8x640xbf16, #tpu.memory_space<vmem>>, vector<8x128xbf16>,
    %c0_2 = arith.constant 0 : index
    %c0_3 = arith.constant 0 : index
    %3 = vector.load %arg1[%c0_2, %c0_3] : memref<1x384xf32, #tpu.memory_space<vmem>>, vector<1x384xf32>
    %c0_4 = arith.constant 0 : index
    %c0_5 = arith.constant 0 : index
    %c0_6 = arith.constant 0 : index
    %4 = vector.load %arg2[%c0_4, %c0_5, %c0_6] : memref<2x4x640xbf16, #tpu.memory_space<vmem>>, vector<1x4x640xbf16>
    %5 = vector.shape_cast %4 : vector<1x4x640xbf16> to vector<4x640xbf16>
    %c0_7 = arith.constant 0 : index
    %c0_8 = arith.constant 0 : index
    %c0_9 = arith.constant 0 : index
    %6 = vector.load %arg3[%c0_7, %c0_8, %c0_9] : memref<9x8x4xbf16, #tpu.memory_space<vmem>>, vector<1x8x4xbf16>
    %7 = vector.shape_cast %6 : vector<1x8x4xbf16> to vector<8x4xbf16>
    %8 = vector.extract_strided_slice %5 {offsets = [0, 109], sizes = [4, 384], strides = [1, 1]} : vector<4x640xbf16> to vector<4x384xbf16>
    %cst_10 = arith.constant dense<0.000000e+00> : vector<8x384xf32>
    %9 = tpu.matmul %7, %8, %cst_10 {dimension_numbers = #tpu.dot_dimension_numbers<[1], [0], [0], [1], [0, 0, 1, 1], [], []>} : vector<8x4xbf16>, vector<4x384xbf16>, vector<8x384xf32> -> vector<8x384xf32>
    %c1 = arith.constant 1 : index
    %c0_11 = arith.constant 0 : index
    %c0_12 = arith.constant 0 : index
    %10 = vector.load %arg3[%c1, %c0_11, %c0_12] : memref<9x8x4xbf16, #tpu.memory_space<vmem>>, vector<1x8x4xbf16>
    %11 = vector.shape_cast %10 : vector<1x8x4xbf16> to vector<8x4xbf16>
    %12 = vector.extract_strided_slice %5 {offsets = [0, 110], sizes = [4, 384], strides = [1, 1]} : vector<4x640xbf16> to vector<4x384xbf16>
    %cst_13 = arith.constant dense<0.000000e+00> : vector<8x384xf32>
    %13 = tpu.matmul %11, %12, %cst_13 {dimension_numbers = #tpu.dot_dimension_numbers<[1], [0], [0], [1], [0, 0, 1, 1], [], []>} : vector<8x4xbf16>, vector<4x384xbf16>, vector<8x384xf32> -> vector<8x384xf32>
    %14 = arith.addf %9, %13 : vector<8x384xf32>
    %c2 = arith.constant 2 : index
    %c0_14 = arith.constant 0 : index
    %c0_15 = arith.constant 0 : index
    %15 = vector.load %arg3[%c2, %c0_14, %c0_15] : memref<9x8x4xbf16, #tpu.memory_space<vmem>>, vector<1x8x4xbf16>
    %16 = vector.shape_cast %15 : vector<1x8x4xbf16> to vector<8x4xbf16>
    %17 = vector.extract_strided_slice %5 {offsets = [0, 111], sizes = [4, 384], strides = [1, 1]} : vector<4x640xbf16> to vector<4x384xbf16>
    %cst_16 = arith.constant dense<0.000000e+00> : vector<8x384xf32>
    %18 = tpu.matmul %16, %17, %cst_16 {dimension_numbers = #tpu.dot_dimension_numbers<[1], [0], [0], [1], [0, 0, 1, 1], [], []>} : vector<8x4xbf16>, vector<4x384xbf16>, vector<8x384xf32> -> vector<8x384xf32>
    %19 = arith.addf %14, %18 : vector<8x384xf32>
    %c3 = arith.constant 3 : index
    %c0_17 = arith.constant 0 : index
    %c0_18 = arith.constant 0 : index
    %20 = vector.load %arg3[%c3, %c0_17, %c0_18] : memref<9x8x4xbf16, #tpu.memory_space<vmem>>, vector<1x8x4xbf16>
    %21 = vector.shape_cast %20 : vector<1x8x4xbf16> to vector<8x4xbf16>
    %22 = vector.extract_strided_slice %5 {offsets = [0, 127], sizes = [4, 384], strides = [1, 1]} : vector<4x640xbf16> to vector<4x384xbf16>
    %cst_19 = arith.constant dense<0.000000e+00> : vector<8x384xf32>
    %23 = tpu.matmul %21, %22, %cst_19 {dimension_numbers = #tpu.dot_dimension_numbers<[1], [0], [0], [1], [0, 0, 1, 1], [], []>} : vector<8x4xbf16>, vector<4x384xbf16>, vector<8x384xf32> -> vector<8x384xf32>
    %24 = arith.addf %19, %23 : vector<8x384xf32>
    %c4 = arith.constant 4 : index
    %c0_20 = arith.constant 0 : index
    %c0_21 = arith.constant 0 : index
    %25 = vector.load %arg3[%c4, %c0_20, %c0_21] : memref<9x8x4xbf16, #tpu.memory_space<vmem>>, vector<1x8x4xbf16>
    %26 = vector.shape_cast %25 : vector<1x8x4xbf16> to vector<8x4xbf16>
    %27 = vector.extract_strided_slice %5 {offsets = [0, 128], sizes = [4, 384], strides = [1, 1]} : vector<4x640xbf16> to vector<4x384xbf16>
    %cst_22 = arith.constant dense<0.000000e+00> : vector<8x384xf32>
    %28 = tpu.matmul %26, %27, %cst_22 {dimension_numbers = #tpu.dot_dimension_numbers<[1], [0], [0], [1], [0, 0, 1, 1], [], []>} : vector<8x4xbf16>, vector<4x384xbf16>, vector<8x384xf32> -> vector<8x384xf32>
    %29 = arith.addf %24, %28 : vector<8x384xf32>
    %c5 = arith.constant 5 : index
    %c0_23 = arith.constant 0 : index
    %c0_24 = arith.constant 0 : index
    %30 = vector.load %arg3[%c5, %c0_23, %c0_24] : memref<9x8x4xbf16, #tpu.memory_space<vmem>>, vector<1x8x4xbf16>
    %31 = vector.shape_cast %30 : vector<1x8x4xbf16> to vector<8x4xbf16>
    %32 = vector.extract_strided_slice %5 {offsets = [0, 129], sizes = [4, 384], strides = [1, 1]} : vector<4x640xbf16> to vector<4x384xbf16>
    %cst_25 = arith.constant dense<0.000000e+00> : vector<8x384xf32>
    %33 = tpu.matmul %31, %32, %cst_25 {dimension_numbers = #tpu.dot_dimension_numbers<[1], [0], [0], [1], [0, 0, 1, 1], [], []>} : vector<8x4xbf16>, vector<4x384xbf16>, vector<8x384xf32> -> vector<8x384xf32>
    %34 = arith.addf %29, %33 : vector<8x384xf32>
    %c6 = arith.constant 6 : index
    %c0_26 = arith.constant 0 : index
    %c0_27 = arith.constant 0 : index
    %35 = vector.load %arg3[%c6, %c0_26, %c0_27] : memref<9x8x4xbf16, #tpu.memory_space<vmem>>, vector<1x8x4xbf16>
    %36 = vector.shape_cast %35 : vector<1x8x4xbf16> to vector<8x4xbf16>
    %37 = vector.extract_strided_slice %5 {offsets = [0, 145], sizes = [4, 384], strides = [1, 1]} : vector<4x640xbf16> to vector<4x384xbf16>
    %cst_28 = arith.constant dense<0.000000e+00> : vector<8x384xf32>
    %38 = tpu.matmul %36, %37, %cst_28 {dimension_numbers = #tpu.dot_dimension_numbers<[1], [0], [0], [1], [0, 0, 1, 1], [], []>} : vector<8x4xbf16>, vector<4x384xbf16>, vector<8x384xf32> -> vector<8x384xf32>
    %39 = arith.addf %34, %38 : vector<8x384xf32>
    %c7 = arith.constant 7 : index
    %c0_29 = arith.constant 0 : index
    %c0_30 = arith.constant 0 : index
    %40 = vector.load %arg3[%c7, %c0_29, %c0_30] : memref<9x8x4xbf16, #tpu.memory_space<vmem>>, vector<1x8x4xbf16>
    %41 = vector.shape_cast %40 : vector<1x8x4xbf16> to vector<8x4xbf16>
    %42 = vector.extract_strided_slice %5 {offsets = [0, 146], sizes = [4, 384], strides = [1, 1]} : vector<4x640xbf16> to vector<4x384xbf16>
    %cst_31 = arith.constant dense<0.000000e+00> : vector<8x384xf32>
    %43 = tpu.matmul %41, %42, %cst_31 {dimension_numbers = #tpu.dot_dimension_numbers<[1], [0], [0], [1], [0, 0, 1, 1], [], []>} : vector<8x4xbf16>, vector<4x384xbf16>, vector<8x384xf32> -> vector<8x384xf32>
    %44 = arith.addf %39, %43 : vector<8x384xf32>
    %c8 = arith.constant 8 : index
    %c0_32 = arith.constant 0 : index
    %c0_33 = arith.constant 0 : index
    %45 = vector.load %arg3[%c8, %c0_32, %c0_33] : memref<9x8x4xbf16, #tpu.memory_space<vmem>>, vector<1x8x4xbf16>
    %46 = vector.shape_cast %45 : vector<1x8x4xbf16> to vector<8x4xbf16>
    %47 = vector.extract_strided_slice %5 {offsets = [0, 147], sizes = [4, 384], strides = [1, 1]} : vector<4x640xbf16> to vector<4x384xbf16>
    %cst_34 = arith.constant dense<0.000000e+00> : vector<8x384xf32>
    %48 = tpu.matmul %46, %47, %cst_34 {dimension_numbers = #tpu.dot_dimension_numbers<[1], [0], [0], [1], [0, 0, 1, 1], [], []>} : vector<8x4xbf16>, vector<4x384xbf16>, vector<8x384xf32> -> vector<8x384xf32>
    %49 = arith.addf %44, %48 : vector<8x384xf32>
    %50 = vector.broadcast %3 : vector<1x384xf32> to vector<8x384xf32>
    %51 = arith.mulf %49, %50 : vector<8x384xf32>
    %cst_35 = arith.constant dense<0.000000e+00> : vector<8xf32>
    %52 = vector.multi_reduction <add>, %51, %cst_35 [1] : vector<8x384xf32> to vector<8xf32>
    %53 = vector.shape_cast %52 : vector<8xf32> to vector<8x1xf32>
    %cst_36 = arith.constant 3.906250e-03 : f32
    %54 = vector.broadcast %cst_36 : f32 to vector<8x1xf32>
    %55 = arith.mulf %53, %54 : vector<8x1xf32>
    %56 = vector.broadcast %55 : vector<8x1xf32> to vector<8x384xf32>
    %57 = arith.subf %49, %56 : vector<8x384xf32>
    %58 = vector.broadcast %3 : vector<1x384xf32> to vector<8x384xf32>
    %59 = arith.mulf %57, %58 : vector<8x384xf32>
    %60 = arith.mulf %59, %59 : vector<8x384xf32>
    %cst_37 = arith.constant dense<0.000000e+00> : vector<8xf32>
    %61 = vector.multi_reduction <add>, %60, %cst_37 [1] : vector<8x384xf32> to vector<8xf32>
    %62 = vector.shape_cast %61 : vector<8xf32> to vector<8x1xf32>
    %cst_38 = arith.constant 3.906250e-03 : f32
    %63 = vector.broadcast %cst_38 : f32 to vector<8x1xf32>
    %64 = arith.mulf %62, %63 : vector<8x1xf32>
    %cst_39 = arith.constant 9.99999974E-6 : f32
    %65 = vector.broadcast %cst_39 : f32 to vector<8x1xf32>
    %66 = arith.addf %64, %65 : vector<8x1xf32>
    %67 = math.rsqrt %66 : vector<8x1xf32>
    %68 = vector.broadcast %67 : vector<8x1xf32> to vector<8x384xf32>
    %69 = arith.mulf %59, %68 : vector<8x384xf32>
    %cst_40 = arith.constant 2.000000e-01 : f32
    %70 = vector.broadcast %cst_40 : f32 to vector<8x384xf32>
    %71 = arith.mulf %70, %69 : vector<8x384xf32>
    %72 = arith.maximumf %69, %71 : vector<8x384xf32>
    %73 = arith.truncf %72 : vector<8x384xf32> to vector<8x384xbf16>
    %c0_41 = arith.constant 0 : index
    %c128 = arith.constant 128 : index
    %74 = vector.load %arg7[%c0_41, %c128] : memref<8x640xbf16, #tpu.memory_space<vmem>>, vector<8x384xbf16>
    tpu.vector_store %arg7[%c0_41, %c128], %73 {strides = array<i32>} : memref<8x640xbf16, #tpu.memory_space<vmem>>, vector<8x384xbf16>,
    %c0_42 = arith.constant 0 : index
    %c0_43 = arith.constant 0 : index
    %c0_44 = arith.constant 0 : index
    %75 = vector.load %arg4[%c0_42, %c0_43, %c0_44] : memref<9x8x8xbf16, #tpu.memory_space<vmem>>, vector<1x8x8xbf16>
    %76 = vector.shape_cast %75 : vector<1x8x8xbf16> to vector<8x8xbf16>
    %c0_45 = arith.constant 0 : index
    %c109 = arith.constant 109 : index
    %77 = vector.load %arg7[%c0_45, %c109] : memref<8x640xbf16, #tpu.memory_space<vmem>>, vector<8x384xbf16>
    %cst_46 = arith.constant dense<0.000000e+00> : vector<8x384xf32>
    %78 = tpu.matmul %76, %77, %cst_46 {dimension_numbers = #tpu.dot_dimension_numbers<[1], [0], [0], [1], [0, 0, 1, 1], [], []>} : vector<8x8xbf16>, vector<8x384xbf16>, vector<8x384xf32> -> vector<8x384xf32>
    %c1_47 = arith.constant 1 : index
    %c0_48 = arith.constant 0 : index
    %c0_49 = arith.constant 0 : index
    %79 = vector.load %arg4[%c1_47, %c0_48, %c0_49] : memref<9x8x8xbf16, #tpu.memory_space<vmem>>, vector<1x8x8xbf16>
    %80 = vector.shape_cast %79 : vector<1x8x8xbf16> to vector<8x8xbf16>
    %c0_50 = arith.constant 0 : index
    %c110 = arith.constant 110 : index
    %81 = vector.load %arg7[%c0_50, %c110] : memref<8x640xbf16, #tpu.memory_space<vmem>>, vector<8x384xbf16>
    %cst_51 = arith.constant dense<0.000000e+00> : vector<8x384xf32>
    %82 = tpu.matmul %80, %81, %cst_51 {dimension_numbers = #tpu.dot_dimension_numbers<[1], [0], [0], [1], [0, 0, 1, 1], [], []>} : vector<8x8xbf16>, vector<8x384xbf16>, vector<8x384xf32> -> vector<8x384xf32>
    %83 = arith.addf %78, %82 : vector<8x384xf32>
    %c2_52 = arith.constant 2 : index
    %c0_53 = arith.constant 0 : index
    %c0_54 = arith.constant 0 : index
    %84 = vector.load %arg4[%c2_52, %c0_53, %c0_54] : memref<9x8x8xbf16, #tpu.memory_space<vmem>>, vector<1x8x8xbf16>
    %85 = vector.shape_cast %84 : vector<1x8x8xbf16> to vector<8x8xbf16>
    %c0_55 = arith.constant 0 : index
    %c111 = arith.constant 111 : index
    %86 = vector.load %arg7[%c0_55, %c111] : memref<8x640xbf16, #tpu.memory_space<vmem>>, vector<8x384xbf16>
    %cst_56 = arith.constant dense<0.000000e+00> : vector<8x384xf32>
    %87 = tpu.matmul %85, %86, %cst_56 {dimension_numbers = #tpu.dot_dimension_numbers<[1], [0], [0], [1], [0, 0, 1, 1], [], []>} : vector<8x8xbf16>, vector<8x384xbf16>, vector<8x384xf32> -> vector<8x384xf32>
    %88 = arith.addf %83, %87 : vector<8x384xf32>
    %c3_57 = arith.constant 3 : index
    %c0_58 = arith.constant 0 : index
    %c0_59 = arith.constant 0 : index
    %89 = vector.load %arg4[%c3_57, %c0_58, %c0_59] : memref<9x8x8xbf16, #tpu.memory_space<vmem>>, vector<1x8x8xbf16>
    %90 = vector.shape_cast %89 : vector<1x8x8xbf16> to vector<8x8xbf16>
    %c0_60 = arith.constant 0 : index
    %c127 = arith.constant 127 : index
    %91 = vector.load %arg7[%c0_60, %c127] : memref<8x640xbf16, #tpu.memory_space<vmem>>, vector<8x384xbf16>
    %cst_61 = arith.constant dense<0.000000e+00> : vector<8x384xf32>
    %92 = tpu.matmul %90, %91, %cst_61 {dimension_numbers = #tpu.dot_dimension_numbers<[1], [0], [0], [1], [0, 0, 1, 1], [], []>} : vector<8x8xbf16>, vector<8x384xbf16>, vector<8x384xf32> -> vector<8x384xf32>
    %93 = arith.addf %88, %92 : vector<8x384xf32>
    %c4_62 = arith.constant 4 : index
    %c0_63 = arith.constant 0 : index
    %c0_64 = arith.constant 0 : index
    %94 = vector.load %arg4[%c4_62, %c0_63, %c0_64] : memref<9x8x8xbf16, #tpu.memory_space<vmem>>, vector<1x8x8xbf16>
    %95 = vector.shape_cast %94 : vector<1x8x8xbf16> to vector<8x8xbf16>
    %c0_65 = arith.constant 0 : index
    %c128_66 = arith.constant 128 : index
    %96 = vector.load %arg7[%c0_65, %c128_66] : memref<8x640xbf16, #tpu.memory_space<vmem>>, vector<8x384xbf16>
    %cst_67 = arith.constant dense<0.000000e+00> : vector<8x384xf32>
    %97 = tpu.matmul %95, %96, %cst_67 {dimension_numbers = #tpu.dot_dimension_numbers<[1], [0], [0], [1], [0, 0, 1, 1], [], []>} : vector<8x8xbf16>, vector<8x384xbf16>, vector<8x384xf32> -> vector<8x384xf32>
    %98 = arith.addf %93, %97 : vector<8x384xf32>
    %c5_68 = arith.constant 5 : index
    %c0_69 = arith.constant 0 : index
    %c0_70 = arith.constant 0 : index
    %99 = vector.load %arg4[%c5_68, %c0_69, %c0_70] : memref<9x8x8xbf16, #tpu.memory_space<vmem>>, vector<1x8x8xbf16>
    %100 = vector.shape_cast %99 : vector<1x8x8xbf16> to vector<8x8xbf16>
    %c0_71 = arith.constant 0 : index
    %c129 = arith.constant 129 : index
    %101 = vector.load %arg7[%c0_71, %c129] : memref<8x640xbf16, #tpu.memory_space<vmem>>, vector<8x384xbf16>
    %cst_72 = arith.constant dense<0.000000e+00> : vector<8x384xf32>
    %102 = tpu.matmul %100, %101, %cst_72 {dimension_numbers = #tpu.dot_dimension_numbers<[1], [0], [0], [1], [0, 0, 1, 1], [], []>} : vector<8x8xbf16>, vector<8x384xbf16>, vector<8x384xf32> -> vector<8x384xf32>
    %103 = arith.addf %98, %102 : vector<8x384xf32>
    %c6_73 = arith.constant 6 : index
    %c0_74 = arith.constant 0 : index
    %c0_75 = arith.constant 0 : index
    %104 = vector.load %arg4[%c6_73, %c0_74, %c0_75] : memref<9x8x8xbf16, #tpu.memory_space<vmem>>, vector<1x8x8xbf16>
    %105 = vector.shape_cast %104 : vector<1x8x8xbf16> to vector<8x8xbf16>
    %c0_76 = arith.constant 0 : index
    %c145 = arith.constant 145 : index
    %106 = vector.load %arg7[%c0_76, %c145] : memref<8x640xbf16, #tpu.memory_space<vmem>>, vector<8x384xbf16>
    %cst_77 = arith.constant dense<0.000000e+00> : vector<8x384xf32>
    %107 = tpu.matmul %105, %106, %cst_77 {dimension_numbers = #tpu.dot_dimension_numbers<[1], [0], [0], [1], [0, 0, 1, 1], [], []>} : vector<8x8xbf16>, vector<8x384xbf16>, vector<8x384xf32> -> vector<8x384xf32>
    %108 = arith.addf %103, %107 : vector<8x384xf32>
    %c7_78 = arith.constant 7 : index
    %c0_79 = arith.constant 0 : index
    %c0_80 = arith.constant 0 : index
    %109 = vector.load %arg4[%c7_78, %c0_79, %c0_80] : memref<9x8x8xbf16, #tpu.memory_space<vmem>>, vector<1x8x8xbf16>
    %110 = vector.shape_cast %109 : vector<1x8x8xbf16> to vector<8x8xbf16>
    %c0_81 = arith.constant 0 : index
    %c146 = arith.constant 146 : index
    %111 = vector.load %arg7[%c0_81, %c146] : memref<8x640xbf16, #tpu.memory_space<vmem>>, vector<8x384xbf16>
    %cst_82 = arith.constant dense<0.000000e+00> : vector<8x384xf32>
    %112 = tpu.matmul %110, %111, %cst_82 {dimension_numbers = #tpu.dot_dimension_numbers<[1], [0], [0], [1], [0, 0, 1, 1], [], []>} : vector<8x8xbf16>, vector<8x384xbf16>, vector<8x384xf32> -> vector<8x384xf32>
    %113 = arith.addf %108, %112 : vector<8x384xf32>
    %c8_83 = arith.constant 8 : index
    %c0_84 = arith.constant 0 : index
    %c0_85 = arith.constant 0 : index
    %114 = vector.load %arg4[%c8_83, %c0_84, %c0_85] : memref<9x8x8xbf16, #tpu.memory_space<vmem>>, vector<1x8x8xbf16>
    %115 = vector.shape_cast %114 : vector<1x8x8xbf16> to vector<8x8xbf16>
    %c0_86 = arith.constant 0 : index
    %c147 = arith.constant 147 : index
    %116 = vector.load %arg7[%c0_86, %c147] : memref<8x640xbf16, #tpu.memory_space<vmem>>, vector<8x384xbf16>
    %cst_87 = arith.constant dense<0.000000e+00> : vector<8x384xf32>
    %117 = tpu.matmul %115, %116, %cst_87 {dimension_numbers = #tpu.dot_dimension_numbers<[1], [0], [0], [1], [0, 0, 1, 1], [], []>} : vector<8x8xbf16>, vector<8x384xbf16>, vector<8x384xf32> -> vector<8x384xf32>
    %118 = arith.addf %113, %117 : vector<8x384xf32>
    %c0_88 = arith.constant 0 : index
    %c0_89 = arith.constant 0 : index
    %119 = vector.load %arg5[%c0_88, %c0_89] : memref<8x4xbf16, #tpu.memory_space<vmem>>, vector<8x4xbf16>
    %120 = vector.extract_strided_slice %5 {offsets = [0, 128], sizes = [4, 384], strides = [1, 1]} : vector<4x640xbf16> to vector<4x384xbf16>
    %cst_90 = arith.constant dense<0.000000e+00> : vector<8x384xf32>
    %121 = tpu.matmul %119, %120, %cst_90 {dimension_numbers = #tpu.dot_dimension_numbers<[1], [0], [0], [1], [0, 0, 1, 1], [], []>} : vector<8x4xbf16>, vector<4x384xbf16>, vector<8x384xf32> -> vector<8x384xf32>
    %122 = vector.broadcast %3 : vector<1x384xf32> to vector<8x384xf32>
    %123 = arith.mulf %121, %122 : vector<8x384xf32>
    %cst_91 = arith.constant dense<0.000000e+00> : vector<8xf32>
    %124 = vector.multi_reduction <add>, %123, %cst_91 [1] : vector<8x384xf32> to vector<8xf32>
    %125 = vector.shape_cast %124 : vector<8xf32> to vector<8x1xf32>
    %cst_92 = arith.constant 3.906250e-03 : f32
    %126 = vector.broadcast %cst_92 : f32 to vector<8x1xf32>
    %127 = arith.mulf %125, %126 : vector<8x1xf32>
    %128 = vector.broadcast %127 : vector<8x1xf32> to vector<8x384xf32>
    %129 = arith.subf %121, %128 : vector<8x384xf32>
    %130 = vector.broadcast %3 : vector<1x384xf32> to vector<8x384xf32>
    %131 = arith.mulf %129, %130 : vector<8x384xf32>
    %132 = arith.mulf %131, %131 : vector<8x384xf32>
    %cst_93 = arith.constant dense<0.000000e+00> : vector<8xf32>
    %133 = vector.multi_reduction <add>, %132, %cst_93 [1] : vector<8x384xf32> to vector<8xf32>
    %134 = vector.shape_cast %133 : vector<8xf32> to vector<8x1xf32>
    %cst_94 = arith.constant 3.906250e-03 : f32
    %135 = vector.broadcast %cst_94 : f32 to vector<8x1xf32>
    %136 = arith.mulf %134, %135 : vector<8x1xf32>
    %cst_95 = arith.constant 9.99999974E-6 : f32
    %137 = vector.broadcast %cst_95 : f32 to vector<8x1xf32>
    %138 = arith.addf %136, %137 : vector<8x1xf32>
    %139 = math.rsqrt %138 : vector<8x1xf32>
    %140 = vector.broadcast %139 : vector<8x1xf32> to vector<8x384xf32>
    %141 = arith.mulf %131, %140 : vector<8x384xf32>
    %142 = arith.addf %118, %141 : vector<8x384xf32>
    %143 = vector.broadcast %3 : vector<1x384xf32> to vector<8x384xf32>
    %144 = arith.mulf %142, %143 : vector<8x384xf32>
    %cst_96 = arith.constant dense<0.000000e+00> : vector<8xf32>
    %145 = vector.multi_reduction <add>, %144, %cst_96 [1] : vector<8x384xf32> to vector<8xf32>
    %146 = vector.shape_cast %145 : vector<8xf32> to vector<8x1xf32>
    %cst_97 = arith.constant 3.906250e-03 : f32
    %147 = vector.broadcast %cst_97 : f32 to vector<8x1xf32>
    %148 = arith.mulf %146, %147 : vector<8x1xf32>
    %149 = vector.broadcast %148 : vector<8x1xf32> to vector<8x384xf32>
    %150 = arith.subf %142, %149 : vector<8x384xf32>
    %151 = vector.broadcast %3 : vector<1x384xf32> to vector<8x384xf32>
    %152 = arith.mulf %150, %151 : vector<8x384xf32>
    %153 = arith.mulf %152, %152 : vector<8x384xf32>
    %cst_98 = arith.constant dense<0.000000e+00> : vector<8xf32>
    %154 = vector.multi_reduction <add>, %153, %cst_98 [1] : vector<8x384xf32> to vector<8xf32>
    %155 = vector.shape_cast %154 : vector<8xf32> to vector<8x1xf32>
    %cst_99 = arith.constant 3.906250e-03 : f32
    %156 = vector.broadcast %cst_99 : f32 to vector<8x1xf32>
    %157 = arith.mulf %155, %156 : vector<8x1xf32>
    %cst_100 = arith.constant 9.99999974E-6 : f32
    %158 = vector.broadcast %cst_100 : f32 to vector<8x1xf32>
    %159 = arith.addf %157, %158 : vector<8x1xf32>
    %160 = math.rsqrt %159 : vector<8x1xf32>
    %161 = vector.broadcast %160 : vector<8x1xf32> to vector<8x384xf32>
    %162 = arith.mulf %152, %161 : vector<8x384xf32>
    %cst_101 = arith.constant 2.000000e-01 : f32
    %163 = vector.broadcast %cst_101 : f32 to vector<8x384xf32>
    %164 = arith.mulf %163, %162 : vector<8x384xf32>
    %165 = arith.maximumf %162, %164 : vector<8x384xf32>
    %c0_102 = arith.constant 0 : index
    %c0_103 = arith.constant 0 : index
    %c0_104 = arith.constant 0 : index
    %166 = vector.load %arg6[%c0_102, %c0_103, %c0_104] : memref<2x8x384xf32, #tpu.memory_space<vmem>>, vector<1x8x384xf32>
    %167 = vector.shape_cast %166 : vector<1x8x384xf32> to vector<8x384xf32>
    %168 = vector.shape_cast %165 : vector<8x384xf32> to vector<1x8x384xf32>
    tpu.vector_store %arg6[%c0_102, %c0_103, %c0_104], %168 {strides = array<i32>} : memref<2x8x384xf32, #tpu.memory_space<vmem>>, vector<1x8x384xf32>,
    %c1_105 = arith.constant 1 : index
    %c0_106 = arith.constant 0 : index
    %c0_107 = arith.constant 0 : index
    %169 = vector.load %arg2[%c1_105, %c0_106, %c0_107] : memref<2x4x640xbf16, #tpu.memory_space<vmem>>, vector<1x4x640xbf16>
    %170 = vector.shape_cast %169 : vector<1x4x640xbf16> to vector<4x640xbf16>
    %c0_108 = arith.constant 0 : index
    %c0_109 = arith.constant 0 : index
    %c0_110 = arith.constant 0 : index
    %171 = vector.load %arg3[%c0_108, %c0_109, %c0_110] : memref<9x8x4xbf16, #tpu.memory_space<vmem>>, vector<1x8x4xbf16>
    %172 = vector.shape_cast %171 : vector<1x8x4xbf16> to vector<8x4xbf16>
    %173 = vector.extract_strided_slice %170 {offsets = [0, 109], sizes = [4, 384], strides = [1, 1]} : vector<4x640xbf16> to vector<4x384xbf16>
    %cst_111 = arith.constant dense<0.000000e+00> : vector<8x384xf32>
    %174 = tpu.matmul %172, %173, %cst_111 {dimension_numbers = #tpu.dot_dimension_numbers<[1], [0], [0], [1], [0, 0, 1, 1], [], []>} : vector<8x4xbf16>, vector<4x384xbf16>, vector<8x384xf32> -> vector<8x384xf32>
    %c1_112 = arith.constant 1 : index
    %c0_113 = arith.constant 0 : index
    %c0_114 = arith.constant 0 : index
    %175 = vector.load %arg3[%c1_112, %c0_113, %c0_114] : memref<9x8x4xbf16, #tpu.memory_space<vmem>>, vector<1x8x4xbf16>
    %176 = vector.shape_cast %175 : vector<1x8x4xbf16> to vector<8x4xbf16>
    %177 = vector.extract_strided_slice %170 {offsets = [0, 110], sizes = [4, 384], strides = [1, 1]} : vector<4x640xbf16> to vector<4x384xbf16>
    %cst_115 = arith.constant dense<0.000000e+00> : vector<8x384xf32>
    %178 = tpu.matmul %176, %177, %cst_115 {dimension_numbers = #tpu.dot_dimension_numbers<[1], [0], [0], [1], [0, 0, 1, 1], [], []>} : vector<8x4xbf16>, vector<4x384xbf16>, vector<8x384xf32> -> vector<8x384xf32>
    %179 = arith.addf %174, %178 : vector<8x384xf32>
    %c2_116 = arith.constant 2 : index
    %c0_117 = arith.constant 0 : index
    %c0_118 = arith.constant 0 : index
    %180 = vector.load %arg3[%c2_116, %c0_117, %c0_118] : memref<9x8x4xbf16, #tpu.memory_space<vmem>>, vector<1x8x4xbf16>
    %181 = vector.shape_cast %180 : vector<1x8x4xbf16> to vector<8x4xbf16>
    %182 = vector.extract_strided_slice %170 {offsets = [0, 111], sizes = [4, 384], strides = [1, 1]} : vector<4x640xbf16> to vector<4x384xbf16>
    %cst_119 = arith.constant dense<0.000000e+00> : vector<8x384xf32>
    %183 = tpu.matmul %181, %182, %cst_119 {dimension_numbers = #tpu.dot_dimension_numbers<[1], [0], [0], [1], [0, 0, 1, 1], [], []>} : vector<8x4xbf16>, vector<4x384xbf16>, vector<8x384xf32> -> vector<8x384xf32>
    %184 = arith.addf %179, %183 : vector<8x384xf32>
    %c3_120 = arith.constant 3 : index
    %c0_121 = arith.constant 0 : index
    %c0_122 = arith.constant 0 : index
    %185 = vector.load %arg3[%c3_120, %c0_121, %c0_122] : memref<9x8x4xbf16, #tpu.memory_space<vmem>>, vector<1x8x4xbf16>
    %186 = vector.shape_cast %185 : vector<1x8x4xbf16> to vector<8x4xbf16>
    %187 = vector.extract_strided_slice %170 {offsets = [0, 127], sizes = [4, 384], strides = [1, 1]} : vector<4x640xbf16> to vector<4x384xbf16>
    %cst_123 = arith.constant dense<0.000000e+00> : vector<8x384xf32>
    %188 = tpu.matmul %186, %187, %cst_123 {dimension_numbers = #tpu.dot_dimension_numbers<[1], [0], [0], [1], [0, 0, 1, 1], [], []>} : vector<8x4xbf16>, vector<4x384xbf16>, vector<8x384xf32> -> vector<8x384xf32>
    %189 = arith.addf %184, %188 : vector<8x384xf32>
    %c4_124 = arith.constant 4 : index
    %c0_125 = arith.constant 0 : index
    %c0_126 = arith.constant 0 : index
    %190 = vector.load %arg3[%c4_124, %c0_125, %c0_126] : memref<9x8x4xbf16, #tpu.memory_space<vmem>>, vector<1x8x4xbf16>
    %191 = vector.shape_cast %190 : vector<1x8x4xbf16> to vector<8x4xbf16>
    %192 = vector.extract_strided_slice %170 {offsets = [0, 128], sizes = [4, 384], strides = [1, 1]} : vector<4x640xbf16> to vector<4x384xbf16>
    %cst_127 = arith.constant dense<0.000000e+00> : vector<8x384xf32>
    %193 = tpu.matmul %191, %192, %cst_127 {dimension_numbers = #tpu.dot_dimension_numbers<[1], [0], [0], [1], [0, 0, 1, 1], [], []>} : vector<8x4xbf16>, vector<4x384xbf16>, vector<8x384xf32> -> vector<8x384xf32>
    %194 = arith.addf %189, %193 : vector<8x384xf32>
    %c5_128 = arith.constant 5 : index
    %c0_129 = arith.constant 0 : index
    %c0_130 = arith.constant 0 : index
    %195 = vector.load %arg3[%c5_128, %c0_129, %c0_130] : memref<9x8x4xbf16, #tpu.memory_space<vmem>>, vector<1x8x4xbf16>
    %196 = vector.shape_cast %195 : vector<1x8x4xbf16> to vector<8x4xbf16>
    %197 = vector.extract_strided_slice %170 {offsets = [0, 129], sizes = [4, 384], strides = [1, 1]} : vector<4x640xbf16> to vector<4x384xbf16>
    %cst_131 = arith.constant dense<0.000000e+00> : vector<8x384xf32>
    %198 = tpu.matmul %196, %197, %cst_131 {dimension_numbers = #tpu.dot_dimension_numbers<[1], [0], [0], [1], [0, 0, 1, 1], [], []>} : vector<8x4xbf16>, vector<4x384xbf16>, vector<8x384xf32> -> vector<8x384xf32>
    %199 = arith.addf %194, %198 : vector<8x384xf32>
    %c6_132 = arith.constant 6 : index
    %c0_133 = arith.constant 0 : index
    %c0_134 = arith.constant 0 : index
    %200 = vector.load %arg3[%c6_132, %c0_133, %c0_134] : memref<9x8x4xbf16, #tpu.memory_space<vmem>>, vector<1x8x4xbf16>
    %201 = vector.shape_cast %200 : vector<1x8x4xbf16> to vector<8x4xbf16>
    %202 = vector.extract_strided_slice %170 {offsets = [0, 145], sizes = [4, 384], strides = [1, 1]} : vector<4x640xbf16> to vector<4x384xbf16>
    %cst_135 = arith.constant dense<0.000000e+00> : vector<8x384xf32>
    %203 = tpu.matmul %201, %202, %cst_135 {dimension_numbers = #tpu.dot_dimension_numbers<[1], [0], [0], [1], [0, 0, 1, 1], [], []>} : vector<8x4xbf16>, vector<4x384xbf16>, vector<8x384xf32> -> vector<8x384xf32>
    %204 = arith.addf %199, %203 : vector<8x384xf32>
    %c7_136 = arith.constant 7 : index
    %c0_137 = arith.constant 0 : index
    %c0_138 = arith.constant 0 : index
    %205 = vector.load %arg3[%c7_136, %c0_137, %c0_138] : memref<9x8x4xbf16, #tpu.memory_space<vmem>>, vector<1x8x4xbf16>
    %206 = vector.shape_cast %205 : vector<1x8x4xbf16> to vector<8x4xbf16>
    %207 = vector.extract_strided_slice %170 {offsets = [0, 146], sizes = [4, 384], strides = [1, 1]} : vector<4x640xbf16> to vector<4x384xbf16>
    %cst_139 = arith.constant dense<0.000000e+00> : vector<8x384xf32>
    %208 = tpu.matmul %206, %207, %cst_139 {dimension_numbers = #tpu.dot_dimension_numbers<[1], [0], [0], [1], [0, 0, 1, 1], [], []>} : vector<8x4xbf16>, vector<4x384xbf16>, vector<8x384xf32> -> vector<8x384xf32>
    %209 = arith.addf %204, %208 : vector<8x384xf32>
    %c8_140 = arith.constant 8 : index
    %c0_141 = arith.constant 0 : index
    %c0_142 = arith.constant 0 : index
    %210 = vector.load %arg3[%c8_140, %c0_141, %c0_142] : memref<9x8x4xbf16, #tpu.memory_space<vmem>>, vector<1x8x4xbf16>
    %211 = vector.shape_cast %210 : vector<1x8x4xbf16> to vector<8x4xbf16>
    %212 = vector.extract_strided_slice %170 {offsets = [0, 147], sizes = [4, 384], strides = [1, 1]} : vector<4x640xbf16> to vector<4x384xbf16>
    %cst_143 = arith.constant dense<0.000000e+00> : vector<8x384xf32>
    %213 = tpu.matmul %211, %212, %cst_143 {dimension_numbers = #tpu.dot_dimension_numbers<[1], [0], [0], [1], [0, 0, 1, 1], [], []>} : vector<8x4xbf16>, vector<4x384xbf16>, vector<8x384xf32> -> vector<8x384xf32>
    %214 = arith.addf %209, %213 : vector<8x384xf32>
    %215 = vector.broadcast %3 : vector<1x384xf32> to vector<8x384xf32>
    %216 = arith.mulf %214, %215 : vector<8x384xf32>
    %cst_144 = arith.constant dense<0.000000e+00> : vector<8xf32>
    %217 = vector.multi_reduction <add>, %216, %cst_144 [1] : vector<8x384xf32> to vector<8xf32>
    %218 = vector.shape_cast %217 : vector<8xf32> to vector<8x1xf32>
    %cst_145 = arith.constant 3.906250e-03 : f32
    %219 = vector.broadcast %cst_145 : f32 to vector<8x1xf32>
    %220 = arith.mulf %218, %219 : vector<8x1xf32>
    %221 = vector.broadcast %220 : vector<8x1xf32> to vector<8x384xf32>
    %222 = arith.subf %214, %221 : vector<8x384xf32>
    %223 = vector.broadcast %3 : vector<1x384xf32> to vector<8x384xf32>
    %224 = arith.mulf %222, %223 : vector<8x384xf32>
    %225 = arith.mulf %224, %224 : vector<8x384xf32>
    %cst_146 = arith.constant dense<0.000000e+00> : vector<8xf32>
    %226 = vector.multi_reduction <add>, %225, %cst_146 [1] : vector<8x384xf32> to vector<8xf32>
    %227 = vector.shape_cast %226 : vector<8xf32> to vector<8x1xf32>
    %cst_147 = arith.constant 3.906250e-03 : f32
    %228 = vector.broadcast %cst_147 : f32 to vector<8x1xf32>
    %229 = arith.mulf %227, %228 : vector<8x1xf32>
    %cst_148 = arith.constant 9.99999974E-6 : f32
    %230 = vector.broadcast %cst_148 : f32 to vector<8x1xf32>
    %231 = arith.addf %229, %230 : vector<8x1xf32>
    %232 = math.rsqrt %231 : vector<8x1xf32>
    %233 = vector.broadcast %232 : vector<8x1xf32> to vector<8x384xf32>
    %234 = arith.mulf %224, %233 : vector<8x384xf32>
    %cst_149 = arith.constant 2.000000e-01 : f32
    %235 = vector.broadcast %cst_149 : f32 to vector<8x384xf32>
    %236 = arith.mulf %235, %234 : vector<8x384xf32>
    %237 = arith.maximumf %234, %236 : vector<8x384xf32>
    %238 = arith.truncf %237 : vector<8x384xf32> to vector<8x384xbf16>
    %c0_150 = arith.constant 0 : index
    %c128_151 = arith.constant 128 : index
    %239 = vector.load %arg7[%c0_150, %c128_151] : memref<8x640xbf16, #tpu.memory_space<vmem>>, vector<8x384xbf16>
    tpu.vector_store %arg7[%c0_150, %c128_151], %238 {strides = array<i32>} : memref<8x640xbf16, #tpu.memory_space<vmem>>, vector<8x384xbf16>,
    %c0_152 = arith.constant 0 : index
    %c0_153 = arith.constant 0 : index
    %c0_154 = arith.constant 0 : index
    %240 = vector.load %arg4[%c0_152, %c0_153, %c0_154] : memref<9x8x8xbf16, #tpu.memory_space<vmem>>, vector<1x8x8xbf16>
    %241 = vector.shape_cast %240 : vector<1x8x8xbf16> to vector<8x8xbf16>
    %c0_155 = arith.constant 0 : index
    %c109_156 = arith.constant 109 : index
    %242 = vector.load %arg7[%c0_155, %c109_156] : memref<8x640xbf16, #tpu.memory_space<vmem>>, vector<8x384xbf16>
    %cst_157 = arith.constant dense<0.000000e+00> : vector<8x384xf32>
    %243 = tpu.matmul %241, %242, %cst_157 {dimension_numbers = #tpu.dot_dimension_numbers<[1], [0], [0], [1], [0, 0, 1, 1], [], []>} : vector<8x8xbf16>, vector<8x384xbf16>, vector<8x384xf32> -> vector<8x384xf32>
    %c1_158 = arith.constant 1 : index
    %c0_159 = arith.constant 0 : index
    %c0_160 = arith.constant 0 : index
    %244 = vector.load %arg4[%c1_158, %c0_159, %c0_160] : memref<9x8x8xbf16, #tpu.memory_space<vmem>>, vector<1x8x8xbf16>
    %245 = vector.shape_cast %244 : vector<1x8x8xbf16> to vector<8x8xbf16>
    %c0_161 = arith.constant 0 : index
    %c110_162 = arith.constant 110 : index
    %246 = vector.load %arg7[%c0_161, %c110_162] : memref<8x640xbf16, #tpu.memory_space<vmem>>, vector<8x384xbf16>
    %cst_163 = arith.constant dense<0.000000e+00> : vector<8x384xf32>
    %247 = tpu.matmul %245, %246, %cst_163 {dimension_numbers = #tpu.dot_dimension_numbers<[1], [0], [0], [1], [0, 0, 1, 1], [], []>} : vector<8x8xbf16>, vector<8x384xbf16>, vector<8x384xf32> -> vector<8x384xf32>
    %248 = arith.addf %243, %247 : vector<8x384xf32>
    %c2_164 = arith.constant 2 : index
    %c0_165 = arith.constant 0 : index
    %c0_166 = arith.constant 0 : index
    %249 = vector.load %arg4[%c2_164, %c0_165, %c0_166] : memref<9x8x8xbf16, #tpu.memory_space<vmem>>, vector<1x8x8xbf16>
    %250 = vector.shape_cast %249 : vector<1x8x8xbf16> to vector<8x8xbf16>
    %c0_167 = arith.constant 0 : index
    %c111_168 = arith.constant 111 : index
    %251 = vector.load %arg7[%c0_167, %c111_168] : memref<8x640xbf16, #tpu.memory_space<vmem>>, vector<8x384xbf16>
    %cst_169 = arith.constant dense<0.000000e+00> : vector<8x384xf32>
    %252 = tpu.matmul %250, %251, %cst_169 {dimension_numbers = #tpu.dot_dimension_numbers<[1], [0], [0], [1], [0, 0, 1, 1], [], []>} : vector<8x8xbf16>, vector<8x384xbf16>, vector<8x384xf32> -> vector<8x384xf32>
    %253 = arith.addf %248, %252 : vector<8x384xf32>
    %c3_170 = arith.constant 3 : index
    %c0_171 = arith.constant 0 : index
    %c0_172 = arith.constant 0 : index
    %254 = vector.load %arg4[%c3_170, %c0_171, %c0_172] : memref<9x8x8xbf16, #tpu.memory_space<vmem>>, vector<1x8x8xbf16>
    %255 = vector.shape_cast %254 : vector<1x8x8xbf16> to vector<8x8xbf16>
    %c0_173 = arith.constant 0 : index
    %c127_174 = arith.constant 127 : index
    %256 = vector.load %arg7[%c0_173, %c127_174] : memref<8x640xbf16, #tpu.memory_space<vmem>>, vector<8x384xbf16>
    %cst_175 = arith.constant dense<0.000000e+00> : vector<8x384xf32>
    %257 = tpu.matmul %255, %256, %cst_175 {dimension_numbers = #tpu.dot_dimension_numbers<[1], [0], [0], [1], [0, 0, 1, 1], [], []>} : vector<8x8xbf16>, vector<8x384xbf16>, vector<8x384xf32> -> vector<8x384xf32>
    %258 = arith.addf %253, %257 : vector<8x384xf32>
    %c4_176 = arith.constant 4 : index
    %c0_177 = arith.constant 0 : index
    %c0_178 = arith.constant 0 : index
    %259 = vector.load %arg4[%c4_176, %c0_177, %c0_178] : memref<9x8x8xbf16, #tpu.memory_space<vmem>>, vector<1x8x8xbf16>
    %260 = vector.shape_cast %259 : vector<1x8x8xbf16> to vector<8x8xbf16>
    %c0_179 = arith.constant 0 : index
    %c128_180 = arith.constant 128 : index
    %261 = vector.load %arg7[%c0_179, %c128_180] : memref<8x640xbf16, #tpu.memory_space<vmem>>, vector<8x384xbf16>
    %cst_181 = arith.constant dense<0.000000e+00> : vector<8x384xf32>
    %262 = tpu.matmul %260, %261, %cst_181 {dimension_numbers = #tpu.dot_dimension_numbers<[1], [0], [0], [1], [0, 0, 1, 1], [], []>} : vector<8x8xbf16>, vector<8x384xbf16>, vector<8x384xf32> -> vector<8x384xf32>
    %263 = arith.addf %258, %262 : vector<8x384xf32>
    %c5_182 = arith.constant 5 : index
    %c0_183 = arith.constant 0 : index
    %c0_184 = arith.constant 0 : index
    %264 = vector.load %arg4[%c5_182, %c0_183, %c0_184] : memref<9x8x8xbf16, #tpu.memory_space<vmem>>, vector<1x8x8xbf16>
    %265 = vector.shape_cast %264 : vector<1x8x8xbf16> to vector<8x8xbf16>
    %c0_185 = arith.constant 0 : index
    %c129_186 = arith.constant 129 : index
    %266 = vector.load %arg7[%c0_185, %c129_186] : memref<8x640xbf16, #tpu.memory_space<vmem>>, vector<8x384xbf16>
    %cst_187 = arith.constant dense<0.000000e+00> : vector<8x384xf32>
    %267 = tpu.matmul %265, %266, %cst_187 {dimension_numbers = #tpu.dot_dimension_numbers<[1], [0], [0], [1], [0, 0, 1, 1], [], []>} : vector<8x8xbf16>, vector<8x384xbf16>, vector<8x384xf32> -> vector<8x384xf32>
    %268 = arith.addf %263, %267 : vector<8x384xf32>
    %c6_188 = arith.constant 6 : index
    %c0_189 = arith.constant 0 : index
    %c0_190 = arith.constant 0 : index
    %269 = vector.load %arg4[%c6_188, %c0_189, %c0_190] : memref<9x8x8xbf16, #tpu.memory_space<vmem>>, vector<1x8x8xbf16>
    %270 = vector.shape_cast %269 : vector<1x8x8xbf16> to vector<8x8xbf16>
    %c0_191 = arith.constant 0 : index
    %c145_192 = arith.constant 145 : index
    %271 = vector.load %arg7[%c0_191, %c145_192] : memref<8x640xbf16, #tpu.memory_space<vmem>>, vector<8x384xbf16>
    %cst_193 = arith.constant dense<0.000000e+00> : vector<8x384xf32>
    %272 = tpu.matmul %270, %271, %cst_193 {dimension_numbers = #tpu.dot_dimension_numbers<[1], [0], [0], [1], [0, 0, 1, 1], [], []>} : vector<8x8xbf16>, vector<8x384xbf16>, vector<8x384xf32> -> vector<8x384xf32>
    %273 = arith.addf %268, %272 : vector<8x384xf32>
    %c7_194 = arith.constant 7 : index
    %c0_195 = arith.constant 0 : index
    %c0_196 = arith.constant 0 : index
    %274 = vector.load %arg4[%c7_194, %c0_195, %c0_196] : memref<9x8x8xbf16, #tpu.memory_space<vmem>>, vector<1x8x8xbf16>
    %275 = vector.shape_cast %274 : vector<1x8x8xbf16> to vector<8x8xbf16>
    %c0_197 = arith.constant 0 : index
    %c146_198 = arith.constant 146 : index
    %276 = vector.load %arg7[%c0_197, %c146_198] : memref<8x640xbf16, #tpu.memory_space<vmem>>, vector<8x384xbf16>
    %cst_199 = arith.constant dense<0.000000e+00> : vector<8x384xf32>
    %277 = tpu.matmul %275, %276, %cst_199 {dimension_numbers = #tpu.dot_dimension_numbers<[1], [0], [0], [1], [0, 0, 1, 1], [], []>} : vector<8x8xbf16>, vector<8x384xbf16>, vector<8x384xf32> -> vector<8x384xf32>
    %278 = arith.addf %273, %277 : vector<8x384xf32>
    %c8_200 = arith.constant 8 : index
    %c0_201 = arith.constant 0 : index
    %c0_202 = arith.constant 0 : index
    %279 = vector.load %arg4[%c8_200, %c0_201, %c0_202] : memref<9x8x8xbf16, #tpu.memory_space<vmem>>, vector<1x8x8xbf16>
    %280 = vector.shape_cast %279 : vector<1x8x8xbf16> to vector<8x8xbf16>
    %c0_203 = arith.constant 0 : index
    %c147_204 = arith.constant 147 : index
    %281 = vector.load %arg7[%c0_203, %c147_204] : memref<8x640xbf16, #tpu.memory_space<vmem>>, vector<8x384xbf16>
    %cst_205 = arith.constant dense<0.000000e+00> : vector<8x384xf32>
    %282 = tpu.matmul %280, %281, %cst_205 {dimension_numbers = #tpu.dot_dimension_numbers<[1], [0], [0], [1], [0, 0, 1, 1], [], []>} : vector<8x8xbf16>, vector<8x384xbf16>, vector<8x384xf32> -> vector<8x384xf32>
    %283 = arith.addf %278, %282 : vector<8x384xf32>
    %c0_206 = arith.constant 0 : index
    %c0_207 = arith.constant 0 : index
    %284 = vector.load %arg5[%c0_206, %c0_207] : memref<8x4xbf16, #tpu.memory_space<vmem>>, vector<8x4xbf16>
    %285 = vector.extract_strided_slice %170 {offsets = [0, 128], sizes = [4, 384], strides = [1, 1]} : vector<4x640xbf16> to vector<4x384xbf16>
    %cst_208 = arith.constant dense<0.000000e+00> : vector<8x384xf32>
    %286 = tpu.matmul %284, %285, %cst_208 {dimension_numbers = #tpu.dot_dimension_numbers<[1], [0], [0], [1], [0, 0, 1, 1], [], []>} : vector<8x4xbf16>, vector<4x384xbf16>, vector<8x384xf32> -> vector<8x384xf32>
    %287 = vector.broadcast %3 : vector<1x384xf32> to vector<8x384xf32>
    %288 = arith.mulf %286, %287 : vector<8x384xf32>
    %cst_209 = arith.constant dense<0.000000e+00> : vector<8xf32>
    %289 = vector.multi_reduction <add>, %288, %cst_209 [1] : vector<8x384xf32> to vector<8xf32>
    %290 = vector.shape_cast %289 : vector<8xf32> to vector<8x1xf32>
    %cst_210 = arith.constant 3.906250e-03 : f32
    %291 = vector.broadcast %cst_210 : f32 to vector<8x1xf32>
    %292 = arith.mulf %290, %291 : vector<8x1xf32>
    %293 = vector.broadcast %292 : vector<8x1xf32> to vector<8x384xf32>
    %294 = arith.subf %286, %293 : vector<8x384xf32>
    %295 = vector.broadcast %3 : vector<1x384xf32> to vector<8x384xf32>
    %296 = arith.mulf %294, %295 : vector<8x384xf32>
    %297 = arith.mulf %296, %296 : vector<8x384xf32>
    %cst_211 = arith.constant dense<0.000000e+00> : vector<8xf32>
    %298 = vector.multi_reduction <add>, %297, %cst_211 [1] : vector<8x384xf32> to vector<8xf32>
    %299 = vector.shape_cast %298 : vector<8xf32> to vector<8x1xf32>
    %cst_212 = arith.constant 3.906250e-03 : f32
    %300 = vector.broadcast %cst_212 : f32 to vector<8x1xf32>
    %301 = arith.mulf %299, %300 : vector<8x1xf32>
    %cst_213 = arith.constant 9.99999974E-6 : f32
    %302 = vector.broadcast %cst_213 : f32 to vector<8x1xf32>
    %303 = arith.addf %301, %302 : vector<8x1xf32>
    %304 = math.rsqrt %303 : vector<8x1xf32>
    %305 = vector.broadcast %304 : vector<8x1xf32> to vector<8x384xf32>
    %306 = arith.mulf %296, %305 : vector<8x384xf32>
    %307 = arith.addf %283, %306 : vector<8x384xf32>
    %308 = vector.broadcast %3 : vector<1x384xf32> to vector<8x384xf32>
    %309 = arith.mulf %307, %308 : vector<8x384xf32>
    %cst_214 = arith.constant dense<0.000000e+00> : vector<8xf32>
    %310 = vector.multi_reduction <add>, %309, %cst_214 [1] : vector<8x384xf32> to vector<8xf32>
    %311 = vector.shape_cast %310 : vector<8xf32> to vector<8x1xf32>
    %cst_215 = arith.constant 3.906250e-03 : f32
    %312 = vector.broadcast %cst_215 : f32 to vector<8x1xf32>
    %313 = arith.mulf %311, %312 : vector<8x1xf32>
    %314 = vector.broadcast %313 : vector<8x1xf32> to vector<8x384xf32>
    %315 = arith.subf %307, %314 : vector<8x384xf32>
    %316 = vector.broadcast %3 : vector<1x384xf32> to vector<8x384xf32>
    %317 = arith.mulf %315, %316 : vector<8x384xf32>
    %318 = arith.mulf %317, %317 : vector<8x384xf32>
    %cst_216 = arith.constant dense<0.000000e+00> : vector<8xf32>
    %319 = vector.multi_reduction <add>, %318, %cst_216 [1] : vector<8x384xf32> to vector<8xf32>
    %320 = vector.shape_cast %319 : vector<8xf32> to vector<8x1xf32>
    %cst_217 = arith.constant 3.906250e-03 : f32
    %321 = vector.broadcast %cst_217 : f32 to vector<8x1xf32>
    %322 = arith.mulf %320, %321 : vector<8x1xf32>
    %cst_218 = arith.constant 9.99999974E-6 : f32
    %323 = vector.broadcast %cst_218 : f32 to vector<8x1xf32>
    %324 = arith.addf %322, %323 : vector<8x1xf32>
    %325 = math.rsqrt %324 : vector<8x1xf32>
    %326 = vector.broadcast %325 : vector<8x1xf32> to vector<8x384xf32>
    %327 = arith.mulf %317, %326 : vector<8x384xf32>
    %cst_219 = arith.constant 2.000000e-01 : f32
    %328 = vector.broadcast %cst_219 : f32 to vector<8x384xf32>
    %329 = arith.mulf %328, %327 : vector<8x384xf32>
    %330 = arith.maximumf %327, %329 : vector<8x384xf32>
    %c1_220 = arith.constant 1 : index
    %c0_221 = arith.constant 0 : index
    %c0_222 = arith.constant 0 : index
    %331 = vector.load %arg6[%c1_220, %c0_221, %c0_222] : memref<2x8x384xf32, #tpu.memory_space<vmem>>, vector<1x8x384xf32>
    %332 = vector.shape_cast %331 : vector<1x8x384xf32> to vector<8x384xf32>
    %333 = vector.shape_cast %330 : vector<8x384xf32> to vector<1x8x384xf32>
    tpu.vector_store %arg6[%c1_220, %c0_221, %c0_222], %333 {strides = array<i32>} : memref<2x8x384xf32, #tpu.memory_space<vmem>>, vector<1x8x384xf32>,
    return
  }
  func.func @transform_0(%arg0: i32) -> (i32, i32) {
    %c0_i32 = arith.constant 0 : i32
    %c0_i32_0 = arith.constant 0 : i32
    %c0_i32_1 = arith.constant 0 : i32
    return %c0_i32, %c0_i32_0 : i32, i32
  }
  func.func @transform_1(%arg0: i32) -> (i32, i32, i32) {
    %c0_i32 = arith.constant 0 : i32
    %c0_i32_0 = arith.constant 0 : i32
    %c0_i32_1 = arith.constant 0 : i32
    return %arg0, %c0_i32, %c0_i32_0 : i32, i32, i32
  }
  func.func @transform_2(%arg0: i32) -> (i32, i32, i32) {
    %c0_i32 = arith.constant 0 : i32
    %c0_i32_0 = arith.constant 0 : i32
    %c0_i32_1 = arith.constant 0 : i32
    %c0_i32_2 = arith.constant 0 : i32
    return %c0_i32, %c0_i32_0, %c0_i32_1 : i32, i32, i32
  }
  func.func @transform_3(%arg0: i32) -> (i32, i32, i32) {
    %c0_i32 = arith.constant 0 : i32
    %c0_i32_0 = arith.constant 0 : i32
    %c0_i32_1 = arith.constant 0 : i32
    %c0_i32_2 = arith.constant 0 : i32
    return %c0_i32, %c0_i32_0, %c0_i32_1 : i32, i32, i32
  }
  func.func @transform_4(%arg0: i32) -> (i32, i32) {
    %c0_i32 = arith.constant 0 : i32
    %c0_i32_0 = arith.constant 0 : i32
    %c0_i32_1 = arith.constant 0 : i32
    return %c0_i32, %c0_i32_0 : i32, i32
  }
  func.func @transform_5(%arg0: i32) -> (i32, i32, i32) {
    %c0_i32 = arith.constant 0 : i32
    %c0_i32_0 = arith.constant 0 : i32
    %c0_i32_1 = arith.constant 0 : i32
    return %arg0, %c0_i32, %c0_i32_0 : i32, i32, i32
  }
}

</mosaic_0001>

<llo_original>
// kernel: conv_block_forward.1
$region0: #{conv_block_forward.1}
  #allocation0 [shape = 'u32[]', space=smem, size = 0x4, offset = 0x4, fixed_abs, tag = 'smem constant byte address 0x4 - core index']
  #allocation1 [shape = 'u32[144,128]{1,0:T(1,128)}', space=vmem, size = 0x12000, scoped, tag = 'internal scratch']
  #allocation2 [shape = 'bf16[8,640]{1,0:T(8,128)(2,1)}', space=vmem, size = 0x2800, scoped, tag = 'scratch operand']
  %s0 = inlined_call_operand.vmem [shape: f32[1,384], index: 0, kind: input, shape index: {}]
  %s1 = inlined_call_operand.vmem [shape: bf16[2,4,640], index: 1, kind: input, shape index: {}]
  %s2 = inlined_call_operand.vmem [shape: bf16[9,8,4], index: 2, kind: input, shape index: {}]
  %s3 = inlined_call_operand.vmem [shape: bf16[9,8,8], index: 3, kind: input, shape index: {}]
  %s4 = inlined_call_operand.vmem [shape: bf16[8,4], index: 4, kind: input, shape index: {}]
  %s5 = inlined_call_operand.vmem [shape: f32[2,8,384], index: 5, kind: output, shape index: {}]
  %s6 = sld [smem:[#allocation0]]
  $region30: #{conv_block_forward.1} parent=0
    _
  %s8 = ssub.s32 1, %s6
  %s9 = scalar_select 0, %s8, %s6
  // Predicated region
  $region2: #{conv_block_forward.1} parent=0 // pred_check
    _
  $region3: #{conv_block_forward.1} parent=0 // pred_check_branch
    %11 = sbr.rel (0) target = $region5
  $region4: #{conv_block_forward.1} parent=0 // pred_region
    _
  $region5: #{conv_block_forward.1} parent=0 // pred_fallthru
    _
  // Predicated region
  $region6: #{conv_block_forward.1} parent=0 // pred_check
    _
  $region7: #{conv_block_forward.1} parent=0 // pred_check_branch
    %13 = sbr.rel (0) target = $region9
  $region8: #{conv_block_forward.1} parent=0 // pred_region
    _
  $region9: #{conv_block_forward.1} parent=0 // pred_fallthru
    _
  // Predicated region
  $region10: #{conv_block_forward.1} parent=0 // pred_check
    _
  $region11: #{conv_block_forward.1} parent=0 // pred_check_branch
    %15 = sbr.rel (0) target = $region13
  $region12: #{conv_block_forward.1} parent=0 // pred_region
    _
  $region13: #{conv_block_forward.1} parent=0 // pred_fallthru
    _
  // Predicated region
  $region14: #{conv_block_forward.1} parent=0 // pred_check
    _
  $region15: #{conv_block_forward.1} parent=0 // pred_check_branch
    %17 = sbr.rel (0) target = $region17
  $region16: #{conv_block_forward.1} parent=0 // pred_region
    _
  $region17: #{conv_block_forward.1} parent=0 // pred_fallthru
    _
  // Predicated region
  $region18: #{conv_block_forward.1} parent=0 // pred_check
    _
  $region19: #{conv_block_forward.1} parent=0 // pred_check_branch
    %19 = sbr.rel (0) target = $region21
  $region20: #{conv_block_forward.1} parent=0 // pred_region
    _
  $region21: #{conv_block_forward.1} parent=0 // pred_fallthru
    _
  %21 = vst [vmem:[#allocation2] sm:$0xf] 0
  %22 = vst [vmem:[#allocation2 + $0x10] sm:$0xf] 0
  %v23 = vld [vmem:[%s0] sm:$0x7]
  %v24 = vld [vmem:[%s1] sm:$0xff]
  %v25 = vld [vmem:[%s1 + $0x8] sm:$0x3]
  %v26 = vld [vmem:[%s2] sm:$0xf]
  %s27 = scalar_lea.vmem %s2, 4
  %v28 = vld [vmem:[%s27] sm:$0xf]
  %v30 = vcombine.high %v24, %v24
  %v32 = vunpack.c.l.s4 1983009808
  %v33 = vunpack.c.0.s8 %v32
  %v34 = vlaneseq
  %v35 = vshrl.u32 %v34, 7
  %v36 = vsub.s32 %v33, %v35
  %v37 = vrot.slane %v24, %v36
  %v39 = vunpack.c.l.s4 1983009808
  %v40 = vunpack.c.0.s8 %v39
  %v41 = vlaneseq
  %v42 = vshrl.u32 %v41, 7
  %v43 = vsub.s32 %v40, %v42
  %v44 = vrot.slane %v30, %v43
  %v45 = vcombine.high %v37, %v37
  %v46 = vcombine.high %v44, %v44
  %47 = vrot.lane.b32.xlu0 %v37, 18
  %v48 = vpop.permute.xlu0 %47
  %49 = vrot.lane.b32.xlu0 %v45, 18
  %v50 = vpop.permute.xlu0 %49
  %51 = vrot.lane.b32.xlu0 %v44, 18
  %v52 = vpop.permute.xlu0 %51
  %53 = vrot.lane.b32.xlu0 %v46, 18
  %v54 = vpop.permute.xlu0 %53
  %vm55 = vcmask 146432
  %v56 = vsel %vm55, %v48, %v50
  %v57 = vsel %vm55, %v50, %v52
  %v58 = vsel %vm55, %v52, %v54
  %vm59 = vcmask 31744
  %v61 = vsel %vm59, %v28, 0
  %vm63 = vcmask 1041408
  %v65 = vsel %vm63, %v56, 0
  %v68 = vsel %vm63, %v57, 0
  %v71 = vsel %vm63, %v58, 0
  %73 = vmatprep.subr.bf16.mxu0 %v68
  %74 = vmatpush1.bf16.msra.mxu0 %v65
  %75 = vmatprep.subr.bf16.mxu0 0
  %76 = vmatpush1.bf16.msra.mxu0 0
  %77 = vmatprep.subr.bf16.mxu0 0
  %78 = vmatpush1.bf16.msra.mxu0 0
  %79 = vmatprep.subr.bf16.mxu0 0
  %80 = vmatpush1.bf16.msra.mxu0 0
  %81 = vmatprep.subr.bf16.mxu0 0
  %82 = vmatpush1.bf16.msra.mxu0 0
  %83 = vmatprep.subr.bf16.mxu0 0
  %84 = vmatpush1.bf16.msra.mxu0 0
  %85 = vmatprep.subr.bf16.mxu0 0
  %86 = vmatpush1.bf16.msra.mxu0 0
  %87 = vmatprep.subr.bf16.mxu0 0
  %88 = vmatpush1.bf16.msra.mxu0 0
  %89 = vmatprep.subr.bf16.mxu0 0
  %90 = vmatpush1.bf16.msra.mxu0 0
  %91 = vmatprep.subr.bf16.mxu0 0
  %92 = vmatpush1.bf16.msra.mxu0 0
  %93 = vmatprep.subr.bf16.mxu0 0
  %94 = vmatpush1.bf16.msra.mxu0 0
  %95 = vmatprep.subr.bf16.mxu0 0
  %96 = vmatpush1.bf16.msra.mxu0 0
  %97 = vmatprep.subr.bf16.mxu0 0
  %98 = vmatpush1.bf16.msra.mxu0 0
  %99 = vmatprep.subr.bf16.mxu0 0
  %100 = vmatpush1.bf16.msra.mxu0 0
  %101 = vmatprep.subr.bf16.mxu0 0
  %102 = vmatpush1.bf16.msra.mxu0 0
  %103 = vmatprep.subr.bf16.mxu0 0
  %104 = vmatpush1.bf16.msra.mxu0 0
  %105 = vmatprep.mubr.bf16.mxu0 0
  %106 = vmatmul.mubr.bf16.gmra.mrb[0].mxu0 %v61
  %v107 = vpop.f32.mrb[0].mxu0
  %v108 = vadd.f32 0.0, %v107
  %v109 = vpop.f32.mrb[0].mxu0
  %v110 = vadd.f32 0.0, %v109
  %v111 = vpop.f32.mrb[0].mxu0
  %v112 = vpop.f32.mrb[0].mxu0
  %113 = vdwg.mxu0
  %114 = vmatprep.subr.bf16.mxu0 0
  %115 = vmatpush1.bf16.msra.mxu0 %v71
  %116 = vmatprep.subr.bf16.mxu0 0
  %117 = vmatpush1.bf16.msra.mxu0 0
  %118 = vmatprep.subr.bf16.mxu0 0
  %119 = vmatpush1.bf16.msra.mxu0 0
  %120 = vmatprep.subr.bf16.mxu0 0
  %121 = vmatpush1.bf16.msra.mxu0 0
  %122 = vmatprep.subr.bf16.mxu0 0
  %123 = vmatpush1.bf16.msra.mxu0 0
  %124 = vmatprep.subr.bf16.mxu0 0
  %125 = vmatpush1.bf16.msra.mxu0 0
  %126 = vmatprep.subr.bf16.mxu0 0
  %127 = vmatpush1.bf16.msra.mxu0 0
  %128 = vmatprep.subr.bf16.mxu0 0
  %129 = vmatpush1.bf16.msra.mxu0 0
  %130 = vmatprep.subr.bf16.mxu0 0
  %131 = vmatpush1.bf16.msra.mxu0 0
  %132 = vmatprep.subr.bf16.mxu0 0
  %133 = vmatpush1.bf16.msra.mxu0 0
  %134 = vmatprep.subr.bf16.mxu0 0
  %135 = vmatpush1.bf16.msra.mxu0 0
  %136 = vmatprep.subr.bf16.mxu0 0
  %137 = vmatpush1.bf16.msra.mxu0 0
  %138 = vmatprep.subr.bf16.mxu0 0
  %139 = vmatpush1.bf16.msra.mxu0 0
  %140 = vmatprep.subr.bf16.mxu0 0
  %141 = vmatpush1.bf16.msra.mxu0 0
  %142 = vmatprep.subr.bf16.mxu0 0
  %143 = vmatpush1.bf16.msra.mxu0 0
  %144 = vmatprep.subr.bf16.mxu0 0
  %145 = vmatpush1.bf16.msra.mxu0 0
  %146 = vmatprep.mubr.bf16.mxu0 0
  %147 = vmatmul.mubr.bf16.gmra.mrb[0].mxu0 %v61
  %v148 = vpop.f32.mrb[0].mxu0
  %v149 = vadd.f32 0.0, %v148
  %v150 = vpop.f32.mrb[0].mxu0
  %v151 = vpop.f32.mrb[0].mxu0
  %v152 = vpop.f32.mrb[0].mxu0
  %153 = vdwg.mxu0
  %154 = vrot.lane.b32.xlu0 %v37, 19
  %v155 = vpop.permute.xlu0 %154
  %156 = vrot.lane.b32.xlu0 %v45, 19
  %v157 = vpop.permute.xlu0 %156
  %158 = vrot.lane.b32.xlu0 %v44, 19
  %v159 = vpop.permute.xlu0 %158
  %160 = vrot.lane.b32.xlu0 %v46, 19
  %v161 = vpop.permute.xlu0 %160
  %vm162 = vcmask 154624
  %v163 = vsel %vm162, %v155, %v157
  %v164 = vsel %vm162, %v157, %v159
  %v165 = vsel %vm162, %v159, %v161
  %v167 = vsel %vm59, %v26, 0
  %v170 = vsel %vm63, %v163, 0
  %v173 = vsel %vm63, %v164, 0
  %v176 = vsel %vm63, %v165, 0
  %178 = vmatprep.subr.bf16.mxu0 %v173
  %179 = vmatpush1.bf16.msra.mxu0 %v170
  %180 = vmatprep.subr.bf16.mxu0 0
  %181 = vmatpush1.bf16.msra.mxu0 0
  %182 = vmatprep.subr.bf16.mxu0 0
  %183 = vmatpush1.bf16.msra.mxu0 0
  %184 = vmatprep.subr.bf16.mxu0 0
  %185 = vmatpush1.bf16.msra.mxu0 0
  %186 = vmatprep.subr.bf16.mxu0 0
  %187 = vmatpush1.bf16.msra.mxu0 0
  %188 = vmatprep.subr.bf16.mxu0 0
  %189 = vmatpush1.bf16.msra.mxu0 0
  %190 = vmatprep.subr.bf16.mxu0 0
  %191 = vmatpush1.bf16.msra.mxu0 0
  %192 = vmatprep.subr.bf16.mxu0 0
  %193 = vmatpush1.bf16.msra.mxu0 0
  %194 = vmatprep.subr.bf16.mxu0 0
  %195 = vmatpush1.bf16.msra.mxu0 0
  %196 = vmatprep.subr.bf16.mxu0 0
  %197 = vmatpush1.bf16.msra.mxu0 0
  %198 = vmatprep.subr.bf16.mxu0 0
  %199 = vmatpush1.bf16.msra.mxu0 0
  %200 = vmatprep.subr.bf16.mxu0 0
  %201 = vmatpush1.bf16.msra.mxu0 0
  %202 = vmatprep.subr.bf16.mxu0 0
  %203 = vmatpush1.bf16.msra.mxu0 0
  %204 = vmatprep.subr.bf16.mxu0 0
  %205 = vmatpush1.bf16.msra.mxu0 0
  %206 = vmatprep.subr.bf16.mxu0 0
  %207 = vmatpush1.bf16.msra.mxu0 0
  %208 = vmatprep.subr.bf16.mxu0 0
  %209 = vmatpush1.bf16.msra.mxu0 0
  %210 = vmatprep.mubr.bf16.mxu0 0
  %211 = vmatmul.mubr.bf16.gmra.mrb[0].mxu0 %v167
  %v212 = vpop.f32.mrb[0].mxu0
  %v213 = vadd.f32 %v108, %v212
  %v214 = vpop.f32.mrb[0].mxu0
  %v215 = vadd.f32 %v110, %v214
  %v216 = vpop.f32.mrb[0].mxu0
  %v217 = vpop.f32.mrb[0].mxu0
  %218 = vdwg.mxu0
  %219 = vmatprep.subr.bf16.mxu0 0
  %220 = vmatpush1.bf16.msra.mxu0 %v176
  %221 = vmatprep.subr.bf16.mxu0 0
  %222 = vmatpush1.bf16.msra.mxu0 0
  %223 = vmatprep.subr.bf16.mxu0 0
  %224 = vmatpush1.bf16.msra.mxu0 0
  %225 = vmatprep.subr.bf16.mxu0 0
  %226 = vmatpush1.bf16.msra.mxu0 0
  %227 = vmatprep.subr.bf16.mxu0 0
  %228 = vmatpush1.bf16.msra.mxu0 0
  %229 = vmatprep.subr.bf16.mxu0 0
  %230 = vmatpush1.bf16.msra.mxu0 0
  %231 = vmatprep.subr.bf16.mxu0 0
  %232 = vmatpush1.bf16.msra.mxu0 0
  %233 = vmatprep.subr.bf16.mxu0 0
  %234 = vmatpush1.bf16.msra.mxu0 0
  %235 = vmatprep.subr.bf16.mxu0 0
  %236 = vmatpush1.bf16.msra.mxu0 0
  %237 = vmatprep.subr.bf16.mxu0 0
  %238 = vmatpush1.bf16.msra.mxu0 0
  %239 = vmatprep.subr.bf16.mxu0 0
  %240 = vmatpush1.bf16.msra.mxu0 0
  %241 = vmatprep.subr.bf16.mxu0 0
  %242 = vmatpush1.bf16.msra.mxu0 0
  %243 = vmatprep.subr.bf16.mxu0 0
  %244 = vmatpush1.bf16.msra.mxu0 0
  %245 = vmatprep.subr.bf16.mxu0 0
  %246 = vmatpush1.bf16.msra.mxu0 0
  %247 = vmatprep.subr.bf16.mxu0 0
  %248 = vmatpush1.bf16.msra.mxu0 0
  %249 = vmatprep.subr.bf16.mxu0 0
  %250 = vmatpush1.bf16.msra.mxu0 0
  %251 = vmatprep.mubr.bf16.mxu0 0
  %252 = vmatmul.mubr.bf16.gmra.mrb[0].mxu0 %v167
  %v253 = vpop.f32.mrb[0].mxu0
  %v254 = vadd.f32 %v149, %v253
  %v255 = vpop.f32.mrb[0].mxu0
  %v256 = vpop.f32.mrb[0].mxu0
  %v257 = vpop.f32.mrb[0].mxu0
  %258 = vdwg.mxu0
  %s259 = scalar_lea.vmem %s2, 8
  %v260 = vld [vmem:[%s259] sm:$0xf]
  %261 = vrot.lane.b32.xlu0 %v37, 17
  %v262 = vpop.permute.xlu0 %261
  %263 = vrot.lane.b32.xlu0 %v45, 17
  %v264 = vpop.permute.xlu0 %263
  %265 = vrot.lane.b32.xlu0 %v44, 17
  %v266 = vpop.permute.xlu0 %265
  %267 = vrot.lane.b32.xlu0 %v46, 17
  %v268 = vpop.permute.xlu0 %267
  %vm269 = vcmask 138240
  %v270 = vsel %vm269, %v262, %v264
  %v271 = vsel %vm269, %v264, %v266
  %v272 = vsel %vm269, %v266, %v268
  %v274 = vsel %vm59, %v260, 0
  %v277 = vsel %vm63, %v270, 0
  %v280 = vsel %vm63, %v271, 0
  %v283 = vsel %vm63, %v272, 0
  %285 = vmatprep.subr.bf16.mxu0 %v280
  %286 = vmatpush1.bf16.msra.mxu0 %v277
  %287 = vmatprep.subr.bf16.mxu0 0
  %288 = vmatpush1.bf16.msra.mxu0 0
  %289 = vmatprep.subr.bf16.mxu0 0
  %290 = vmatpush1.bf16.msra.mxu0 0
  %291 = vmatprep.subr.bf16.mxu0 0
  %292 = vmatpush1.bf16.msra.mxu0 0
  %293 = vmatprep.subr.bf16.mxu0 0
  %294 = vmatpush1.bf16.msra.mxu0 0
  %295 = vmatprep.subr.bf16.mxu0 0
  %296 = vmatpush1.bf16.msra.mxu0 0
  %297 = vmatprep.subr.bf16.mxu0 0
  %298 = vmatpush1.bf16.msra.mxu0 0
  %299 = vmatprep.subr.bf16.mxu0 0
  %300 = vmatpush1.bf16.msra.mxu0 0
  %301 = vmatprep.subr.bf16.mxu0 0
  %302 = vmatpush1.bf16.msra.mxu0 0
  %303 = vmatprep.subr.bf16.mxu0 0
  %304 = vmatpush1.bf16.msra.mxu0 0
  %305 = vmatprep.subr.bf16.mxu0 0
  %306 = vmatpush1.bf16.msra.mxu0 0
  %307 = vmatprep.subr.bf16.mxu0 0
  %308 = vmatpush1.bf16.msra.mxu0 0
  %309 = vmatprep.subr.bf16.mxu0 0
  %310 = vmatpush1.bf16.msra.mxu0 0
  %311 = vmatprep.subr.bf16.mxu0 0
  %312 = vmatpush1.bf16.msra.mxu0 0
  %313 = vmatprep.subr.bf16.mxu0 0
  %314 = vmatpush1.bf16.msra.mxu0 0
  %315 = vmatprep.subr.bf16.mxu0 0
  %316 = vmatpush1.bf16.msra.mxu0 0
  %317 = vmatprep.mubr.bf16.mxu0 0
  %318 = vmatmul.mubr.bf16.gmra.mrb[0].mxu0 %v274
  %v319 = vpop.f32.mrb[0].mxu0
  %v320 = vadd.f32 0.0, %v319
  %v321 = vpop.f32.mrb[0].mxu0
  %v322 = vadd.f32 0.0, %v321
  %v323 = vpop.f32.mrb[0].mxu0
  %v324 = vpop.f32.mrb[0].mxu0
  %325 = vdwg.mxu0
  %326 = vmatprep.subr.bf16.mxu0 0
  %327 = vmatpush1.bf16.msra.mxu0 %v283
  %328 = vmatprep.subr.bf16.mxu0 0
  %329 = vmatpush1.bf16.msra.mxu0 0
  %330 = vmatprep.subr.bf16.mxu0 0
  %331 = vmatpush1.bf16.msra.mxu0 0
  %332 = vmatprep.subr.bf16.mxu0 0
  %333 = vmatpush1.bf16.msra.mxu0 0
  %334 = vmatprep.subr.bf16.mxu0 0
  %335 = vmatpush1.bf16.msra.mxu0 0
  %336 = vmatprep.subr.bf16.mxu0 0
  %337 = vmatpush1.bf16.msra.mxu0 0
  %338 = vmatprep.subr.bf16.mxu0 0
  %339 = vmatpush1.bf16.msra.mxu0 0
  %340 = vmatprep.subr.bf16.mxu0 0
  %341 = vmatpush1.bf16.msra.mxu0 0
  %342 = vmatprep.subr.bf16.mxu0 0
  %343 = vmatpush1.bf16.msra.mxu0 0
  %344 = vmatprep.subr.bf16.mxu0 0
  %345 = vmatpush1.bf16.msra.mxu0 0
  %346 = vmatprep.subr.bf16.mxu0 0
  %347 = vmatpush1.bf16.msra.mxu0 0
  %348 = vmatprep.subr.bf16.mxu0 0
  %349 = vmatpush1.bf16.msra.mxu0 0
  %350 = vmatprep.subr.bf16.mxu0 0
  %351 = vmatpush1.bf16.msra.mxu0 0
  %352 = vmatprep.subr.bf16.mxu0 0
  %353 = vmatpush1.bf16.msra.mxu0 0
  %354 = vmatprep.subr.bf16.mxu0 0
  %355 = vmatpush1.bf16.msra.mxu0 0
  %356 = vmatprep.subr.bf16.mxu0 0
  %357 = vmatpush1.bf16.msra.mxu0 0
  %358 = vmatprep.mubr.bf16.mxu0 0
  %359 = vmatmul.mubr.bf16.gmra.mrb[0].mxu0 %v274
  %v360 = vpop.f32.mrb[0].mxu0
  %v361 = vadd.f32 0.0, %v360
  %v362 = vpop.f32.mrb[0].mxu0
  %v363 = vpop.f32.mrb[0].mxu0
  %v364 = vpop.f32.mrb[0].mxu0
  %365 = vdwg.mxu0
  %v366 = vadd.f32 %v213, %v320
  %v367 = vadd.f32 %v215, %v322
  %v368 = vadd.f32 %v254, %v361
  %s369 = scalar_lea.vmem %s2, 12
  %v370 = vld [vmem:[%s369] sm:$0xf]
  %371 = vrot.lane.b32.xlu0 %v37, 1
  %v372 = vpop.permute.xlu0 %371
  %373 = vrot.lane.b32.xlu0 %v45, 1
  %v374 = vpop.permute.xlu0 %373
  %375 = vrot.lane.b32.xlu0 %v44, 1
  %v376 = vpop.permute.xlu0 %375
  %377 = vrot.lane.b32.xlu0 %v46, 1
  %v378 = vpop.permute.xlu0 %377
  %vm379 = vcmask 7168
  %v380 = vsel %vm379, %v372, %v374
  %v381 = vsel %vm379, %v374, %v376
  %v382 = vsel %vm379, %v376, %v378
  %v384 = vsel %vm59, %v370, 0
  %v387 = vsel %vm63, %v380, 0
  %v390 = vsel %vm63, %v381, 0
  %v393 = vsel %vm63, %v382, 0
  %395 = vmatprep.subr.bf16.mxu0 %v390
  %396 = vmatpush1.bf16.msra.mxu0 %v387
  %397 = vmatprep.subr.bf16.mxu0 0
  %398 = vmatpush1.bf16.msra.mxu0 0
  %399 = vmatprep.subr.bf16.mxu0 0
  %400 = vmatpush1.bf16.msra.mxu0 0
  %401 = vmatprep.subr.bf16.mxu0 0
  %402 = vmatpush1.bf16.msra.mxu0 0
  %403 = vmatprep.subr.bf16.mxu0 0
  %404 = vmatpush1.bf16.msra.mxu0 0
  %405 = vmatprep.subr.bf16.mxu0 0
  %406 = vmatpush1.bf16.msra.mxu0 0
  %407 = vmatprep.subr.bf16.mxu0 0
  %408 = vmatpush1.bf16.msra.mxu0 0
  %409 = vmatprep.subr.bf16.mxu0 0
  %410 = vmatpush1.bf16.msra.mxu0 0
  %411 = vmatprep.subr.bf16.mxu0 0
  %412 = vmatpush1.bf16.msra.mxu0 0
  %413 = vmatprep.subr.bf16.mxu0 0
  %414 = vmatpush1.bf16.msra.mxu0 0
  %415 = vmatprep.subr.bf16.mxu0 0
  %416 = vmatpush1.bf16.msra.mxu0 0
  %417 = vmatprep.subr.bf16.mxu0 0
  %418 = vmatpush1.bf16.msra.mxu0 0
  %419 = vmatprep.subr.bf16.mxu0 0
  %420 = vmatpush1.bf16.msra.mxu0 0
  %421 = vmatprep.subr.bf16.mxu0 0
  %422 = vmatpush1.bf16.msra.mxu0 0
  %423 = vmatprep.subr.bf16.mxu0 0
  %424 = vmatpush1.bf16.msra.mxu0 0
  %425 = vmatprep.subr.bf16.mxu0 0
  %426 = vmatpush1.bf16.msra.mxu0 0
  %427 = vmatprep.mubr.bf16.mxu0 0
  %428 = vmatmul.mubr.bf16.gmra.mrb[0].mxu0 %v384
  %v429 = vpop.f32.mrb[0].mxu0
  %v430 = vadd.f32 0.0, %v429
  %v431 = vpop.f32.mrb[0].mxu0
  %v432 = vadd.f32 0.0, %v431
  %v433 = vpop.f32.mrb[0].mxu0
  %v434 = vpop.f32.mrb[0].mxu0
  %435 = vdwg.mxu0
  %436 = vmatprep.subr.bf16.mxu0 0
  %437 = vmatpush1.bf16.msra.mxu0 %v393
  %438 = vmatprep.subr.bf16.mxu0 0
  %439 = vmatpush1.bf16.msra.mxu0 0
  %440 = vmatprep.subr.bf16.mxu0 0
  %441 = vmatpush1.bf16.msra.mxu0 0
  %442 = vmatprep.subr.bf16.mxu0 0
  %443 = vmatpush1.bf16.msra.mxu0 0
  %444 = vmatprep.subr.bf16.mxu0 0
  %445 = vmatpush1.bf16.msra.mxu0 0
  %446 = vmatprep.subr.bf16.mxu0 0
  %447 = vmatpush1.bf16.msra.mxu0 0
  %448 = vmatprep.subr.bf16.mxu0 0
  %449 = vmatpush1.bf16.msra.mxu0 0
  %450 = vmatprep.subr.bf16.mxu0 0
  %451 = vmatpush1.bf16.msra.mxu0 0
  %452 = vmatprep.subr.bf16.mxu0 0
  %453 = vmatpush1.bf16.msra.mxu0 0
  %454 = vmatprep.subr.bf16.mxu0 0
  %455 = vmatpush1.bf16.msra.mxu0 0
  %456 = vmatprep.subr.bf16.mxu0 0
  %457 = vmatpush1.bf16.msra.mxu0 0
  %458 = vmatprep.subr.bf16.mxu0 0
  %459 = vmatpush1.bf16.msra.mxu0 0
  %460 = vmatprep.subr.bf16.mxu0 0
  %461 = vmatpush1.bf16.msra.mxu0 0
  %462 = vmatprep.subr.bf16.mxu0 0
  %463 = vmatpush1.bf16.msra.mxu0 0
  %464 = vmatprep.subr.bf16.mxu0 0
  %465 = vmatpush1.bf16.msra.mxu0 0
  %466 = vmatprep.subr.bf16.mxu0 0
  %467 = vmatpush1.bf16.msra.mxu0 0
  %468 = vmatprep.mubr.bf16.mxu0 0
  %469 = vmatmul.mubr.bf16.gmra.mrb[0].mxu0 %v384
  %v470 = vpop.f32.mrb[0].mxu0
  %v471 = vadd.f32 0.0, %v470
  %v472 = vpop.f32.mrb[0].mxu0
  %v473 = vpop.f32.mrb[0].mxu0
  %v474 = vpop.f32.mrb[0].mxu0
  %475 = vdwg.mxu0
  %v476 = vadd.f32 %v366, %v430
  %v477 = vadd.f32 %v367, %v432
  %v478 = vadd.f32 %v368, %v471
  %s479 = scalar_lea.vmem %s2, 16
  %v480 = vld [vmem:[%s479] sm:$0xf]
  %v482 = vsel %vm59, %v480, 0
  %v485 = vsel %vm63, %v45, 0
  %v488 = vsel %vm63, %v44, 0
  %v491 = vsel %vm63, %v46, 0
  %493 = vmatprep.subr.bf16.mxu0 %v488
  %494 = vmatpush1.bf16.msra.mxu0 %v485
  %495 = vmatprep.subr.bf16.mxu0 0
  %496 = vmatpush1.bf16.msra.mxu0 0
  %497 = vmatprep.subr.bf16.mxu0 0
  %498 = vmatpush1.bf16.msra.mxu0 0
  %499 = vmatprep.subr.bf16.mxu0 0
  %500 = vmatpush1.bf16.msra.mxu0 0
  %501 = vmatprep.subr.bf16.mxu0 0
  %502 = vmatpush1.bf16.msra.mxu0 0
  %503 = vmatprep.subr.bf16.mxu0 0
  %504 = vmatpush1.bf16.msra.mxu0 0
  %505 = vmatprep.subr.bf16.mxu0 0
  %506 = vmatpush1.bf16.msra.mxu0 0
  %507 = vmatprep.subr.bf16.mxu0 0
  %508 = vmatpush1.bf16.msra.mxu0 0
  %509 = vmatprep.subr.bf16.mxu0 0
  %510 = vmatpush1.bf16.msra.mxu0 0
  %511 = vmatprep.subr.bf16.mxu0 0
  %512 = vmatpush1.bf16.msra.mxu0 0
  %513 = vmatprep.subr.bf16.mxu0 0
  %514 = vmatpush1.bf16.msra.mxu0 0
  %515 = vmatprep.subr.bf16.mxu0 0
  %516 = vmatpush1.bf16.msra.mxu0 0
  %517 = vmatprep.subr.bf16.mxu0 0
  %518 = vmatpush1.bf16.msra.mxu0 0
  %519 = vmatprep.subr.bf16.mxu0 0
  %520 = vmatpush1.bf16.msra.mxu0 0
  %521 = vmatprep.subr.bf16.mxu0 0
  %522 = vmatpush1.bf16.msra.mxu0 0
  %523 = vmatprep.subr.bf16.mxu0 0
  %524 = vmatpush1.bf16.msra.mxu0 0
  %525 = vmatprep.mubr.bf16.mxu0 0
  %526 = vmatmul.mubr.bf16.gmra.mrb[0].mxu0 %v482
  %v527 = vpop.f32.mrb[0].mxu0
  %v528 = vadd.f32 0.0, %v527
  %v529 = vpop.f32.mrb[0].mxu0
  %v530 = vadd.f32 0.0, %v529
  %v531 = vpop.f32.mrb[0].mxu0
  %v532 = vpop.f32.mrb[0].mxu0
  %533 = vdwg.mxu0
  %534 = vmatprep.subr.bf16.mxu0 0
  %535 = vmatpush1.bf16.msra.mxu0 %v491
  %536 = vmatprep.subr.bf16.mxu0 0
  %537 = vmatpush1.bf16.msra.mxu0 0
  %538 = vmatprep.subr.bf16.mxu0 0
  %539 = vmatpush1.bf16.msra.mxu0 0
  %540 = vmatprep.subr.bf16.mxu0 0
  %541 = vmatpush1.bf16.msra.mxu0 0
  %542 = vmatprep.subr.bf16.mxu0 0
  %543 = vmatpush1.bf16.msra.mxu0 0
  %544 = vmatprep.subr.bf16.mxu0 0
  %545 = vmatpush1.bf16.msra.mxu0 0
  %546 = vmatprep.subr.bf16.mxu0 0
  %547 = vmatpush1.bf16.msra.mxu0 0
  %548 = vmatprep.subr.bf16.mxu0 0
  %549 = vmatpush1.bf16.msra.mxu0 0
  %550 = vmatprep.subr.bf16.mxu0 0
  %551 = vmatpush1.bf16.msra.mxu0 0
  %552 = vmatprep.subr.bf16.mxu0 0
  %553 = vmatpush1.bf16.msra.mxu0 0
  %554 = vmatprep.subr.bf16.mxu0 0
  %555 = vmatpush1.bf16.msra.mxu0 0
  %556 = vmatprep.subr.bf16.mxu0 0
  %557 = vmatpush1.bf16.msra.mxu0 0
  %558 = vmatprep.subr.bf16.mxu0 0
  %559 = vmatpush1.bf16.msra.mxu0 0
  %560 = vmatprep.subr.bf16.mxu0 0
  %561 = vmatpush1.bf16.msra.mxu0 0
  %562 = vmatprep.subr.bf16.mxu0 0
  %563 = vmatpush1.bf16.msra.mxu0 0
  %564 = vmatprep.subr.bf16.mxu0 0
  %565 = vmatpush1.bf16.msra.mxu0 0
  %566 = vmatprep.mubr.bf16.mxu0 0
  %567 = vmatmul.mubr.bf16.gmra.mrb[0].mxu0 %v482
  %v568 = vpop.f32.mrb[0].mxu0
  %v569 = vadd.f32 0.0, %v568
  %v570 = vpop.f32.mrb[0].mxu0
  %v571 = vpop.f32.mrb[0].mxu0
  %v572 = vpop.f32.mrb[0].mxu0
  %573 = vdwg.mxu0
  %v574 = vadd.f32 %v476, %v528
  %v575 = vadd.f32 %v477, %v530
  %v576 = vadd.f32 %v478, %v569
  %s577 = scalar_lea.vmem %s2, 20
  %v578 = vld [vmem:[%s577] sm:$0xf]
  %v581 = vunpack.c.l.s4 1983009808
  %v582 = vunpack.c.0.s8 %v581
  %v583 = vlaneseq
  %v584 = vshrl.u32 %v583, 7
  %v585 = vsub.s32 %v582, %v584
  %v586 = vrot.slane %v25, %v585
  %587 = vrot.lane.b32.xlu0 %v45, 127
  %v588 = vpop.permute.xlu0 %587
  %589 = vrot.lane.b32.xlu0 %v44, 127
  %v590 = vpop.permute.xlu0 %589
  %591 = vrot.lane.b32.xlu0 %v46, 127
  %v592 = vpop.permute.xlu0 %591
  %593 = vrot.lane.b32.xlu0 %v586, 127
  %v594 = vpop.permute.xlu0 %593
  %vm595 = vcmask 1039360
  %v596 = vsel %vm595, %v588, %v590
  %v597 = vsel %vm595, %v590, %v592
  %v598 = vsel %vm595, %v592, %v594
  %v600 = vsel %vm59, %v578, 0
  %v603 = vsel %vm63, %v596, 0
  %v606 = vsel %vm63, %v597, 0
  %v609 = vsel %vm63, %v598, 0
  %611 = vmatprep.subr.bf16.mxu0 %v606
  %612 = vmatpush1.bf16.msra.mxu0 %v603
  %613 = vmatprep.subr.bf16.mxu0 0
  %614 = vmatpush1.bf16.msra.mxu0 0
  %615 = vmatprep.subr.bf16.mxu0 0
  %616 = vmatpush1.bf16.msra.mxu0 0
  %617 = vmatprep.subr.bf16.mxu0 0
  %618 = vmatpush1.bf16.msra.mxu0 0
  %619 = vmatprep.subr.bf16.mxu0 0
  %620 = vmatpush1.bf16.msra.mxu0 0
  %621 = vmatprep.subr.bf16.mxu0 0
  %622 = vmatpush1.bf16.msra.mxu0 0
  %623 = vmatprep.subr.bf16.mxu0 0
  %624 = vmatpush1.bf16.msra.mxu0 0
  %625 = vmatprep.subr.bf16.mxu0 0
  %626 = vmatpush1.bf16.msra.mxu0 0
  %627 = vmatprep.subr.bf16.mxu0 0
  %628 = vmatpush1.bf16.msra.mxu0 0
  %629 = vmatprep.subr.bf16.mxu0 0
  %630 = vmatpush1.bf16.msra.mxu0 0
  %631 = vmatprep.subr.bf16.mxu0 0
  %632 = vmatpush1.bf16.msra.mxu0 0
  %633 = vmatprep.subr.bf16.mxu0 0
  %634 = vmatpush1.bf16.msra.mxu0 0
  %635 = vmatprep.subr.bf16.mxu0 0
  %636 = vmatpush1.bf16.msra.mxu0 0
  %637 = vmatprep.subr.bf16.mxu0 0
  %638 = vmatpush1.bf16.msra.mxu0 0
  %639 = vmatprep.subr.bf16.mxu0 0
  %640 = vmatpush1.bf16.msra.mxu0 0
  %641 = vmatprep.subr.bf16.mxu0 0
  %642 = vmatpush1.bf16.msra.mxu0 0
  %643 = vmatprep.mubr.bf16.mxu0 0
  %644 = vmatmul.mubr.bf16.gmra.mrb[0].mxu0 %v600
  %v645 = vpop.f32.mrb[0].mxu0
  %v646 = vadd.f32 0.0, %v645
  %v647 = vpop.f32.mrb[0].mxu0
  %v648 = vadd.f32 0.0, %v647
  %v649 = vpop.f32.mrb[0].mxu0
  %v650 = vpop.f32.mrb[0].mxu0
  %651 = vdwg.mxu0
  %652 = vmatprep.subr.bf16.mxu0 0
  %653 = vmatpush1.bf16.msra.mxu0 %v609
  %654 = vmatprep.subr.bf16.mxu0 0
  %655 = vmatpush1.bf16.msra.mxu0 0
  %656 = vmatprep.subr.bf16.mxu0 0
  %657 = vmatpush1.bf16.msra.mxu0 0
  %658 = vmatprep.subr.bf16.mxu0 0
  %659 = vmatpush1.bf16.msra.mxu0 0
  %660 = vmatprep.subr.bf16.mxu0 0
  %661 = vmatpush1.bf16.msra.mxu0 0
  %662 = vmatprep.subr.bf16.mxu0 0
  %663 = vmatpush1.bf16.msra.mxu0 0
  %664 = vmatprep.subr.bf16.mxu0 0
  %665 = vmatpush1.bf16.msra.mxu0 0
  %666 = vmatprep.subr.bf16.mxu0 0
  %667 = vmatpush1.bf16.msra.mxu0 0
  %668 = vmatprep.subr.bf16.mxu0 0
  %669 = vmatpush1.bf16.msra.mxu0 0
  %670 = vmatprep.subr.bf16.mxu0 0
  %671 = vmatpush1.bf16.msra.mxu0 0
  %672 = vmatprep.subr.bf16.mxu0 0
  %673 = vmatpush1.bf16.msra.mxu0 0
  %674 = vmatprep.subr.bf16.mxu0 0
  %675 = vmatpush1.bf16.msra.mxu0 0
  %676 = vmatprep.subr.bf16.mxu0 0
  %677 = vmatpush1.bf16.msra.mxu0 0
  %678 = vmatprep.subr.bf16.mxu0 0
  %679 = vmatpush1.bf16.msra.mxu0 0
  %680 = vmatprep.subr.bf16.mxu0 0
  %681 = vmatpush1.bf16.msra.mxu0 0
  %682 = vmatprep.subr.bf16.mxu0 0
  %683 = vmatpush1.bf16.msra.mxu0 0
  %684 = vmatprep.mubr.bf16.mxu0 0
  %685 = vmatmul.mubr.bf16.gmra.mrb[0].mxu0 %v600
  %v686 = vpop.f32.mrb[0].mxu0
  %v687 = vadd.f32 0.0, %v686
  %v688 = vpop.f32.mrb[0].mxu0
  %v689 = vpop.f32.mrb[0].mxu0
  %v690 = vpop.f32.mrb[0].mxu0
  %691 = vdwg.mxu0
  %v692 = vadd.f32 %v574, %v646
  %v693 = vadd.f32 %v575, %v648
  %v694 = vadd.f32 %v576, %v687
  %s695 = scalar_lea.vmem %s2, 24
  %v696 = vld [vmem:[%s695] sm:$0xf]
  %697 = vrot.lane.b32.xlu0 %v45, 111
  %v698 = vpop.permute.xlu0 %697
  %699 = vrot.lane.b32.xlu0 %v44, 111
  %v700 = vpop.permute.xlu0 %699
  %701 = vrot.lane.b32.xlu0 %v46, 111
  %v702 = vpop.permute.xlu0 %701
  %703 = vrot.lane.b32.xlu0 %v586, 111
  %v704 = vpop.permute.xlu0 %703
  %vm705 = vcmask 908288
  %v706 = vsel %vm705, %v698, %v700
  %v707 = vsel %vm705, %v700, %v702
  %v708 = vsel %vm705, %v702, %v704
  %v710 = vsel %vm59, %v696, 0
  %v713 = vsel %vm63, %v706, 0
  %v716 = vsel %vm63, %v707, 0
  %v719 = vsel %vm63, %v708, 0
  %721 = vmatprep.subr.bf16.mxu0 %v716
  %722 = vmatpush1.bf16.msra.mxu0 %v713
  %723 = vmatprep.subr.bf16.mxu0 0
  %724 = vmatpush1.bf16.msra.mxu0 0
  %725 = vmatprep.subr.bf16.mxu0 0
  %726 = vmatpush1.bf16.msra.mxu0 0
  %727 = vmatprep.subr.bf16.mxu0 0
  %728 = vmatpush1.bf16.msra.mxu0 0
  %729 = vmatprep.subr.bf16.mxu0 0
  %730 = vmatpush1.bf16.msra.mxu0 0
  %731 = vmatprep.subr.bf16.mxu0 0
  %732 = vmatpush1.bf16.msra.mxu0 0
  %733 = vmatprep.subr.bf16.mxu0 0
  %734 = vmatpush1.bf16.msra.mxu0 0
  %735 = vmatprep.subr.bf16.mxu0 0
  %736 = vmatpush1.bf16.msra.mxu0 0
  %737 = vmatprep.subr.bf16.mxu0 0
  %738 = vmatpush1.bf16.msra.mxu0 0
  %739 = vmatprep.subr.bf16.mxu0 0
  %740 = vmatpush1.bf16.msra.mxu0 0
  %741 = vmatprep.subr.bf16.mxu0 0
  %742 = vmatpush1.bf16.msra.mxu0 0
  %743 = vmatprep.subr.bf16.mxu0 0
  %744 = vmatpush1.bf16.msra.mxu0 0
  %745 = vmatprep.subr.bf16.mxu0 0
  %746 = vmatpush1.bf16.msra.mxu0 0
  %747 = vmatprep.subr.bf16.mxu0 0
  %748 = vmatpush1.bf16.msra.mxu0 0
  %749 = vmatprep.subr.bf16.mxu0 0
  %750 = vmatpush1.bf16.msra.mxu0 0
  %751 = vmatprep.subr.bf16.mxu0 0
  %752 = vmatpush1.bf16.msra.mxu0 0
  %753 = vmatprep.mubr.bf16.mxu0 0
  %754 = vmatmul.mubr.bf16.gmra.mrb[0].mxu0 %v710
  %v755 = vpop.f32.mrb[0].mxu0
  %v756 = vadd.f32 0.0, %v755
  %v757 = vpop.f32.mrb[0].mxu0
  %v758 = vadd.f32 0.0, %v757
  %v759 = vpop.f32.mrb[0].mxu0
  %v760 = vpop.f32.mrb[0].mxu0
  %761 = vdwg.mxu0
  %762 = vmatprep.subr.bf16.mxu0 0
  %763 = vmatpush1.bf16.msra.mxu0 %v719
  %764 = vmatprep.subr.bf16.mxu0 0
  %765 = vmatpush1.bf16.msra.mxu0 0
  %766 = vmatprep.subr.bf16.mxu0 0
  %767 = vmatpush1.bf16.msra.mxu0 0
  %768 = vmatprep.subr.bf16.mxu0 0
  %769 = vmatpush1.bf16.msra.mxu0 0
  %770 = vmatprep.subr.bf16.mxu0 0
  %771 = vmatpush1.bf16.msra.mxu0 0
  %772 = vmatprep.subr.bf16.mxu0 0
  %773 = vmatpush1.bf16.msra.mxu0 0
  %774 = vmatprep.subr.bf16.mxu0 0
  %775 = vmatpush1.bf16.msra.mxu0 0
  %776 = vmatprep.subr.bf16.mxu0 0
  %777 = vmatpush1.bf16.msra.mxu0 0
  %778 = vmatprep.subr.bf16.mxu0 0
  %779 = vmatpush1.bf16.msra.mxu0 0
  %780 = vmatprep.subr.bf16.mxu0 0
  %781 = vmatpush1.bf16.msra.mxu0 0
  %782 = vmatprep.subr.bf16.mxu0 0
  %783 = vmatpush1.bf16.msra.mxu0 0
  %784 = vmatprep.subr.bf16.mxu0 0
  %785 = vmatpush1.bf16.msra.mxu0 0
  %786 = vmatprep.subr.bf16.mxu0 0
  %787 = vmatpush1.bf16.msra.mxu0 0
  %788 = vmatprep.subr.bf16.mxu0 0
  %789 = vmatpush1.bf16.msra.mxu0 0
  %790 = vmatprep.subr.bf16.mxu0 0
  %791 = vmatpush1.bf16.msra.mxu0 0
  %792 = vmatprep.subr.bf16.mxu0 0
  %793 = vmatpush1.bf16.msra.mxu0 0
  %794 = vmatprep.mubr.bf16.mxu0 0
  %795 = vmatmul.mubr.bf16.gmra.mrb[0].mxu0 %v710
  %v796 = vpop.f32.mrb[0].mxu0
  %v797 = vadd.f32 0.0, %v796
  %v798 = vpop.f32.mrb[0].mxu0
  %v799 = vpop.f32.mrb[0].mxu0
  %v800 = vpop.f32.mrb[0].mxu0
  %801 = vdwg.mxu0
  %v802 = vadd.f32 %v692, %v756
  %v803 = vadd.f32 %v693, %v758
  %v804 = vadd.f32 %v694, %v797
  %s805 = scalar_lea.vmem %s2, 28
  %v806 = vld [vmem:[%s805] sm:$0xf]
  %807 = vrot.lane.b32.xlu0 %v45, 110
  %v808 = vpop.permute.xlu0 %807
  %809 = vrot.lane.b32.xlu0 %v44, 110
  %v810 = vpop.permute.xlu0 %809
  %811 = vrot.lane.b32.xlu0 %v46, 110
  %v812 = vpop.permute.xlu0 %811
  %813 = vrot.lane.b32.xlu0 %v586, 110
  %v814 = vpop.permute.xlu0 %813
  %vm815 = vcmask 900096
  %v816 = vsel %vm815, %v808, %v810
  %v817 = vsel %vm815, %v810, %v812
  %v818 = vsel %vm815, %v812, %v814
  %v820 = vsel %vm59, %v806, 0
  %v823 = vsel %vm63, %v816, 0
  %v826 = vsel %vm63, %v817, 0
  %v829 = vsel %vm63, %v818, 0
  %831 = vmatprep.subr.bf16.mxu0 %v826
  %832 = vmatpush1.bf16.msra.mxu0 %v823
  %833 = vmatprep.subr.bf16.mxu0 0
  %834 = vmatpush1.bf16.msra.mxu0 0
  %835 = vmatprep.subr.bf16.mxu0 0
  %836 = vmatpush1.bf16.msra.mxu0 0
  %837 = vmatprep.subr.bf16.mxu0 0
  %838 = vmatpush1.bf16.msra.mxu0 0
  %839 = vmatprep.subr.bf16.mxu0 0
  %840 = vmatpush1.bf16.msra.mxu0 0
  %841 = vmatprep.subr.bf16.mxu0 0
  %842 = vmatpush1.bf16.msra.mxu0 0
  %843 = vmatprep.subr.bf16.mxu0 0
  %844 = vmatpush1.bf16.msra.mxu0 0
  %845 = vmatprep.subr.bf16.mxu0 0
  %846 = vmatpush1.bf16.msra.mxu0 0
  %847 = vmatprep.subr.bf16.mxu0 0
  %848 = vmatpush1.bf16.msra.mxu0 0
  %849 = vmatprep.subr.bf16.mxu0 0
  %850 = vmatpush1.bf16.msra.mxu0 0
  %851 = vmatprep.subr.bf16.mxu0 0
  %852 = vmatpush1.bf16.msra.mxu0 0
  %853 = vmatprep.subr.bf16.mxu0 0
  %854 = vmatpush1.bf16.msra.mxu0 0
  %855 = vmatprep.subr.bf16.mxu0 0
  %856 = vmatpush1.bf16.msra.mxu0 0
  %857 = vmatprep.subr.bf16.mxu0 0
  %858 = vmatpush1.bf16.msra.mxu0 0
  %859 = vmatprep.subr.bf16.mxu0 0
  %860 = vmatpush1.bf16.msra.mxu0 0
  %861 = vmatprep.subr.bf16.mxu0 0
  %862 = vmatpush1.bf16.msra.mxu0 0
  %863 = vmatprep.mubr.bf16.mxu0 0
  %864 = vmatmul.mubr.bf16.gmra.mrb[0].mxu0 %v820
  %v865 = vpop.f32.mrb[0].mxu0
  %v866 = vadd.f32 0.0, %v865
  %v867 = vpop.f32.mrb[0].mxu0
  %v868 = vadd.f32 0.0, %v867
  %v869 = vpop.f32.mrb[0].mxu0
  %v870 = vpop.f32.mrb[0].mxu0
  %871 = vdwg.mxu0
  %872 = vmatprep.subr.bf16.mxu0 0
  %873 = vmatpush1.bf16.msra.mxu0 %v829
  %874 = vmatprep.subr.bf16.mxu0 0
  %875 = vmatpush1.bf16.msra.mxu0 0
  %876 = vmatprep.subr.bf16.mxu0 0
  %877 = vmatpush1.bf16.msra.mxu0 0
  %878 = vmatprep.subr.bf16.mxu0 0
  %879 = vmatpush1.bf16.msra.mxu0 0
  %880 = vmatprep.subr.bf16.mxu0 0
  %881 = vmatpush1.bf16.msra.mxu0 0
  %882 = vmatprep.subr.bf16.mxu0 0
  %883 = vmatpush1.bf16.msra.mxu0 0
  %884 = vmatprep.subr.bf16.mxu0 0
  %885 = vmatpush1.bf16.msra.mxu0 0
  %886 = vmatprep.subr.bf16.mxu0 0
  %887 = vmatpush1.bf16.msra.mxu0 0
  %888 = vmatprep.subr.bf16.mxu0 0
  %889 = vmatpush1.bf16.msra.mxu0 0
  %890 = vmatprep.subr.bf16.mxu0 0
  %891 = vmatpush1.bf16.msra.mxu0 0
  %892 = vmatprep.subr.bf16.mxu0 0
  %893 = vmatpush1.bf16.msra.mxu0 0
  %894 = vmatprep.subr.bf16.mxu0 0
  %895 = vmatpush1.bf16.msra.mxu0 0
  %896 = vmatprep.subr.bf16.mxu0 0
  %897 = vmatpush1.bf16.msra.mxu0 0
  %898 = vmatprep.subr.bf16.mxu0 0
  %899 = vmatpush1.bf16.msra.mxu0 0
  %900 = vmatprep.subr.bf16.mxu0 0
  %901 = vmatpush1.bf16.msra.mxu0 0
  %902 = vmatprep.subr.bf16.mxu0 0
  %903 = vmatpush1.bf16.msra.mxu0 0
  %904 = vmatprep.mubr.bf16.mxu0 0
  %905 = vmatmul.mubr.bf16.gmra.mrb[0].mxu0 %v820
  %v906 = vpop.f32.mrb[0].mxu0
  %v907 = vadd.f32 0.0, %v906
  %v908 = vpop.f32.mrb[0].mxu0
  %v909 = vpop.f32.mrb[0].mxu0
  %v910 = vpop.f32.mrb[0].mxu0
  %911 = vdwg.mxu0
  %v912 = vadd.f32 %v802, %v866
  %v913 = vadd.f32 %v803, %v868
  %v914 = vadd.f32 %v804, %v907
  %s915 = scalar_lea.vmem %s2, 32
  %v916 = vld [vmem:[%s915] sm:$0xf]
  %917 = vrot.lane.b32.xlu0 %v45, 109
  %v918 = vpop.permute.xlu0 %917
  %919 = vrot.lane.b32.xlu0 %v44, 109
  %v920 = vpop.permute.xlu0 %919
  %921 = vrot.lane.b32.xlu0 %v46, 109
  %v922 = vpop.permute.xlu0 %921
  %923 = vrot.lane.b32.xlu0 %v586, 109
  %v924 = vpop.permute.xlu0 %923
  %vm925 = vcmask 891904
  %v926 = vsel %vm925, %v918, %v920
  %v927 = vsel %vm925, %v920, %v922
  %v928 = vsel %vm925, %v922, %v924
  %v930 = vsel %vm59, %v916, 0
  %v933 = vsel %vm63, %v926, 0
  %v936 = vsel %vm63, %v927, 0
  %v939 = vsel %vm63, %v928, 0
  %941 = vmatprep.subr.bf16.mxu0 %v936
  %942 = vmatpush1.bf16.msra.mxu0 %v933
  %943 = vmatprep.subr.bf16.mxu0 0
  %944 = vmatpush1.bf16.msra.mxu0 0
  %945 = vmatprep.subr.bf16.mxu0 0
  %946 = vmatpush1.bf16.msra.mxu0 0
  %947 = vmatprep.subr.bf16.mxu0 0
  %948 = vmatpush1.bf16.msra.mxu0 0
  %949 = vmatprep.subr.bf16.mxu0 0
  %950 = vmatpush1.bf16.msra.mxu0 0
  %951 = vmatprep.subr.bf16.mxu0 0
  %952 = vmatpush1.bf16.msra.mxu0 0
  %953 = vmatprep.subr.bf16.mxu0 0
  %954 = vmatpush1.bf16.msra.mxu0 0
  %955 = vmatprep.subr.bf16.mxu0 0
  %956 = vmatpush1.bf16.msra.mxu0 0
  %957 = vmatprep.subr.bf16.mxu0 0
  %958 = vmatpush1.bf16.msra.mxu0 0
  %959 = vmatprep.subr.bf16.mxu0 0
  %960 = vmatpush1.bf16.msra.mxu0 0
  %961 = vmatprep.subr.bf16.mxu0 0
  %962 = vmatpush1.bf16.msra.mxu0 0
  %963 = vmatprep.subr.bf16.mxu0 0
  %964 = vmatpush1.bf16.msra.mxu0 0
  %965 = vmatprep.subr.bf16.mxu0 0
  %966 = vmatpush1.bf16.msra.mxu0 0
  %967 = vmatprep.subr.bf16.mxu0 0
  %968 = vmatpush1.bf16.msra.mxu0 0
  %969 = vmatprep.subr.bf16.mxu0 0
  %970 = vmatpush1.bf16.msra.mxu0 0
  %971 = vmatprep.subr.bf16.mxu0 0
  %972 = vmatpush1.bf16.msra.mxu0 0
  %973 = vmatprep.mubr.bf16.mxu0 0
  %974 = vmatmul.mubr.bf16.gmra.mrb[0].mxu0 %v930
  %v975 = vpop.f32.mrb[0].mxu0
  %v976 = vadd.f32 0.0, %v975
  %v977 = vpop.f32.mrb[0].mxu0
  %v978 = vadd.f32 0.0, %v977
  %v979 = vpop.f32.mrb[0].mxu0
  %v980 = vpop.f32.mrb[0].mxu0
  %981 = vdwg.mxu0
  %982 = vmatprep.subr.bf16.mxu0 0
  %983 = vmatpush1.bf16.msra.mxu0 %v939
  %984 = vmatprep.subr.bf16.mxu0 0
  %985 = vmatpush1.bf16.msra.mxu0 0
  %986 = vmatprep.subr.bf16.mxu0 0
  %987 = vmatpush1.bf16.msra.mxu0 0
  %988 = vmatprep.subr.bf16.mxu0 0
  %989 = vmatpush1.bf16.msra.mxu0 0
  %990 = vmatprep.subr.bf16.mxu0 0
  %991 = vmatpush1.bf16.msra.mxu0 0
  %992 = vmatprep.subr.bf16.mxu0 0
  %993 = vmatpush1.bf16.msra.mxu0 0
  %994 = vmatprep.subr.bf16.mxu0 0
  %995 = vmatpush1.bf16.msra.mxu0 0
  %996 = vmatprep.subr.bf16.mxu0 0
  %997 = vmatpush1.bf16.msra.mxu0 0
  %998 = vmatprep.subr.bf16.mxu0 0
  %999 = vmatpush1.bf16.msra.mxu0 0
  %1000 = vmatprep.subr.bf16.mxu0 0
  %1001 = vmatpush1.bf16.msra.mxu0 0
  %1002 = vmatprep.subr.bf16.mxu0 0
  %1003 = vmatpush1.bf16.msra.mxu0 0
  %1004 = vmatprep.subr.bf16.mxu0 0
  %1005 = vmatpush1.bf16.msra.mxu0 0
  %1006 = vmatprep.subr.bf16.mxu0 0
  %1007 = vmatpush1.bf16.msra.mxu0 0
  %1008 = vmatprep.subr.bf16.mxu0 0
  %1009 = vmatpush1.bf16.msra.mxu0 0
  %1010 = vmatprep.subr.bf16.mxu0 0
  %1011 = vmatpush1.bf16.msra.mxu0 0
  %1012 = vmatprep.subr.bf16.mxu0 0
  %1013 = vmatpush1.bf16.msra.mxu0 0
  %1014 = vmatprep.mubr.bf16.mxu0 0
  %1015 = vmatmul.mubr.bf16.gmra.mrb[0].mxu0 %v930
  %v1016 = vpop.f32.mrb[0].mxu0
  %v1017 = vadd.f32 0.0, %v1016
  %v1018 = vpop.f32.mrb[0].mxu0
  %v1019 = vpop.f32.mrb[0].mxu0
  %v1020 = vpop.f32.mrb[0].mxu0
  %1021 = vdwg.mxu0
  %v1022 = vadd.f32 %v912, %v976
  %v1023 = vadd.f32 %v913, %v978
  %v1024 = vadd.f32 %v914, %v1017
  %v1026 = vlaneseq
  %v1027 = vshrl.u32 %v1026, 7
  %v1028 = vsub.s32 0, %v1027
  %v1029 = vrot.slane %v23, %v1028
  %v1030 = vlaneseq
  %v1031 = vshrl.u32 %v1030, 7
  %v1032 = vsub.s32 1, %v1031
  %v1033 = vrot.slane %v23, %v1032
  %v1034 = vlaneseq
  %v1035 = vshrl.u32 %v1034, 7
  %v1036 = vsub.s32 2, %v1035
  %v1037 = vrot.slane %v23, %v1036
  %v1041 = vmul.f32 %v1022, %v1029
  %v1042 = vmul.f32 %v1023, %v1033
  %v1043 = vmul.f32 %v1024, %v1037
  %v1044 = vadd.f32 %v1041, %v1042
  %v1045 = vadd.f32 %v1044, %v1043
  %1046 = vadd.xlane.f32.xlu0 %v1045
  %v1047 = vpop.xlane.xlu0 %1046
  %v1048 = vmul.f32 %v1047, 0.00390625
  %v1049 = vsub.f32 %v1022, %v1048
  %v1050 = vsub.f32 %v1023, %v1048
  %v1051 = vsub.f32 %v1024, %v1048
  %v1052 = vmul.f32 %v1049, %v1029
  %v1053 = vmul.f32 %v1050, %v1033
  %v1054 = vmul.f32 %v1051, %v1037
  %v1055 = vmul.f32 %v1052, %v1052
  %v1056 = vmul.f32 %v1053, %v1053
  %v1057 = vmul.f32 %v1054, %v1054
  %v1058 = vadd.f32 %v1055, %v1056
  %v1059 = vadd.f32 %v1058, %v1057
  %1060 = vadd.xlane.f32.xlu0 %v1059
  %v1061 = vpop.xlane.xlu0 %1060
  %v1062 = vmul.f32 %v1061, 0.00390625
  %v1063 = vadd.f32 %v1062, 1e-05
  %v1064 = vrsqrt.pop %v1063
  %v1065 = vmul.f32 %v1052, %v1064
  %v1066 = vmul.f32 %v1053, %v1064
  %v1067 = vmul.f32 %v1054, %v1064
  %v1068 = vmul.f32 %v1065, 0.2
  %v1069 = vmul.f32 %v1066, 0.2
  %v1070 = vmul.f32 %v1067, 0.2
  %v1071 = vmax.f32 %v1065, %v1068
  %v1072 = vmax.f32 %v1066, %v1069
  %v1073 = vmax.f32 %v1067, %v1070
  %v1074 = vpack.c.bf16 %v1071, %v1071
  %v1075 = vpack.c.bf16 %v1072, %v1072
  %v1076 = vpack.c.bf16 %v1073, %v1073
  %v1080 = vunpack.c.l.b16 %v1074
  %v1081 = vunpack.c.l.b16 %v1075
  %v1082 = vunpack.c.l.b16 %v1076
  %v1083 = vpack.c.b16 %v1081, %v1080
  %v1084 = vpack.c.b16 %v1082, %v1082
  %1087 = vst [vmem:[#allocation2 + $0x4] sm:$0xff] %v1083
  %1088 = vst [vmem:[#allocation2 + $0xc] sm:$0xf] %v1084
  %v1089 = vld [vmem:[%s3] sm:$0xf]
  %v1090 = vld [vmem:[#allocation2] sm:$0xff]
  %v1091 = vld [vmem:[#allocation2 + $0x8] sm:$0xff]
  %s1092 = scalar_lea.vmem %s3, 4
  %v1093 = vld [vmem:[%s1092] sm:$0xf]
  %v1096 = vunpack.c.l.b16 %v1090
  %v1097 = vunpack.c.h.b16 %v1090
  %v1098 = vunpack.c.l.b16 %v1091
  %v1099 = vunpack.c.h.b16 %v1091
  %v1100 = vpack.c.b16 %v1096, %v1096
  %v1101 = vpack.c.b16 %v1097, %v1097
  %v1102 = vpack.c.b16 %v1098, %v1098
  %v1103 = vpack.c.b16 %v1099, %v1099
  %1104 = vrot.lane.b32.xlu0 %v1100, 18
  %v1105 = vpop.permute.xlu0 %1104
  %1106 = vrot.lane.b32.xlu0 %v1101, 18
  %v1107 = vpop.permute.xlu0 %1106
  %1108 = vrot.lane.b32.xlu0 %v1102, 18
  %v1109 = vpop.permute.xlu0 %1108
  %1110 = vrot.lane.b32.xlu0 %v1103, 18
  %v1111 = vpop.permute.xlu0 %1110
  %v1112 = vsel %vm55, %v1105, %v1107
  %v1113 = vsel %vm55, %v1107, %v1109
  %v1114 = vsel %vm55, %v1109, %v1111
  %vm1115 = vcmask 64512
  %v1117 = vsel %vm1115, %v1093, 0
  %vm1119 = vcmask 1043456
  %v1121 = vsel %vm1119, %v1112, 0
  %v1124 = vsel %vm1119, %v1113, 0
  %v1127 = vsel %vm1119, %v1114, 0
  %1129 = vmatprep.subr.bf16.mxu0 %v1124
  %1130 = vmatpush1.bf16.msra.mxu0 %v1121
  %1131 = vmatprep.subr.bf16.mxu0 0
  %1132 = vmatpush1.bf16.msra.mxu0 0
  %1133 = vmatprep.subr.bf16.mxu0 0
  %1134 = vmatpush1.bf16.msra.mxu0 0
  %1135 = vmatprep.subr.bf16.mxu0 0
  %1136 = vmatpush1.bf16.msra.mxu0 0
  %1137 = vmatprep.subr.bf16.mxu0 0
  %1138 = vmatpush1.bf16.msra.mxu0 0
  %1139 = vmatprep.subr.bf16.mxu0 0
  %1140 = vmatpush1.bf16.msra.mxu0 0
  %1141 = vmatprep.subr.bf16.mxu0 0
  %1142 = vmatpush1.bf16.msra.mxu0 0
  %1143 = vmatprep.subr.bf16.mxu0 0
  %1144 = vmatpush1.bf16.msra.mxu0 0
  %1145 = vmatprep.subr.bf16.mxu0 0
  %1146 = vmatpush1.bf16.msra.mxu0 0
  %1147 = vmatprep.subr.bf16.mxu0 0
  %1148 = vmatpush1.bf16.msra.mxu0 0
  %1149 = vmatprep.subr.bf16.mxu0 0
  %1150 = vmatpush1.bf16.msra.mxu0 0
  %1151 = vmatprep.subr.bf16.mxu0 0
  %1152 = vmatpush1.bf16.msra.mxu0 0
  %1153 = vmatprep.subr.bf16.mxu0 0
  %1154 = vmatpush1.bf16.msra.mxu0 0
  %1155 = vmatprep.subr.bf16.mxu0 0
  %1156 = vmatpush1.bf16.msra.mxu0 0
  %1157 = vmatprep.subr.bf16.mxu0 0
  %1158 = vmatpush1.bf16.msra.mxu0 0
  %1159 = vmatprep.subr.bf16.mxu0 0
  %1160 = vmatpush1.bf16.msra.mxu0 0
  %1161 = vmatprep.mubr.bf16.mxu0 0
  %1162 = vmatmul.mubr.bf16.gmra.mrb[0].mxu0 %v1117
  %v1163 = vpop.f32.mrb[0].mxu0
  %v1164 = vadd.f32 0.0, %v1163
  %v1165 = vpop.f32.mrb[0].mxu0
  %v1166 = vadd.f32 0.0, %v1165
  %v1167 = vpop.f32.mrb[0].mxu0
  %v1168 = vpop.f32.mrb[0].mxu0
  %1169 = vdwg.mxu0
  %1170 = vmatprep.subr.bf16.mxu0 0
  %1171 = vmatpush1.bf16.msra.mxu0 %v1127
  %1172 = vmatprep.subr.bf16.mxu0 0
  %1173 = vmatpush1.bf16.msra.mxu0 0
  %1174 = vmatprep.subr.bf16.mxu0 0
  %1175 = vmatpush1.bf16.msra.mxu0 0
  %1176 = vmatprep.subr.bf16.mxu0 0
  %1177 = vmatpush1.bf16.msra.mxu0 0
  %1178 = vmatprep.subr.bf16.mxu0 0
  %1179 = vmatpush1.bf16.msra.mxu0 0
  %1180 = vmatprep.subr.bf16.mxu0 0
  %1181 = vmatpush1.bf16.msra.mxu0 0
  %1182 = vmatprep.subr.bf16.mxu0 0
  %1183 = vmatpush1.bf16.msra.mxu0 0
  %1184 = vmatprep.subr.bf16.mxu0 0
  %1185 = vmatpush1.bf16.msra.mxu0 0
  %1186 = vmatprep.subr.bf16.mxu0 0
  %1187 = vmatpush1.bf16.msra.mxu0 0
  %1188 = vmatprep.subr.bf16.mxu0 0
  %1189 = vmatpush1.bf16.msra.mxu0 0
  %1190 = vmatprep.subr.bf16.mxu0 0
  %1191 = vmatpush1.bf16.msra.mxu0 0
  %1192 = vmatprep.subr.bf16.mxu0 0
  %1193 = vmatpush1.bf16.msra.mxu0 0
  %1194 = vmatprep.subr.bf16.mxu0 0
  %1195 = vmatpush1.bf16.msra.mxu0 0
  %1196 = vmatprep.subr.bf16.mxu0 0
  %1197 = vmatpush1.bf16.msra.mxu0 0
  %1198 = vmatprep.subr.bf16.mxu0 0
  %1199 = vmatpush1.bf16.msra.mxu0 0
  %1200 = vmatprep.subr.bf16.mxu0 0
  %1201 = vmatpush1.bf16.msra.mxu0 0
  %1202 = vmatprep.mubr.bf16.mxu0 0
  %1203 = vmatmul.mubr.bf16.gmra.mrb[0].mxu0 %v1117
  %v1204 = vpop.f32.mrb[0].mxu0
  %v1205 = vadd.f32 0.0, %v1204
  %v1206 = vpop.f32.mrb[0].mxu0
  %v1207 = vpop.f32.mrb[0].mxu0
  %v1208 = vpop.f32.mrb[0].mxu0
  %1209 = vdwg.mxu0
  %1210 = vrot.lane.b32.xlu0 %v1100, 19
  %v1211 = vpop.permute.xlu0 %1210
  %1212 = vrot.lane.b32.xlu0 %v1101, 19
  %v1213 = vpop.permute.xlu0 %1212
  %1214 = vrot.lane.b32.xlu0 %v1102, 19
  %v1215 = vpop.permute.xlu0 %1214
  %1216 = vrot.lane.b32.xlu0 %v1103, 19
  %v1217 = vpop.permute.xlu0 %1216
  %v1218 = vsel %vm162, %v1211, %v1213
  %v1219 = vsel %vm162, %v1213, %v1215
  %v1220 = vsel %vm162, %v1215, %v1217
  %v1222 = vsel %vm1115, %v1089, 0
  %v1225 = vsel %vm1119, %v1218, 0
  %v1228 = vsel %vm1119, %v1219, 0
  %v1231 = vsel %vm1119, %v1220, 0
  %1233 = vmatprep.subr.bf16.mxu0 %v1228
  %1234 = vmatpush1.bf16.msra.mxu0 %v1225
  %1235 = vmatprep.subr.bf16.mxu0 0
  %1236 = vmatpush1.bf16.msra.mxu0 0
  %1237 = vmatprep.subr.bf16.mxu0 0
  %1238 = vmatpush1.bf16.msra.mxu0 0
  %1239 = vmatprep.subr.bf16.mxu0 0
  %1240 = vmatpush1.bf16.msra.mxu0 0
  %1241 = vmatprep.subr.bf16.mxu0 0
  %1242 = vmatpush1.bf16.msra.mxu0 0
  %1243 = vmatprep.subr.bf16.mxu0 0
  %1244 = vmatpush1.bf16.msra.mxu0 0
  %1245 = vmatprep.subr.bf16.mxu0 0
  %1246 = vmatpush1.bf16.msra.mxu0 0
  %1247 = vmatprep.subr.bf16.mxu0 0
  %1248 = vmatpush1.bf16.msra.mxu0 0
  %1249 = vmatprep.subr.bf16.mxu0 0
  %1250 = vmatpush1.bf16.msra.mxu0 0
  %1251 = vmatprep.subr.bf16.mxu0 0
  %1252 = vmatpush1.bf16.msra.mxu0 0
  %1253 = vmatprep.subr.bf16.mxu0 0
  %1254 = vmatpush1.bf16.msra.mxu0 0
  %1255 = vmatprep.subr.bf16.mxu0 0
  %1256 = vmatpush1.bf16.msra.mxu0 0
  %1257 = vmatprep.subr.bf16.mxu0 0
  %1258 = vmatpush1.bf16.msra.mxu0 0
  %1259 = vmatprep.subr.bf16.mxu0 0
  %1260 = vmatpush1.bf16.msra.mxu0 0
  %1261 = vmatprep.subr.bf16.mxu0 0
  %1262 = vmatpush1.bf16.msra.mxu0 0
  %1263 = vmatprep.subr.bf16.mxu0 0
  %1264 = vmatpush1.bf16.msra.mxu0 0
  %1265 = vmatprep.mubr.bf16.mxu0 0
  %1266 = vmatmul.mubr.bf16.gmra.mrb[0].mxu0 %v1222
  %v1267 = vpop.f32.mrb[0].mxu0
  %v1268 = vadd.f32 %v1164, %v1267
  %v1269 = vpop.f32.mrb[0].mxu0
  %v1270 = vadd.f32 %v1166, %v1269
  %v1271 = vpop.f32.mrb[0].mxu0
  %v1272 = vpop.f32.mrb[0].mxu0
  %1273 = vdwg.mxu0
  %1274 = vmatprep.subr.bf16.mxu0 0
  %1275 = vmatpush1.bf16.msra.mxu0 %v1231
  %1276 = vmatprep.subr.bf16.mxu0 0
  %1277 = vmatpush1.bf16.msra.mxu0 0
  %1278 = vmatprep.subr.bf16.mxu0 0
  %1279 = vmatpush1.bf16.msra.mxu0 0
  %1280 = vmatprep.subr.bf16.mxu0 0
  %1281 = vmatpush1.bf16.msra.mxu0 0
  %1282 = vmatprep.subr.bf16.mxu0 0
  %1283 = vmatpush1.bf16.msra.mxu0 0
  %1284 = vmatprep.subr.bf16.mxu0 0
  %1285 = vmatpush1.bf16.msra.mxu0 0
  %1286 = vmatprep.subr.bf16.mxu0 0
  %1287 = vmatpush1.bf16.msra.mxu0 0
  %1288 = vmatprep.subr.bf16.mxu0 0
  %1289 = vmatpush1.bf16.msra.mxu0 0
  %1290 = vmatprep.subr.bf16.mxu0 0
  %1291 = vmatpush1.bf16.msra.mxu0 0
  %1292 = vmatprep.subr.bf16.mxu0 0
  %1293 = vmatpush1.bf16.msra.mxu0 0
  %1294 = vmatprep.subr.bf16.mxu0 0
  %1295 = vmatpush1.bf16.msra.mxu0 0
  %1296 = vmatprep.subr.bf16.mxu0 0
  %1297 = vmatpush1.bf16.msra.mxu0 0
  %1298 = vmatprep.subr.bf16.mxu0 0
  %1299 = vmatpush1.bf16.msra.mxu0 0
  %1300 = vmatprep.subr.bf16.mxu0 0
  %1301 = vmatpush1.bf16.msra.mxu0 0
  %1302 = vmatprep.subr.bf16.mxu0 0
  %1303 = vmatpush1.bf16.msra.mxu0 0
  %1304 = vmatprep.subr.bf16.mxu0 0
  %1305 = vmatpush1.bf16.msra.mxu0 0
  %1306 = vmatprep.mubr.bf16.mxu0 0
  %1307 = vmatmul.mubr.bf16.gmra.mrb[0].mxu0 %v1222
  %v1308 = vpop.f32.mrb[0].mxu0
  %v1309 = vadd.f32 %v1205, %v1308
  %v1310 = vpop.f32.mrb[0].mxu0
  %v1311 = vpop.f32.mrb[0].mxu0
  %v1312 = vpop.f32.mrb[0].mxu0
  %1313 = vdwg.mxu0
  %s1314 = scalar_lea.vmem %s3, 8
  %v1315 = vld [vmem:[%s1314] sm:$0xf]
  %1316 = vrot.lane.b32.xlu0 %v1100, 17
  %v1317 = vpop.permute.xlu0 %1316
  %1318 = vrot.lane.b32.xlu0 %v1101, 17
  %v1319 = vpop.permute.xlu0 %1318
  %1320 = vrot.lane.b32.xlu0 %v1102, 17
  %v1321 = vpop.permute.xlu0 %1320
  %1322 = vrot.lane.b32.xlu0 %v1103, 17
  %v1323 = vpop.permute.xlu0 %1322
  %v1324 = vsel %vm269, %v1317, %v1319
  %v1325 = vsel %vm269, %v1319, %v1321
  %v1326 = vsel %vm269, %v1321, %v1323
  %v1328 = vsel %vm1115, %v1315, 0
  %v1331 = vsel %vm1119, %v1324, 0
  %v1334 = vsel %vm1119, %v1325, 0
  %v1337 = vsel %vm1119, %v1326, 0
  %1339 = vmatprep.subr.bf16.mxu0 %v1334
  %1340 = vmatpush1.bf16.msra.mxu0 %v1331
  %1341 = vmatprep.subr.bf16.mxu0 0
  %1342 = vmatpush1.bf16.msra.mxu0 0
  %1343 = vmatprep.subr.bf16.mxu0 0
  %1344 = vmatpush1.bf16.msra.mxu0 0
  %1345 = vmatprep.subr.bf16.mxu0 0
  %1346 = vmatpush1.bf16.msra.mxu0 0
  %1347 = vmatprep.subr.bf16.mxu0 0
  %1348 = vmatpush1.bf16.msra.mxu0 0
  %1349 = vmatprep.subr.bf16.mxu0 0
  %1350 = vmatpush1.bf16.msra.mxu0 0
  %1351 = vmatprep.subr.bf16.mxu0 0
  %1352 = vmatpush1.bf16.msra.mxu0 0
  %1353 = vmatprep.subr.bf16.mxu0 0
  %1354 = vmatpush1.bf16.msra.mxu0 0
  %1355 = vmatprep.subr.bf16.mxu0 0
  %1356 = vmatpush1.bf16.msra.mxu0 0
  %1357 = vmatprep.subr.bf16.mxu0 0
  %1358 = vmatpush1.bf16.msra.mxu0 0
  %1359 = vmatprep.subr.bf16.mxu0 0
  %1360 = vmatpush1.bf16.msra.mxu0 0
  %1361 = vmatprep.subr.bf16.mxu0 0
  %1362 = vmatpush1.bf16.msra.mxu0 0
  %1363 = vmatprep.subr.bf16.mxu0 0
  %1364 = vmatpush1.bf16.msra.mxu0 0
  %1365 = vmatprep.subr.bf16.mxu0 0
  %1366 = vmatpush1.bf16.msra.mxu0 0
  %1367 = vmatprep.subr.bf16.mxu0 0
  %1368 = vmatpush1.bf16.msra.mxu0 0
  %1369 = vmatprep.subr.bf16.mxu0 0
  %1370 = vmatpush1.bf16.msra.mxu0 0
  %1371 = vmatprep.mubr.bf16.mxu0 0
  %1372 = vmatmul.mubr.bf16.gmra.mrb[0].mxu0 %v1328
  %v1373 = vpop.f32.mrb[0].mxu0
  %v1374 = vadd.f32 0.0, %v1373
  %v1375 = vpop.f32.mrb[0].mxu0
  %v1376 = vadd.f32 0.0, %v1375
  %v1377 = vpop.f32.mrb[0].mxu0
  %v1378 = vpop.f32.mrb[0].mxu0
  %1379 = vdwg.mxu0
  %1380 = vmatprep.subr.bf16.mxu0 0
  %1381 = vmatpush1.bf16.msra.mxu0 %v1337
  %1382 = vmatprep.subr.bf16.mxu0 0
  %1383 = vmatpush1.bf16.msra.mxu0 0
  %1384 = vmatprep.subr.bf16.mxu0 0
  %1385 = vmatpush1.bf16.msra.mxu0 0
  %1386 = vmatprep.subr.bf16.mxu0 0
  %1387 = vmatpush1.bf16.msra.mxu0 0
  %1388 = vmatprep.subr.bf16.mxu0 0
  %1389 = vmatpush1.bf16.msra.mxu0 0
  %1390 = vmatprep.subr.bf16.mxu0 0
  %1391 = vmatpush1.bf16.msra.mxu0 0
  %1392 = vmatprep.subr.bf16.mxu0 0
  %1393 = vmatpush1.bf16.msra.mxu0 0
  %1394 = vmatprep.subr.bf16.mxu0 0
  %1395 = vmatpush1.bf16.msra.mxu0 0
  %1396 = vmatprep.subr.bf16.mxu0 0
  %1397 = vmatpush1.bf16.msra.mxu0 0
  %1398 = vmatprep.subr.bf16.mxu0 0
  %1399 = vmatpush1.bf16.msra.mxu0 0
  %1400 = vmatprep.subr.bf16.mxu0 0
  %1401 = vmatpush1.bf16.msra.mxu0 0
  %1402 = vmatprep.subr.bf16.mxu0 0
  %1403 = vmatpush1.bf16.msra.mxu0 0
  %1404 = vmatprep.subr.bf16.mxu0 0
  %1405 = vmatpush1.bf16.msra.mxu0 0
  %1406 = vmatprep.subr.bf16.mxu0 0
  %1407 = vmatpush1.bf16.msra.mxu0 0
  %1408 = vmatprep.subr.bf16.mxu0 0
  %1409 = vmatpush1.bf16.msra.mxu0 0
  %1410 = vmatprep.subr.bf16.mxu0 0
  %1411 = vmatpush1.bf16.msra.mxu0 0
  %1412 = vmatprep.mubr.bf16.mxu0 0
  %1413 = vmatmul.mubr.bf16.gmra.mrb[0].mxu0 %v1328
  %v1414 = vpop.f32.mrb[0].mxu0
  %v1415 = vadd.f32 0.0, %v1414
  %v1416 = vpop.f32.mrb[0].mxu0
  %v1417 = vpop.f32.mrb[0].mxu0
  %v1418 = vpop.f32.mrb[0].mxu0
  %1419 = vdwg.mxu0
  %v1420 = vadd.f32 %v1268, %v1374
  %v1421 = vadd.f32 %v1270, %v1376
  %v1422 = vadd.f32 %v1309, %v1415
  %s1423 = scalar_lea.vmem %s3, 12
  %v1424 = vld [vmem:[%s1423] sm:$0xf]
  %1425 = vrot.lane.b32.xlu0 %v1100, 1
  %v1426 = vpop.permute.xlu0 %1425
  %1427 = vrot.lane.b32.xlu0 %v1101, 1
  %v1428 = vpop.permute.xlu0 %1427
  %1429 = vrot.lane.b32.xlu0 %v1102, 1
  %v1430 = vpop.permute.xlu0 %1429
  %1431 = vrot.lane.b32.xlu0 %v1103, 1
  %v1432 = vpop.permute.xlu0 %1431
  %v1433 = vsel %vm379, %v1426, %v1428
  %v1434 = vsel %vm379, %v1428, %v1430
  %v1435 = vsel %vm379, %v1430, %v1432
  %v1437 = vsel %vm1115, %v1424, 0
  %v1440 = vsel %vm1119, %v1433, 0
  %v1443 = vsel %vm1119, %v1434, 0
  %v1446 = vsel %vm1119, %v1435, 0
  %1448 = vmatprep.subr.bf16.mxu0 %v1443
  %1449 = vmatpush1.bf16.msra.mxu0 %v1440
  %1450 = vmatprep.subr.bf16.mxu0 0
  %1451 = vmatpush1.bf16.msra.mxu0 0
  %1452 = vmatprep.subr.bf16.mxu0 0
  %1453 = vmatpush1.bf16.msra.mxu0 0
  %1454 = vmatprep.subr.bf16.mxu0 0
  %1455 = vmatpush1.bf16.msra.mxu0 0
  %1456 = vmatprep.subr.bf16.mxu0 0
  %1457 = vmatpush1.bf16.msra.mxu0 0
  %1458 = vmatprep.subr.bf16.mxu0 0
  %1459 = vmatpush1.bf16.msra.mxu0 0
  %1460 = vmatprep.subr.bf16.mxu0 0
  %1461 = vmatpush1.bf16.msra.mxu0 0
  %1462 = vmatprep.subr.bf16.mxu0 0
  %1463 = vmatpush1.bf16.msra.mxu0 0
  %1464 = vmatprep.subr.bf16.mxu0 0
  %1465 = vmatpush1.bf16.msra.mxu0 0
  %1466 = vmatprep.subr.bf16.mxu0 0
  %1467 = vmatpush1.bf16.msra.mxu0 0
  %1468 = vmatprep.subr.bf16.mxu0 0
  %1469 = vmatpush1.bf16.msra.mxu0 0
  %1470 = vmatprep.subr.bf16.mxu0 0
  %1471 = vmatpush1.bf16.msra.mxu0 0
  %1472 = vmatprep.subr.bf16.mxu0 0
  %1473 = vmatpush1.bf16.msra.mxu0 0
  %1474 = vmatprep.subr.bf16.mxu0 0
  %1475 = vmatpush1.bf16.msra.mxu0 0
  %1476 = vmatprep.subr.bf16.mxu0 0
  %1477 = vmatpush1.bf16.msra.mxu0 0
  %1478 = vmatprep.subr.bf16.mxu0 0
  %1479 = vmatpush1.bf16.msra.mxu0 0
  %1480 = vmatprep.mubr.bf16.mxu0 0
  %1481 = vmatmul.mubr.bf16.gmra.mrb[0].mxu0 %v1437
  %v1482 = vpop.f32.mrb[0].mxu0
  %v1483 = vadd.f32 0.0, %v1482
  %v1484 = vpop.f32.mrb[0].mxu0
  %v1485 = vadd.f32 0.0, %v1484
  %v1486 = vpop.f32.mrb[0].mxu0
  %v1487 = vpop.f32.mrb[0].mxu0
  %1488 = vdwg.mxu0
  %1489 = vmatprep.subr.bf16.mxu0 0
  %1490 = vmatpush1.bf16.msra.mxu0 %v1446
  %1491 = vmatprep.subr.bf16.mxu0 0
  %1492 = vmatpush1.bf16.msra.mxu0 0
  %1493 = vmatprep.subr.bf16.mxu0 0
  %1494 = vmatpush1.bf16.msra.mxu0 0
  %1495 = vmatprep.subr.bf16.mxu0 0
  %1496 = vmatpush1.bf16.msra.mxu0 0
  %1497 = vmatprep.subr.bf16.mxu0 0
  %1498 = vmatpush1.bf16.msra.mxu0 0
  %1499 = vmatprep.subr.bf16.mxu0 0
  %1500 = vmatpush1.bf16.msra.mxu0 0
  %1501 = vmatprep.subr.bf16.mxu0 0
  %1502 = vmatpush1.bf16.msra.mxu0 0
  %1503 = vmatprep.subr.bf16.mxu0 0
  %1504 = vmatpush1.bf16.msra.mxu0 0
  %1505 = vmatprep.subr.bf16.mxu0 0
  %1506 = vmatpush1.bf16.msra.mxu0 0
  %1507 = vmatprep.subr.bf16.mxu0 0
  %1508 = vmatpush1.bf16.msra.mxu0 0
  %1509 = vmatprep.subr.bf16.mxu0 0
  %1510 = vmatpush1.bf16.msra.mxu0 0
  %1511 = vmatprep.subr.bf16.mxu0 0
  %1512 = vmatpush1.bf16.msra.mxu0 0
  %1513 = vmatprep.subr.bf16.mxu0 0
  %1514 = vmatpush1.bf16.msra.mxu0 0
  %1515 = vmatprep.subr.bf16.mxu0 0
  %1516 = vmatpush1.bf16.msra.mxu0 0
  %1517 = vmatprep.subr.bf16.mxu0 0
  %1518 = vmatpush1.bf16.msra.mxu0 0
  %1519 = vmatprep.subr.bf16.mxu0 0
  %1520 = vmatpush1.bf16.msra.mxu0 0
  %1521 = vmatprep.mubr.bf16.mxu0 0
  %1522 = vmatmul.mubr.bf16.gmra.mrb[0].mxu0 %v1437
  %v1523 = vpop.f32.mrb[0].mxu0
  %v1524 = vadd.f32 0.0, %v1523
  %v1525 = vpop.f32.mrb[0].mxu0
  %v1526 = vpop.f32.mrb[0].mxu0
  %v1527 = vpop.f32.mrb[0].mxu0
  %1528 = vdwg.mxu0
  %v1529 = vadd.f32 %v1420, %v1483
  %v1530 = vadd.f32 %v1421, %v1485
  %v1531 = vadd.f32 %v1422, %v1524
  %s1532 = scalar_lea.vmem %s3, 16
  %v1533 = vld [vmem:[%s1532] sm:$0xf]
  %v1534 = vld [vmem:[#allocation2 + $0x4] sm:$0xff]
  %v1535 = vld [vmem:[#allocation2 + $0xc] sm:$0xf]
  %v1538 = vunpack.c.l.b16 %v1534
  %v1539 = vunpack.c.h.b16 %v1534
  %v1540 = vunpack.c.l.b16 %v1535
  %v1541 = vpack.c.b16 %v1538, %v1538
  %v1542 = vpack.c.b16 %v1539, %v1539
  %v1543 = vpack.c.b16 %v1540, %v1540
  %v1545 = vsel %vm1115, %v1533, 0
  %v1548 = vsel %vm1119, %v1541, 0
  %v1551 = vsel %vm1119, %v1542, 0
  %v1554 = vsel %vm1119, %v1543, 0
  %1556 = vmatprep.subr.bf16.mxu0 %v1551
  %1557 = vmatpush1.bf16.msra.mxu0 %v1548
  %1558 = vmatprep.subr.bf16.mxu0 0
  %1559 = vmatpush1.bf16.msra.mxu0 0
  %1560 = vmatprep.subr.bf16.mxu0 0
  %1561 = vmatpush1.bf16.msra.mxu0 0
  %1562 = vmatprep.subr.bf16.mxu0 0
  %1563 = vmatpush1.bf16.msra.mxu0 0
  %1564 = vmatprep.subr.bf16.mxu0 0
  %1565 = vmatpush1.bf16.msra.mxu0 0
  %1566 = vmatprep.subr.bf16.mxu0 0
  %1567 = vmatpush1.bf16.msra.mxu0 0
  %1568 = vmatprep.subr.bf16.mxu0 0
  %1569 = vmatpush1.bf16.msra.mxu0 0
  %1570 = vmatprep.subr.bf16.mxu0 0
  %1571 = vmatpush1.bf16.msra.mxu0 0
  %1572 = vmatprep.subr.bf16.mxu0 0
  %1573 = vmatpush1.bf16.msra.mxu0 0
  %1574 = vmatprep.subr.bf16.mxu0 0
  %1575 = vmatpush1.bf16.msra.mxu0 0
  %1576 = vmatprep.subr.bf16.mxu0 0
  %1577 = vmatpush1.bf16.msra.mxu0 0
  %1578 = vmatprep.subr.bf16.mxu0 0
  %1579 = vmatpush1.bf16.msra.mxu0 0
  %1580 = vmatprep.subr.bf16.mxu0 0
  %1581 = vmatpush1.bf16.msra.mxu0 0
  %1582 = vmatprep.subr.bf16.mxu0 0
  %1583 = vmatpush1.bf16.msra.mxu0 0
  %1584 = vmatprep.subr.bf16.mxu0 0
  %1585 = vmatpush1.bf16.msra.mxu0 0
  %1586 = vmatprep.subr.bf16.mxu0 0
  %1587 = vmatpush1.bf16.msra.mxu0 0
  %1588 = vmatprep.mubr.bf16.mxu0 0
  %1589 = vmatmul.mubr.bf16.gmra.mrb[0].mxu0 %v1545
  %v1590 = vpop.f32.mrb[0].mxu0
  %v1591 = vadd.f32 0.0, %v1590
  %v1592 = vpop.f32.mrb[0].mxu0
  %v1593 = vadd.f32 0.0, %v1592
  %v1594 = vpop.f32.mrb[0].mxu0
  %v1595 = vpop.f32.mrb[0].mxu0
  %1596 = vdwg.mxu0
  %1597 = vmatprep.subr.bf16.mxu0 0
  %1598 = vmatpush1.bf16.msra.mxu0 %v1554
  %1599 = vmatprep.subr.bf16.mxu0 0
  %1600 = vmatpush1.bf16.msra.mxu0 0
  %1601 = vmatprep.subr.bf16.mxu0 0
  %1602 = vmatpush1.bf16.msra.mxu0 0
  %1603 = vmatprep.subr.bf16.mxu0 0
  %1604 = vmatpush1.bf16.msra.mxu0 0
  %1605 = vmatprep.subr.bf16.mxu0 0
  %1606 = vmatpush1.bf16.msra.mxu0 0
  %1607 = vmatprep.subr.bf16.mxu0 0
  %1608 = vmatpush1.bf16.msra.mxu0 0
  %1609 = vmatprep.subr.bf16.mxu0 0
  %1610 = vmatpush1.bf16.msra.mxu0 0
  %1611 = vmatprep.subr.bf16.mxu0 0
  %1612 = vmatpush1.bf16.msra.mxu0 0
  %1613 = vmatprep.subr.bf16.mxu0 0
  %1614 = vmatpush1.bf16.msra.mxu0 0
  %1615 = vmatprep.subr.bf16.mxu0 0
  %1616 = vmatpush1.bf16.msra.mxu0 0
  %1617 = vmatprep.subr.bf16.mxu0 0
  %1618 = vmatpush1.bf16.msra.mxu0 0
  %1619 = vmatprep.subr.bf16.mxu0 0
  %1620 = vmatpush1.bf16.msra.mxu0 0
  %1621 = vmatprep.subr.bf16.mxu0 0
  %1622 = vmatpush1.bf16.msra.mxu0 0
  %1623 = vmatprep.subr.bf16.mxu0 0
  %1624 = vmatpush1.bf16.msra.mxu0 0
  %1625 = vmatprep.subr.bf16.mxu0 0
  %1626 = vmatpush1.bf16.msra.mxu0 0
  %1627 = vmatprep.subr.bf16.mxu0 0
  %1628 = vmatpush1.bf16.msra.mxu0 0
  %1629 = vmatprep.mubr.bf16.mxu0 0
  %1630 = vmatmul.mubr.bf16.gmra.mrb[0].mxu0 %v1545
  %v1631 = vpop.f32.mrb[0].mxu0
  %v1632 = vadd.f32 0.0, %v1631
  %v1633 = vpop.f32.mrb[0].mxu0
  %v1634 = vpop.f32.mrb[0].mxu0
  %v1635 = vpop.f32.mrb[0].mxu0
  %1636 = vdwg.mxu0
  %v1637 = vadd.f32 %v1529, %v1591
  %v1638 = vadd.f32 %v1530, %v1593
  %v1639 = vadd.f32 %v1531, %v1632
  %s1640 = scalar_lea.vmem %s3, 20
  %v1641 = vld [vmem:[%s1640] sm:$0xf]
  %v1642 = vld [vmem:[#allocation2 + $0x4] sm:$0xff]
  %v1643 = vld [vmem:[#allocation2 + $0xc] sm:$0xff]
  %v1646 = vunpack.c.l.b16 %v1642
  %v1647 = vunpack.c.h.b16 %v1642
  %v1648 = vunpack.c.l.b16 %v1643
  %v1649 = vunpack.c.h.b16 %v1643
  %v1650 = vpack.c.b16 %v1646, %v1646
  %v1651 = vpack.c.b16 %v1647, %v1647
  %v1652 = vpack.c.b16 %v1648, %v1648
  %v1653 = vpack.c.b16 %v1649, %v1649
  %1654 = vrot.lane.b32.xlu0 %v1650, 127
  %v1655 = vpop.permute.xlu0 %1654
  %1656 = vrot.lane.b32.xlu0 %v1651, 127
  %v1657 = vpop.permute.xlu0 %1656
  %1658 = vrot.lane.b32.xlu0 %v1652, 127
  %v1659 = vpop.permute.xlu0 %1658
  %1660 = vrot.lane.b32.xlu0 %v1653, 127
  %v1661 = vpop.permute.xlu0 %1660
  %v1662 = vsel %vm595, %v1655, %v1657
  %v1663 = vsel %vm595, %v1657, %v1659
  %v1664 = vsel %vm595, %v1659, %v1661
  %v1666 = vsel %vm1115, %v1641, 0
  %v1669 = vsel %vm1119, %v1662, 0
  %v1672 = vsel %vm1119, %v1663, 0
  %v1675 = vsel %vm1119, %v1664, 0
  %1677 = vmatprep.subr.bf16.mxu0 %v1672
  %1678 = vmatpush1.bf16.msra.mxu0 %v1669
  %1679 = vmatprep.subr.bf16.mxu0 0
  %1680 = vmatpush1.bf16.msra.mxu0 0
  %1681 = vmatprep.subr.bf16.mxu0 0
  %1682 = vmatpush1.bf16.msra.mxu0 0
  %1683 = vmatprep.subr.bf16.mxu0 0
  %1684 = vmatpush1.bf16.msra.mxu0 0
  %1685 = vmatprep.subr.bf16.mxu0 0
  %1686 = vmatpush1.bf16.msra.mxu0 0
  %1687 = vmatprep.subr.bf16.mxu0 0
  %1688 = vmatpush1.bf16.msra.mxu0 0
  %1689 = vmatprep.subr.bf16.mxu0 0
  %1690 = vmatpush1.bf16.msra.mxu0 0
  %1691 = vmatprep.subr.bf16.mxu0 0
  %1692 = vmatpush1.bf16.msra.mxu0 0
  %1693 = vmatprep.subr.bf16.mxu0 0
  %1694 = vmatpush1.bf16.msra.mxu0 0
  %1695 = vmatprep.subr.bf16.mxu0 0
  %1696 = vmatpush1.bf16.msra.mxu0 0
  %1697 = vmatprep.subr.bf16.mxu0 0
  %1698 = vmatpush1.bf16.msra.mxu0 0
  %1699 = vmatprep.subr.bf16.mxu0 0
  %1700 = vmatpush1.bf16.msra.mxu0 0
  %1701 = vmatprep.subr.bf16.mxu0 0
  %1702 = vmatpush1.bf16.msra.mxu0 0
  %1703 = vmatprep.subr.bf16.mxu0 0
  %1704 = vmatpush1.bf16.msra.mxu0 0
  %1705 = vmatprep.subr.bf16.mxu0 0
  %1706 = vmatpush1.bf16.msra.mxu0 0
  %1707 = vmatprep.subr.bf16.mxu0 0
  %1708 = vmatpush1.bf16.msra.mxu0 0
  %1709 = vmatprep.mubr.bf16.mxu0 0
  %1710 = vmatmul.mubr.bf16.gmra.mrb[0].mxu0 %v1666
  %v1711 = vpop.f32.mrb[0].mxu0
  %v1712 = vadd.f32 0.0, %v1711
  %v1713 = vpop.f32.mrb[0].mxu0
  %v1714 = vadd.f32 0.0, %v1713
  %v1715 = vpop.f32.mrb[0].mxu0
  %v1716 = vpop.f32.mrb[0].mxu0
  %1717 = vdwg.mxu0
  %1718 = vmatprep.subr.bf16.mxu0 0
  %1719 = vmatpush1.bf16.msra.mxu0 %v1675
  %1720 = vmatprep.subr.bf16.mxu0 0
  %1721 = vmatpush1.bf16.msra.mxu0 0
  %1722 = vmatprep.subr.bf16.mxu0 0
  %1723 = vmatpush1.bf16.msra.mxu0 0
  %1724 = vmatprep.subr.bf16.mxu0 0
  %1725 = vmatpush1.bf16.msra.mxu0 0
  %1726 = vmatprep.subr.bf16.mxu0 0
  %1727 = vmatpush1.bf16.msra.mxu0 0
  %1728 = vmatprep.subr.bf16.mxu0 0
  %1729 = vmatpush1.bf16.msra.mxu0 0
  %1730 = vmatprep.subr.bf16.mxu0 0
  %1731 = vmatpush1.bf16.msra.mxu0 0
  %1732 = vmatprep.subr.bf16.mxu0 0
  %1733 = vmatpush1.bf16.msra.mxu0 0
  %1734 = vmatprep.subr.bf16.mxu0 0
  %1735 = vmatpush1.bf16.msra.mxu0 0
  %1736 = vmatprep.subr.bf16.mxu0 0
  %1737 = vmatpush1.bf16.msra.mxu0 0
  %1738 = vmatprep.subr.bf16.mxu0 0
  %1739 = vmatpush1.bf16.msra.mxu0 0
  %1740 = vmatprep.subr.bf16.mxu0 0
  %1741 = vmatpush1.bf16.msra.mxu0 0
  %1742 = vmatprep.subr.bf16.mxu0 0
  %1743 = vmatpush1.bf16.msra.mxu0 0
  %1744 = vmatprep.subr.bf16.mxu0 0
  %1745 = vmatpush1.bf16.msra.mxu0 0
  %1746 = vmatprep.subr.bf16.mxu0 0
  %1747 = vmatpush1.bf16.msra.mxu0 0
  %1748 = vmatprep.subr.bf16.mxu0 0
  %1749 = vmatpush1.bf16.msra.mxu0 0
  %1750 = vmatprep.mubr.bf16.mxu0 0
  %1751 = vmatmul.mubr.bf16.gmra.mrb[0].mxu0 %v1666
  %v1752 = vpop.f32.mrb[0].mxu0
  %v1753 = vadd.f32 0.0, %v1752
  %v1754 = vpop.f32.mrb[0].mxu0
  %v1755 = vpop.f32.mrb[0].mxu0
  %v1756 = vpop.f32.mrb[0].mxu0
  %1757 = vdwg.mxu0
  %v1758 = vadd.f32 %v1637, %v1712
  %v1759 = vadd.f32 %v1638, %v1714
  %v1760 = vadd.f32 %v1639, %v1753
  %s1761 = scalar_lea.vmem %s3, 24
  %v1762 = vld [vmem:[%s1761] sm:$0xf]
  %1763 = vrot.lane.b32.xlu0 %v1650, 111
  %v1764 = vpop.permute.xlu0 %1763
  %1765 = vrot.lane.b32.xlu0 %v1651, 111
  %v1766 = vpop.permute.xlu0 %1765
  %1767 = vrot.lane.b32.xlu0 %v1652, 111
  %v1768 = vpop.permute.xlu0 %1767
  %1769 = vrot.lane.b32.xlu0 %v1653, 111
  %v1770 = vpop.permute.xlu0 %1769
  %v1771 = vsel %vm705, %v1764, %v1766
  %v1772 = vsel %vm705, %v1766, %v1768
  %v1773 = vsel %vm705, %v1768, %v1770
  %v1775 = vsel %vm1115, %v1762, 0
  %v1778 = vsel %vm1119, %v1771, 0
  %v1781 = vsel %vm1119, %v1772, 0
  %v1784 = vsel %vm1119, %v1773, 0
  %1786 = vmatprep.subr.bf16.mxu0 %v1781
  %1787 = vmatpush1.bf16.msra.mxu0 %v1778
  %1788 = vmatprep.subr.bf16.mxu0 0
  %1789 = vmatpush1.bf16.msra.mxu0 0
  %1790 = vmatprep.subr.bf16.mxu0 0
  %1791 = vmatpush1.bf16.msra.mxu0 0
  %1792 = vmatprep.subr.bf16.mxu0 0
  %1793 = vmatpush1.bf16.msra.mxu0 0
  %1794 = vmatprep.subr.bf16.mxu0 0
  %1795 = vmatpush1.bf16.msra.mxu0 0
  %1796 = vmatprep.subr.bf16.mxu0 0
  %1797 = vmatpush1.bf16.msra.mxu0 0
  %1798 = vmatprep.subr.bf16.mxu0 0
  %1799 = vmatpush1.bf16.msra.mxu0 0
  %1800 = vmatprep.subr.bf16.mxu0 0
  %1801 = vmatpush1.bf16.msra.mxu0 0
  %1802 = vmatprep.subr.bf16.mxu0 0
  %1803 = vmatpush1.bf16.msra.mxu0 0
  %1804 = vmatprep.subr.bf16.mxu0 0
  %1805 = vmatpush1.bf16.msra.mxu0 0
  %1806 = vmatprep.subr.bf16.mxu0 0
  %1807 = vmatpush1.bf16.msra.mxu0 0
  %1808 = vmatprep.subr.bf16.mxu0 0
  %1809 = vmatpush1.bf16.msra.mxu0 0
  %1810 = vmatprep.subr.bf16.mxu0 0
  %1811 = vmatpush1.bf16.msra.mxu0 0
  %1812 = vmatprep.subr.bf16.mxu0 0
  %1813 = vmatpush1.bf16.msra.mxu0 0
  %1814 = vmatprep.subr.bf16.mxu0 0
  %1815 = vmatpush1.bf16.msra.mxu0 0
  %1816 = vmatprep.subr.bf16.mxu0 0
  %1817 = vmatpush1.bf16.msra.mxu0 0
  %1818 = vmatprep.mubr.bf16.mxu0 0
  %1819 = vmatmul.mubr.bf16.gmra.mrb[0].mxu0 %v1775
  %v1820 = vpop.f32.mrb[0].mxu0
  %v1821 = vadd.f32 0.0, %v1820
  %v1822 = vpop.f32.mrb[0].mxu0
  %v1823 = vadd.f32 0.0, %v1822
  %v1824 = vpop.f32.mrb[0].mxu0
  %v1825 = vpop.f32.mrb[0].mxu0
  %1826 = vdwg.mxu0
  %1827 = vmatprep.subr.bf16.mxu0 0
  %1828 = vmatpush1.bf16.msra.mxu0 %v1784
  %1829 = vmatprep.subr.bf16.mxu0 0
  %1830 = vmatpush1.bf16.msra.mxu0 0
  %1831 = vmatprep.subr.bf16.mxu0 0
  %1832 = vmatpush1.bf16.msra.mxu0 0
  %1833 = vmatprep.subr.bf16.mxu0 0
  %1834 = vmatpush1.bf16.msra.mxu0 0
  %1835 = vmatprep.subr.bf16.mxu0 0
  %1836 = vmatpush1.bf16.msra.mxu0 0
  %1837 = vmatprep.subr.bf16.mxu0 0
  %1838 = vmatpush1.bf16.msra.mxu0 0
  %1839 = vmatprep.subr.bf16.mxu0 0
  %1840 = vmatpush1.bf16.msra.mxu0 0
  %1841 = vmatprep.subr.bf16.mxu0 0
  %1842 = vmatpush1.bf16.msra.mxu0 0
  %1843 = vmatprep.subr.bf16.mxu0 0
  %1844 = vmatpush1.bf16.msra.mxu0 0
  %1845 = vmatprep.subr.bf16.mxu0 0
  %1846 = vmatpush1.bf16.msra.mxu0 0
  %1847 = vmatprep.subr.bf16.mxu0 0
  %1848 = vmatpush1.bf16.msra.mxu0 0
  %1849 = vmatprep.subr.bf16.mxu0 0
  %1850 = vmatpush1.bf16.msra.mxu0 0
  %1851 = vmatprep.subr.bf16.mxu0 0
  %1852 = vmatpush1.bf16.msra.mxu0 0
  %1853 = vmatprep.subr.bf16.mxu0 0
  %1854 = vmatpush1.bf16.msra.mxu0 0
  %1855 = vmatprep.subr.bf16.mxu0 0
  %1856 = vmatpush1.bf16.msra.mxu0 0
  %1857 = vmatprep.subr.bf16.mxu0 0
  %1858 = vmatpush1.bf16.msra.mxu0 0
  %1859 = vmatprep.mubr.bf16.mxu0 0
  %1860 = vmatmul.mubr.bf16.gmra.mrb[0].mxu0 %v1775
  %v1861 = vpop.f32.mrb[0].mxu0
  %v1862 = vadd.f32 0.0, %v1861
  %v1863 = vpop.f32.mrb[0].mxu0
  %v1864 = vpop.f32.mrb[0].mxu0
  %v1865 = vpop.f32.mrb[0].mxu0
  %1866 = vdwg.mxu0
  %v1867 = vadd.f32 %v1758, %v1821
  %v1868 = vadd.f32 %v1759, %v1823
  %v1869 = vadd.f32 %v1760, %v1862
  %s1870 = scalar_lea.vmem %s3, 28
  %v1871 = vld [vmem:[%s1870] sm:$0xf]
  %1872 = vrot.lane.b32.xlu0 %v1650, 110
  %v1873 = vpop.permute.xlu0 %1872
  %1874 = vrot.lane.b32.xlu0 %v1651, 110
  %v1875 = vpop.permute.xlu0 %1874
  %1876 = vrot.lane.b32.xlu0 %v1652, 110
  %v1877 = vpop.permute.xlu0 %1876
  %1878 = vrot.lane.b32.xlu0 %v1653, 110
  %v1879 = vpop.permute.xlu0 %1878
  %v1880 = vsel %vm815, %v1873, %v1875
  %v1881 = vsel %vm815, %v1875, %v1877
  %v1882 = vsel %vm815, %v1877, %v1879
  %v1884 = vsel %vm1115, %v1871, 0
  %v1887 = vsel %vm1119, %v1880, 0
  %v1890 = vsel %vm1119, %v1881, 0
  %v1893 = vsel %vm1119, %v1882, 0
  %1895 = vmatprep.subr.bf16.mxu0 %v1890
  %1896 = vmatpush1.bf16.msra.mxu0 %v1887
  %1897 = vmatprep.subr.bf16.mxu0 0
  %1898 = vmatpush1.bf16.msra.mxu0 0
  %1899 = vmatprep.subr.bf16.mxu0 0
  %1900 = vmatpush1.bf16.msra.mxu0 0
  %1901 = vmatprep.subr.bf16.mxu0 0
  %1902 = vmatpush1.bf16.msra.mxu0 0
  %1903 = vmatprep.subr.bf16.mxu0 0
  %1904 = vmatpush1.bf16.msra.mxu0 0
  %1905 = vmatprep.subr.bf16.mxu0 0
  %1906 = vmatpush1.bf16.msra.mxu0 0
  %1907 = vmatprep.subr.bf16.mxu0 0
  %1908 = vmatpush1.bf16.msra.mxu0 0
  %1909 = vmatprep.subr.bf16.mxu0 0
  %1910 = vmatpush1.bf16.msra.mxu0 0
  %1911 = vmatprep.subr.bf16.mxu0 0
  %1912 = vmatpush1.bf16.msra.mxu0 0
  %1913 = vmatprep.subr.bf16.mxu0 0
  %1914 = vmatpush1.bf16.msra.mxu0 0
  %1915 = vmatprep.subr.bf16.mxu0 0
  %1916 = vmatpush1.bf16.msra.mxu0 0
  %1917 = vmatprep.subr.bf16.mxu0 0
  %1918 = vmatpush1.bf16.msra.mxu0 0
  %1919 = vmatprep.subr.bf16.mxu0 0
  %1920 = vmatpush1.bf16.msra.mxu0 0
  %1921 = vmatprep.subr.bf16.mxu0 0
  %1922 = vmatpush1.bf16.msra.mxu0 0
  %1923 = vmatprep.subr.bf16.mxu0 0
  %1924 = vmatpush1.bf16.msra.mxu0 0
  %1925 = vmatprep.subr.bf16.mxu0 0
  %1926 = vmatpush1.bf16.msra.mxu0 0
  %1927 = vmatprep.mubr.bf16.mxu0 0
  %1928 = vmatmul.mubr.bf16.gmra.mrb[0].mxu0 %v1884
  %v1929 = vpop.f32.mrb[0].mxu0
  %v1930 = vadd.f32 0.0, %v1929
  %v1931 = vpop.f32.mrb[0].mxu0
  %v1932 = vadd.f32 0.0, %v1931
  %v1933 = vpop.f32.mrb[0].mxu0
  %v1934 = vpop.f32.mrb[0].mxu0
  %1935 = vdwg.mxu0
  %1936 = vmatprep.subr.bf16.mxu0 0
  %1937 = vmatpush1.bf16.msra.mxu0 %v1893
  %1938 = vmatprep.subr.bf16.mxu0 0
  %1939 = vmatpush1.bf16.msra.mxu0 0
  %1940 = vmatprep.subr.bf16.mxu0 0
  %1941 = vmatpush1.bf16.msra.mxu0 0
  %1942 = vmatprep.subr.bf16.mxu0 0
  %1943 = vmatpush1.bf16.msra.mxu0 0
  %1944 = vmatprep.subr.bf16.mxu0 0
  %1945 = vmatpush1.bf16.msra.mxu0 0
  %1946 = vmatprep.subr.bf16.mxu0 0
  %1947 = vmatpush1.bf16.msra.mxu0 0
  %1948 = vmatprep.subr.bf16.mxu0 0
  %1949 = vmatpush1.bf16.msra.mxu0 0
  %1950 = vmatprep.subr.bf16.mxu0 0
  %1951 = vmatpush1.bf16.msra.mxu0 0
  %1952 = vmatprep.subr.bf16.mxu0 0
  %1953 = vmatpush1.bf16.msra.mxu0 0
  %1954 = vmatprep.subr.bf16.mxu0 0
  %1955 = vmatpush1.bf16.msra.mxu0 0
  %1956 = vmatprep.subr.bf16.mxu0 0
  %1957 = vmatpush1.bf16.msra.mxu0 0
  %1958 = vmatprep.subr.bf16.mxu0 0
  %1959 = vmatpush1.bf16.msra.mxu0 0
  %1960 = vmatprep.subr.bf16.mxu0 0
  %1961 = vmatpush1.bf16.msra.mxu0 0
  %1962 = vmatprep.subr.bf16.mxu0 0
  %1963 = vmatpush1.bf16.msra.mxu0 0
  %1964 = vmatprep.subr.bf16.mxu0 0
  %1965 = vmatpush1.bf16.msra.mxu0 0
  %1966 = vmatprep.subr.bf16.mxu0 0
  %1967 = vmatpush1.bf16.msra.mxu0 0
  %1968 = vmatprep.mubr.bf16.mxu0 0
  %1969 = vmatmul.mubr.bf16.gmra.mrb[0].mxu0 %v1884
  %v1970 = vpop.f32.mrb[0].mxu0
  %v1971 = vadd.f32 0.0, %v1970
  %v1972 = vpop.f32.mrb[0].mxu0
  %v1973 = vpop.f32.mrb[0].mxu0
  %v1974 = vpop.f32.mrb[0].mxu0
  %1975 = vdwg.mxu0
  %v1976 = vadd.f32 %v1867, %v1930
  %v1977 = vadd.f32 %v1868, %v1932
  %v1978 = vadd.f32 %v1869, %v1971
  %s1979 = scalar_lea.vmem %s3, 32
  %v1980 = vld [vmem:[%s1979] sm:$0xf]
  %1981 = vrot.lane.b32.xlu0 %v1650, 109
  %v1982 = vpop.permute.xlu0 %1981
  %1983 = vrot.lane.b32.xlu0 %v1651, 109
  %v1984 = vpop.permute.xlu0 %1983
  %1985 = vrot.lane.b32.xlu0 %v1652, 109
  %v1986 = vpop.permute.xlu0 %1985
  %1987 = vrot.lane.b32.xlu0 %v1653, 109
  %v1988 = vpop.permute.xlu0 %1987
  %v1989 = vsel %vm925, %v1982, %v1984
  %v1990 = vsel %vm925, %v1984, %v1986
  %v1991 = vsel %vm925, %v1986, %v1988
  %v1993 = vsel %vm1115, %v1980, 0
  %v1996 = vsel %vm1119, %v1989, 0
  %v1999 = vsel %vm1119, %v1990, 0
  %v2002 = vsel %vm1119, %v1991, 0
  %2004 = vmatprep.subr.bf16.mxu0 %v1999
  %2005 = vmatpush1.bf16.msra.mxu0 %v1996
  %2006 = vmatprep.subr.bf16.mxu0 0
  %2007 = vmatpush1.bf16.msra.mxu0 0
  %2008 = vmatprep.subr.bf16.mxu0 0
  %2009 = vmatpush1.bf16.msra.mxu0 0
  %2010 = vmatprep.subr.bf16.mxu0 0
  %2011 = vmatpush1.bf16.msra.mxu0 0
  %2012 = vmatprep.subr.bf16.mxu0 0
  %2013 = vmatpush1.bf16.msra.mxu0 0
  %2014 = vmatprep.subr.bf16.mxu0 0
  %2015 = vmatpush1.bf16.msra.mxu0 0
  %2016 = vmatprep.subr.bf16.mxu0 0
  %2017 = vmatpush1.bf16.msra.mxu0 0
  %2018 = vmatprep.subr.bf16.mxu0 0
  %2019 = vmatpush1.bf16.msra.mxu0 0
  %2020 = vmatprep.subr.bf16.mxu0 0
  %2021 = vmatpush1.bf16.msra.mxu0 0
  %2022 = vmatprep.subr.bf16.mxu0 0
  %2023 = vmatpush1.bf16.msra.mxu0 0
  %2024 = vmatprep.subr.bf16.mxu0 0
  %2025 = vmatpush1.bf16.msra.mxu0 0
  %2026 = vmatprep.subr.bf16.mxu0 0
  %2027 = vmatpush1.bf16.msra.mxu0 0
  %2028 = vmatprep.subr.bf16.mxu0 0
  %2029 = vmatpush1.bf16.msra.mxu0 0
  %2030 = vmatprep.subr.bf16.mxu0 0
  %2031 = vmatpush1.bf16.msra.mxu0 0
  %2032 = vmatprep.subr.bf16.mxu0 0
  %2033 = vmatpush1.bf16.msra.mxu0 0
  %2034 = vmatprep.subr.bf16.mxu0 0
  %2035 = vmatpush1.bf16.msra.mxu0 0
  %2036 = vmatprep.mubr.bf16.mxu0 0
  %2037 = vmatmul.mubr.bf16.gmra.mrb[0].mxu0 %v1993
  %v2038 = vpop.f32.mrb[0].mxu0
  %v2039 = vadd.f32 0.0, %v2038
  %v2040 = vpop.f32.mrb[0].mxu0
  %v2041 = vadd.f32 0.0, %v2040
  %v2042 = vpop.f32.mrb[0].mxu0
  %v2043 = vpop.f32.mrb[0].mxu0
  %2044 = vdwg.mxu0
  %2045 = vmatprep.subr.bf16.mxu0 0
  %2046 = vmatpush1.bf16.msra.mxu0 %v2002
  %2047 = vmatprep.subr.bf16.mxu0 0
  %2048 = vmatpush1.bf16.msra.mxu0 0
  %2049 = vmatprep.subr.bf16.mxu0 0
  %2050 = vmatpush1.bf16.msra.mxu0 0
  %2051 = vmatprep.subr.bf16.mxu0 0
  %2052 = vmatpush1.bf16.msra.mxu0 0
  %2053 = vmatprep.subr.bf16.mxu0 0
  %2054 = vmatpush1.bf16.msra.mxu0 0
  %2055 = vmatprep.subr.bf16.mxu0 0
  %2056 = vmatpush1.bf16.msra.mxu0 0
  %2057 = vmatprep.subr.bf16.mxu0 0
  %2058 = vmatpush1.bf16.msra.mxu0 0
  %2059 = vmatprep.subr.bf16.mxu0 0
  %2060 = vmatpush1.bf16.msra.mxu0 0
  %2061 = vmatprep.subr.bf16.mxu0 0
  %2062 = vmatpush1.bf16.msra.mxu0 0
  %2063 = vmatprep.subr.bf16.mxu0 0
  %2064 = vmatpush1.bf16.msra.mxu0 0
  %2065 = vmatprep.subr.bf16.mxu0 0
  %2066 = vmatpush1.bf16.msra.mxu0 0
  %2067 = vmatprep.subr.bf16.mxu0 0
  %2068 = vmatpush1.bf16.msra.mxu0 0
  %2069 = vmatprep.subr.bf16.mxu0 0
  %2070 = vmatpush1.bf16.msra.mxu0 0
  %2071 = vmatprep.subr.bf16.mxu0 0
  %2072 = vmatpush1.bf16.msra.mxu0 0
  %2073 = vmatprep.subr.bf16.mxu0 0
  %2074 = vmatpush1.bf16.msra.mxu0 0
  %2075 = vmatprep.subr.bf16.mxu0 0
  %2076 = vmatpush1.bf16.msra.mxu0 0
  %2077 = vmatprep.mubr.bf16.mxu0 0
  %2078 = vmatmul.mubr.bf16.gmra.mrb[0].mxu0 %v1993
  %v2079 = vpop.f32.mrb[0].mxu0
  %v2080 = vadd.f32 0.0, %v2079
  %v2081 = vpop.f32.mrb[0].mxu0
  %v2082 = vpop.f32.mrb[0].mxu0
  %v2083 = vpop.f32.mrb[0].mxu0
  %2084 = vdwg.mxu0
  %v2085 = vadd.f32 %v1976, %v2039
  %v2086 = vadd.f32 %v1977, %v2041
  %v2087 = vadd.f32 %v1978, %v2080
  %v2088 = vld [vmem:[%s4] sm:$0xf]
  %v2090 = vsel %vm59, %v2088, 0
  %2092 = vmatprep.subr.bf16.mxu0 %v488
  %2093 = vmatpush1.bf16.msra.mxu0 %v485
  %2094 = vmatprep.subr.bf16.mxu0 0
  %2095 = vmatpush1.bf16.msra.mxu0 0
  %2096 = vmatprep.subr.bf16.mxu0 0
  %2097 = vmatpush1.bf16.msra.mxu0 0
  %2098 = vmatprep.subr.bf16.mxu0 0
  %2099 = vmatpush1.bf16.msra.mxu0 0
  %2100 = vmatprep.subr.bf16.mxu0 0
  %2101 = vmatpush1.bf16.msra.mxu0 0
  %2102 = vmatprep.subr.bf16.mxu0 0
  %2103 = vmatpush1.bf16.msra.mxu0 0
  %2104 = vmatprep.subr.bf16.mxu0 0
  %2105 = vmatpush1.bf16.msra.mxu0 0
  %2106 = vmatprep.subr.bf16.mxu0 0
  %2107 = vmatpush1.bf16.msra.mxu0 0
  %2108 = vmatprep.subr.bf16.mxu0 0
  %2109 = vmatpush1.bf16.msra.mxu0 0
  %2110 = vmatprep.subr.bf16.mxu0 0
  %2111 = vmatpush1.bf16.msra.mxu0 0
  %2112 = vmatprep.subr.bf16.mxu0 0
  %2113 = vmatpush1.bf16.msra.mxu0 0
  %2114 = vmatprep.subr.bf16.mxu0 0
  %2115 = vmatpush1.bf16.msra.mxu0 0
  %2116 = vmatprep.subr.bf16.mxu0 0
  %2117 = vmatpush1.bf16.msra.mxu0 0
  %2118 = vmatprep.subr.bf16.mxu0 0
  %2119 = vmatpush1.bf16.msra.mxu0 0
  %2120 = vmatprep.subr.bf16.mxu0 0
  %2121 = vmatpush1.bf16.msra.mxu0 0
  %2122 = vmatprep.subr.bf16.mxu0 0
  %2123 = vmatpush1.bf16.msra.mxu0 0
  %2124 = vmatprep.mubr.bf16.mxu0 0
  %2125 = vmatmul.mubr.bf16.gmra.mrb[0].mxu0 %v2090
  %v2126 = vpop.f32.mrb[0].mxu0
  %v2127 = vadd.f32 0.0, %v2126
  %v2128 = vpop.f32.mrb[0].mxu0
  %v2129 = vadd.f32 0.0, %v2128
  %v2130 = vpop.f32.mrb[0].mxu0
  %v2131 = vpop.f32.mrb[0].mxu0
  %2132 = vdwg.mxu0
  %2133 = vmatprep.subr.bf16.mxu0 0
  %2134 = vmatpush1.bf16.msra.mxu0 %v491
  %2135 = vmatprep.subr.bf16.mxu0 0
  %2136 = vmatpush1.bf16.msra.mxu0 0
  %2137 = vmatprep.subr.bf16.mxu0 0
  %2138 = vmatpush1.bf16.msra.mxu0 0
  %2139 = vmatprep.subr.bf16.mxu0 0
  %2140 = vmatpush1.bf16.msra.mxu0 0
  %2141 = vmatprep.subr.bf16.mxu0 0
  %2142 = vmatpush1.bf16.msra.mxu0 0
  %2143 = vmatprep.subr.bf16.mxu0 0
  %2144 = vmatpush1.bf16.msra.mxu0 0
  %2145 = vmatprep.subr.bf16.mxu0 0
  %2146 = vmatpush1.bf16.msra.mxu0 0
  %2147 = vmatprep.subr.bf16.mxu0 0
  %2148 = vmatpush1.bf16.msra.mxu0 0
  %2149 = vmatprep.subr.bf16.mxu0 0
  %2150 = vmatpush1.bf16.msra.mxu0 0
  %2151 = vmatprep.subr.bf16.mxu0 0
  %2152 = vmatpush1.bf16.msra.mxu0 0
  %2153 = vmatprep.subr.bf16.mxu0 0
  %2154 = vmatpush1.bf16.msra.mxu0 0
  %2155 = vmatprep.subr.bf16.mxu0 0
  %2156 = vmatpush1.bf16.msra.mxu0 0
  %2157 = vmatprep.subr.bf16.mxu0 0
  %2158 = vmatpush1.bf16.msra.mxu0 0
  %2159 = vmatprep.subr.bf16.mxu0 0
  %2160 = vmatpush1.bf16.msra.mxu0 0
  %2161 = vmatprep.subr.bf16.mxu0 0
  %2162 = vmatpush1.bf16.msra.mxu0 0
  %2163 = vmatprep.subr.bf16.mxu0 0
  %2164 = vmatpush1.bf16.msra.mxu0 0
  %2165 = vmatprep.mubr.bf16.mxu0 0
  %2166 = vmatmul.mubr.bf16.gmra.mrb[0].mxu0 %v2090
  %v2167 = vpop.f32.mrb[0].mxu0
  %v2168 = vadd.f32 0.0, %v2167
  %v2169 = vpop.f32.mrb[0].mxu0
  %v2170 = vpop.f32.mrb[0].mxu0
  %v2171 = vpop.f32.mrb[0].mxu0
  %2172 = vdwg.mxu0
  %v2173 = vmul.f32 %v2127, %v1029
  %v2174 = vmul.f32 %v2129, %v1033
  %v2175 = vmul.f32 %v2168, %v1037
  %v2176 = vadd.f32 %v2173, %v2174
  %v2177 = vadd.f32 %v2176, %v2175
  %2178 = vadd.xlane.f32.xlu0 %v2177
  %v2179 = vpop.xlane.xlu0 %2178
  %v2180 = vmul.f32 %v2179, 0.00390625
  %v2181 = vsub.f32 %v2127, %v2180
  %v2182 = vsub.f32 %v2129, %v2180
  %v2183 = vsub.f32 %v2168, %v2180
  %v2184 = vmul.f32 %v2181, %v1029
  %v2185 = vmul.f32 %v2182, %v1033
  %v2186 = vmul.f32 %v2183, %v1037
  %v2187 = vmul.f32 %v2184, %v2184
  %v2188 = vmul.f32 %v2185, %v2185
  %v2189 = vmul.f32 %v2186, %v2186
  %v2190 = vadd.f32 %v2187, %v2188
  %v2191 = vadd.f32 %v2190, %v2189
  %2192 = vadd.xlane.f32.xlu0 %v2191
  %v2193 = vpop.xlane.xlu0 %2192
  %v2194 = vmul.f32 %v2193, 0.00390625
  %v2195 = vadd.f32 %v2194, 1e-05
  %v2196 = vrsqrt.pop %v2195
  %v2197 = vmul.f32 %v2184, %v2196
  %v2198 = vmul.f32 %v2185, %v2196
  %v2199 = vmul.f32 %v2186, %v2196
  %v2200 = vadd.f32 %v2085, %v2197
  %v2201 = vadd.f32 %v2086, %v2198
  %v2202 = vadd.f32 %v2087, %v2199
  %v2203 = vmul.f32 %v2200, %v1029
  %v2204 = vmul.f32 %v2201, %v1033
  %v2205 = vmul.f32 %v2202, %v1037
  %v2206 = vadd.f32 %v2203, %v2204
  %v2207 = vadd.f32 %v2206, %v2205
  %2208 = vadd.xlane.f32.xlu0 %v2207
  %v2209 = vpop.xlane.xlu0 %2208
  %v2210 = vmul.f32 %v2209, 0.00390625
  %v2211 = vsub.f32 %v2200, %v2210
  %v2212 = vsub.f32 %v2201, %v2210
  %v2213 = vsub.f32 %v2202, %v2210
  %v2214 = vmul.f32 %v2211, %v1029
  %v2215 = vmul.f32 %v2212, %v1033
  %v2216 = vmul.f32 %v2213, %v1037
  %v2217 = vmul.f32 %v2214, %v2214
  %v2218 = vmul.f32 %v2215, %v2215
  %v2219 = vmul.f32 %v2216, %v2216
  %v2220 = vadd.f32 %v2217, %v2218
  %v2221 = vadd.f32 %v2220, %v2219
  %2222 = vadd.xlane.f32.xlu0 %v2221
  %v2223 = vpop.xlane.xlu0 %2222
  %v2224 = vmul.f32 %v2223, 0.00390625
  %v2225 = vadd.f32 %v2224, 1e-05
  %v2226 = vrsqrt.pop %v2225
  %v2227 = vmul.f32 %v2214, %v2226
  %v2228 = vmul.f32 %v2215, %v2226
  %v2229 = vmul.f32 %v2216, %v2226
  %v2230 = vmul.f32 %v2227, 0.2
  %v2231 = vmul.f32 %v2228, 0.2
  %v2232 = vmul.f32 %v2229, 0.2
  %v2233 = vmax.f32 %v2227, %v2230
  %v2234 = vmax.f32 %v2228, %v2231
  %v2235 = vmax.f32 %v2229, %v2232
  %2236 = vst [vmem:[%s5] sm:$0xff] %v2233
  %2237 = vst [vmem:[%s5 + $0x8] sm:$0xff] %v2234
  %2238 = vst [vmem:[%s5 + $0x10] sm:$0xff] %v2235
  %s2239 = scalar_lea.vmem %s1, 10
  %v2240 = vld [vmem:[%s2239] sm:$0xff]
  %v2241 = vld [vmem:[%s2239 + $0x8] sm:$0x3]
  %v2242 = vld [vmem:[%s2] sm:$0xf]
  %v2243 = vld [vmem:[%s27] sm:$0xf]
  %v2245 = vcombine.high %v2240, %v2240
  %v2247 = vunpack.c.l.s4 1983009808
  %v2248 = vunpack.c.0.s8 %v2247
  %v2249 = vlaneseq
  %v2250 = vshrl.u32 %v2249, 7
  %v2251 = vsub.s32 %v2248, %v2250
  %v2252 = vrot.slane %v2240, %v2251
  %v2254 = vunpack.c.l.s4 1983009808
  %v2255 = vunpack.c.0.s8 %v2254
  %v2256 = vlaneseq
  %v2257 = vshrl.u32 %v2256, 7
  %v2258 = vsub.s32 %v2255, %v2257
  %v2259 = vrot.slane %v2245, %v2258
  %v2260 = vcombine.high %v2252, %v2252
  %v2261 = vcombine.high %v2259, %v2259
  %2262 = vrot.lane.b32.xlu0 %v2252, 18
  %v2263 = vpop.permute.xlu0 %2262
  %2264 = vrot.lane.b32.xlu0 %v2260, 18
  %v2265 = vpop.permute.xlu0 %2264
  %2266 = vrot.lane.b32.xlu0 %v2259, 18
  %v2267 = vpop.permute.xlu0 %2266
  %2268 = vrot.lane.b32.xlu0 %v2261, 18
  %v2269 = vpop.permute.xlu0 %2268
  %v2270 = vsel %vm55, %v2263, %v2265
  %v2271 = vsel %vm55, %v2265, %v2267
  %v2272 = vsel %vm55, %v2267, %v2269
  %v2274 = vsel %vm59, %v2243, 0
  %v2277 = vsel %vm63, %v2270, 0
  %v2280 = vsel %vm63, %v2271, 0
  %v2283 = vsel %vm63, %v2272, 0
  %2285 = vmatprep.subr.bf16.mxu0 %v2280
  %2286 = vmatpush1.bf16.msra.mxu0 %v2277
  %2287 = vmatprep.subr.bf16.mxu0 0
  %2288 = vmatpush1.bf16.msra.mxu0 0
  %2289 = vmatprep.subr.bf16.mxu0 0
  %2290 = vmatpush1.bf16.msra.mxu0 0
  %2291 = vmatprep.subr.bf16.mxu0 0
  %2292 = vmatpush1.bf16.msra.mxu0 0
  %2293 = vmatprep.subr.bf16.mxu0 0
  %2294 = vmatpush1.bf16.msra.mxu0 0
  %2295 = vmatprep.subr.bf16.mxu0 0
  %2296 = vmatpush1.bf16.msra.mxu0 0
  %2297 = vmatprep.subr.bf16.mxu0 0
  %2298 = vmatpush1.bf16.msra.mxu0 0
  %2299 = vmatprep.subr.bf16.mxu0 0
  %2300 = vmatpush1.bf16.msra.mxu0 0
  %2301 = vmatprep.subr.bf16.mxu0 0
  %2302 = vmatpush1.bf16.msra.mxu0 0
  %2303 = vmatprep.subr.bf16.mxu0 0
  %2304 = vmatpush1.bf16.msra.mxu0 0
  %2305 = vmatprep.subr.bf16.mxu0 0
  %2306 = vmatpush1.bf16.msra.mxu0 0
  %2307 = vmatprep.subr.bf16.mxu0 0
  %2308 = vmatpush1.bf16.msra.mxu0 0
  %2309 = vmatprep.subr.bf16.mxu0 0
  %2310 = vmatpush1.bf16.msra.mxu0 0
  %2311 = vmatprep.subr.bf16.mxu0 0
  %2312 = vmatpush1.bf16.msra.mxu0 0
  %2313 = vmatprep.subr.bf16.mxu0 0
  %2314 = vmatpush1.bf16.msra.mxu0 0
  %2315 = vmatprep.subr.bf16.mxu0 0
  %2316 = vmatpush1.bf16.msra.mxu0 0
  %2317 = vmatprep.mubr.bf16.mxu0 0
  %2318 = vmatmul.mubr.bf16.gmra.mrb[0].mxu0 %v2274
  %v2319 = vpop.f32.mrb[0].mxu0
  %v2320 = vadd.f32 0.0, %v2319
  %v2321 = vpop.f32.mrb[0].mxu0
  %v2322 = vadd.f32 0.0, %v2321
  %v2323 = vpop.f32.mrb[0].mxu0
  %v2324 = vpop.f32.mrb[0].mxu0
  %2325 = vdwg.mxu0
  %2326 = vmatprep.subr.bf16.mxu0 0
  %2327 = vmatpush1.bf16.msra.mxu0 %v2283
  %2328 = vmatprep.subr.bf16.mxu0 0
  %2329 = vmatpush1.bf16.msra.mxu0 0
  %2330 = vmatprep.subr.bf16.mxu0 0
  %2331 = vmatpush1.bf16.msra.mxu0 0
  %2332 = vmatprep.subr.bf16.mxu0 0
  %2333 = vmatpush1.bf16.msra.mxu0 0
  %2334 = vmatprep.subr.bf16.mxu0 0
  %2335 = vmatpush1.bf16.msra.mxu0 0
  %2336 = vmatprep.subr.bf16.mxu0 0
  %2337 = vmatpush1.bf16.msra.mxu0 0
  %2338 = vmatprep.subr.bf16.mxu0 0
  %2339 = vmatpush1.bf16.msra.mxu0 0
  %2340 = vmatprep.subr.bf16.mxu0 0
  %2341 = vmatpush1.bf16.msra.mxu0 0
  %2342 = vmatprep.subr.bf16.mxu0 0
  %2343 = vmatpush1.bf16.msra.mxu0 0
  %2344 = vmatprep.subr.bf16.mxu0 0
  %2345 = vmatpush1.bf16.msra.mxu0 0
  %2346 = vmatprep.subr.bf16.mxu0 0
  %2347 = vmatpush1.bf16.msra.mxu0 0
  %2348 = vmatprep.subr.bf16.mxu0 0
  %2349 = vmatpush1.bf16.msra.mxu0 0
  %2350 = vmatprep.subr.bf16.mxu0 0
  %2351 = vmatpush1.bf16.msra.mxu0 0
  %2352 = vmatprep.subr.bf16.mxu0 0
  %2353 = vmatpush1.bf16.msra.mxu0 0
  %2354 = vmatprep.subr.bf16.mxu0 0
  %2355 = vmatpush1.bf16.msra.mxu0 0
  %2356 = vmatprep.subr.bf16.mxu0 0
  %2357 = vmatpush1.bf16.msra.mxu0 0
  %2358 = vmatprep.mubr.bf16.mxu0 0
  %2359 = vmatmul.mubr.bf16.gmra.mrb[0].mxu0 %v2274
  %v2360 = vpop.f32.mrb[0].mxu0
  %v2361 = vadd.f32 0.0, %v2360
  %v2362 = vpop.f32.mrb[0].mxu0
  %v2363 = vpop.f32.mrb[0].mxu0
  %v2364 = vpop.f32.mrb[0].mxu0
  %2365 = vdwg.mxu0
  %2366 = vrot.lane.b32.xlu0 %v2252, 19
  %v2367 = vpop.permute.xlu0 %2366
  %2368 = vrot.lane.b32.xlu0 %v2260, 19
  %v2369 = vpop.permute.xlu0 %2368
  %2370 = vrot.lane.b32.xlu0 %v2259, 19
  %v2371 = vpop.permute.xlu0 %2370
  %2372 = vrot.lane.b32.xlu0 %v2261, 19
  %v2373 = vpop.permute.xlu0 %2372
  %v2374 = vsel %vm162, %v2367, %v2369
  %v2375 = vsel %vm162, %v2369, %v2371
  %v2376 = vsel %vm162, %v2371, %v2373
  %v2378 = vsel %vm59, %v2242, 0
  %v2381 = vsel %vm63, %v2374, 0
  %v2384 = vsel %vm63, %v2375, 0
  %v2387 = vsel %vm63, %v2376, 0
  %2389 = vmatprep.subr.bf16.mxu0 %v2384
  %2390 = vmatpush1.bf16.msra.mxu0 %v2381
  %2391 = vmatprep.subr.bf16.mxu0 0
  %2392 = vmatpush1.bf16.msra.mxu0 0
  %2393 = vmatprep.subr.bf16.mxu0 0
  %2394 = vmatpush1.bf16.msra.mxu0 0
  %2395 = vmatprep.subr.bf16.mxu0 0
  %2396 = vmatpush1.bf16.msra.mxu0 0
  %2397 = vmatprep.subr.bf16.mxu0 0
  %2398 = vmatpush1.bf16.msra.mxu0 0
  %2399 = vmatprep.subr.bf16.mxu0 0
  %2400 = vmatpush1.bf16.msra.mxu0 0
  %2401 = vmatprep.subr.bf16.mxu0 0
  %2402 = vmatpush1.bf16.msra.mxu0 0
  %2403 = vmatprep.subr.bf16.mxu0 0
  %2404 = vmatpush1.bf16.msra.mxu0 0
  %2405 = vmatprep.subr.bf16.mxu0 0
  %2406 = vmatpush1.bf16.msra.mxu0 0
  %2407 = vmatprep.subr.bf16.mxu0 0
  %2408 = vmatpush1.bf16.msra.mxu0 0
  %2409 = vmatprep.subr.bf16.mxu0 0
  %2410 = vmatpush1.bf16.msra.mxu0 0
  %2411 = vmatprep.subr.bf16.mxu0 0
  %2412 = vmatpush1.bf16.msra.mxu0 0
  %2413 = vmatprep.subr.bf16.mxu0 0
  %2414 = vmatpush1.bf16.msra.mxu0 0
  %2415 = vmatprep.subr.bf16.mxu0 0
  %2416 = vmatpush1.bf16.msra.mxu0 0
  %2417 = vmatprep.subr.bf16.mxu0 0
  %2418 = vmatpush1.bf16.msra.mxu0 0
  %2419 = vmatprep.subr.bf16.mxu0 0
  %2420 = vmatpush1.bf16.msra.mxu0 0
  %2421 = vmatprep.mubr.bf16.mxu0 0
  %2422 = vmatmul.mubr.bf16.gmra.mrb[0].mxu0 %v2378
  %v2423 = vpop.f32.mrb[0].mxu0
  %v2424 = vadd.f32 %v2320, %v2423
  %v2425 = vpop.f32.mrb[0].mxu0
  %v2426 = vadd.f32 %v2322, %v2425
  %v2427 = vpop.f32.mrb[0].mxu0
  %v2428 = vpop.f32.mrb[0].mxu0
  %2429 = vdwg.mxu0
  %2430 = vmatprep.subr.bf16.mxu0 0
  %2431 = vmatpush1.bf16.msra.mxu0 %v2387
  %2432 = vmatprep.subr.bf16.mxu0 0
  %2433 = vmatpush1.bf16.msra.mxu0 0
  %2434 = vmatprep.subr.bf16.mxu0 0
  %2435 = vmatpush1.bf16.msra.mxu0 0
  %2436 = vmatprep.subr.bf16.mxu0 0
  %2437 = vmatpush1.bf16.msra.mxu0 0
  %2438 = vmatprep.subr.bf16.mxu0 0
  %2439 = vmatpush1.bf16.msra.mxu0 0
  %2440 = vmatprep.subr.bf16.mxu0 0
  %2441 = vmatpush1.bf16.msra.mxu0 0
  %2442 = vmatprep.subr.bf16.mxu0 0
  %2443 = vmatpush1.bf16.msra.mxu0 0
  %2444 = vmatprep.subr.bf16.mxu0 0
  %2445 = vmatpush1.bf16.msra.mxu0 0
  %2446 = vmatprep.subr.bf16.mxu0 0
  %2447 = vmatpush1.bf16.msra.mxu0 0
  %2448 = vmatprep.subr.bf16.mxu0 0
  %2449 = vmatpush1.bf16.msra.mxu0 0
  %2450 = vmatprep.subr.bf16.mxu0 0
  %2451 = vmatpush1.bf16.msra.mxu0 0
  %2452 = vmatprep.subr.bf16.mxu0 0
  %2453 = vmatpush1.bf16.msra.mxu0 0
  %2454 = vmatprep.subr.bf16.mxu0 0
  %2455 = vmatpush1.bf16.msra.mxu0 0
  %2456 = vmatprep.subr.bf16.mxu0 0
  %2457 = vmatpush1.bf16.msra.mxu0 0
  %2458 = vmatprep.subr.bf16.mxu0 0
  %2459 = vmatpush1.bf16.msra.mxu0 0
  %2460 = vmatprep.subr.bf16.mxu0 0
  %2461 = vmatpush1.bf16.msra.mxu0 0
  %2462 = vmatprep.mubr.bf16.mxu0 0
  %2463 = vmatmul.mubr.bf16.gmra.mrb[0].mxu0 %v2378
  %v2464 = vpop.f32.mrb[0].mxu0
  %v2465 = vadd.f32 %v2361, %v2464
  %v2466 = vpop.f32.mrb[0].mxu0
  %v2467 = vpop.f32.mrb[0].mxu0
  %v2468 = vpop.f32.mrb[0].mxu0
  %2469 = vdwg.mxu0
  %v2470 = vld [vmem:[%s259] sm:$0xf]
  %2471 = vrot.lane.b32.xlu0 %v2252, 17
  %v2472 = vpop.permute.xlu0 %2471
  %2473 = vrot.lane.b32.xlu0 %v2260, 17
  %v2474 = vpop.permute.xlu0 %2473
  %2475 = vrot.lane.b32.xlu0 %v2259, 17
  %v2476 = vpop.permute.xlu0 %2475
  %2477 = vrot.lane.b32.xlu0 %v2261, 17
  %v2478 = vpop.permute.xlu0 %2477
  %v2479 = vsel %vm269, %v2472, %v2474
  %v2480 = vsel %vm269, %v2474, %v2476
  %v2481 = vsel %vm269, %v2476, %v2478
  %v2483 = vsel %vm59, %v2470, 0
  %v2486 = vsel %vm63, %v2479, 0
  %v2489 = vsel %vm63, %v2480, 0
  %v2492 = vsel %vm63, %v2481, 0
  %2494 = vmatprep.subr.bf16.mxu0 %v2489
  %2495 = vmatpush1.bf16.msra.mxu0 %v2486
  %2496 = vmatprep.subr.bf16.mxu0 0
  %2497 = vmatpush1.bf16.msra.mxu0 0
  %2498 = vmatprep.subr.bf16.mxu0 0
  %2499 = vmatpush1.bf16.msra.mxu0 0
  %2500 = vmatprep.subr.bf16.mxu0 0
  %2501 = vmatpush1.bf16.msra.mxu0 0
  %2502 = vmatprep.subr.bf16.mxu0 0
  %2503 = vmatpush1.bf16.msra.mxu0 0
  %2504 = vmatprep.subr.bf16.mxu0 0
  %2505 = vmatpush1.bf16.msra.mxu0 0
  %2506 = vmatprep.subr.bf16.mxu0 0
  %2507 = vmatpush1.bf16.msra.mxu0 0
  %2508 = vmatprep.subr.bf16.mxu0 0
  %2509 = vmatpush1.bf16.msra.mxu0 0
  %2510 = vmatprep.subr.bf16.mxu0 0
  %2511 = vmatpush1.bf16.msra.mxu0 0
  %2512 = vmatprep.subr.bf16.mxu0 0
  %2513 = vmatpush1.bf16.msra.mxu0 0
  %2514 = vmatprep.subr.bf16.mxu0 0
  %2515 = vmatpush1.bf16.msra.mxu0 0
  %2516 = vmatprep.subr.bf16.mxu0 0
  %2517 = vmatpush1.bf16.msra.mxu0 0
  %2518 = vmatprep.subr.bf16.mxu0 0
  %2519 = vmatpush1.bf16.msra.mxu0 0
  %2520 = vmatprep.subr.bf16.mxu0 0
  %2521 = vmatpush1.bf16.msra.mxu0 0
  %2522 = vmatprep.subr.bf16.mxu0 0
  %2523 = vmatpush1.bf16.msra.mxu0 0
  %2524 = vmatprep.subr.bf16.mxu0 0
  %2525 = vmatpush1.bf16.msra.mxu0 0
  %2526 = vmatprep.mubr.bf16.mxu0 0
  %2527 = vmatmul.mubr.bf16.gmra.mrb[0].mxu0 %v2483
  %v2528 = vpop.f32.mrb[0].mxu0
  %v2529 = vadd.f32 0.0, %v2528
  %v2530 = vpop.f32.mrb[0].mxu0
  %v2531 = vadd.f32 0.0, %v2530
  %v2532 = vpop.f32.mrb[0].mxu0
  %v2533 = vpop.f32.mrb[0].mxu0
  %2534 = vdwg.mxu0
  %2535 = vmatprep.subr.bf16.mxu0 0
  %2536 = vmatpush1.bf16.msra.mxu0 %v2492
  %2537 = vmatprep.subr.bf16.mxu0 0
  %2538 = vmatpush1.bf16.msra.mxu0 0
  %2539 = vmatprep.subr.bf16.mxu0 0
  %2540 = vmatpush1.bf16.msra.mxu0 0
  %2541 = vmatprep.subr.bf16.mxu0 0
  %2542 = vmatpush1.bf16.msra.mxu0 0
  %2543 = vmatprep.subr.bf16.mxu0 0
  %2544 = vmatpush1.bf16.msra.mxu0 0
  %2545 = vmatprep.subr.bf16.mxu0 0
  %2546 = vmatpush1.bf16.msra.mxu0 0
  %2547 = vmatprep.subr.bf16.mxu0 0
  %2548 = vmatpush1.bf16.msra.mxu0 0
  %2549 = vmatprep.subr.bf16.mxu0 0
  %2550 = vmatpush1.bf16.msra.mxu0 0
  %2551 = vmatprep.subr.bf16.mxu0 0
  %2552 = vmatpush1.bf16.msra.mxu0 0
  %2553 = vmatprep.subr.bf16.mxu0 0
  %2554 = vmatpush1.bf16.msra.mxu0 0
  %2555 = vmatprep.subr.bf16.mxu0 0
  %2556 = vmatpush1.bf16.msra.mxu0 0
  %2557 = vmatprep.subr.bf16.mxu0 0
  %2558 = vmatpush1.bf16.msra.mxu0 0
  %2559 = vmatprep.subr.bf16.mxu0 0
  %2560 = vmatpush1.bf16.msra.mxu0 0
  %2561 = vmatprep.subr.bf16.mxu0 0
  %2562 = vmatpush1.bf16.msra.mxu0 0
  %2563 = vmatprep.subr.bf16.mxu0 0
  %2564 = vmatpush1.bf16.msra.mxu0 0
  %2565 = vmatprep.subr.bf16.mxu0 0
  %2566 = vmatpush1.bf16.msra.mxu0 0
  %2567 = vmatprep.mubr.bf16.mxu0 0
  %2568 = vmatmul.mubr.bf16.gmra.mrb[0].mxu0 %v2483
  %v2569 = vpop.f32.mrb[0].mxu0
  %v2570 = vadd.f32 0.0, %v2569
  %v2571 = vpop.f32.mrb[0].mxu0
  %v2572 = vpop.f32.mrb[0].mxu0
  %v2573 = vpop.f32.mrb[0].mxu0
  %2574 = vdwg.mxu0
  %v2575 = vadd.f32 %v2424, %v2529
  %v2576 = vadd.f32 %v2426, %v2531
  %v2577 = vadd.f32 %v2465, %v2570
  %v2578 = vld [vmem:[%s369] sm:$0xf]
  %2579 = vrot.lane.b32.xlu0 %v2252, 1
  %v2580 = vpop.permute.xlu0 %2579
  %2581 = vrot.lane.b32.xlu0 %v2260, 1
  %v2582 = vpop.permute.xlu0 %2581
  %2583 = vrot.lane.b32.xlu0 %v2259, 1
  %v2584 = vpop.permute.xlu0 %2583
  %2585 = vrot.lane.b32.xlu0 %v2261, 1
  %v2586 = vpop.permute.xlu0 %2585
  %v2587 = vsel %vm379, %v2580, %v2582
  %v2588 = vsel %vm379, %v2582, %v2584
  %v2589 = vsel %vm379, %v2584, %v2586
  %v2591 = vsel %vm59, %v2578, 0
  %v2594 = vsel %vm63, %v2587, 0
  %v2597 = vsel %vm63, %v2588, 0
  %v2600 = vsel %vm63, %v2589, 0
  %2602 = vmatprep.subr.bf16.mxu0 %v2597
  %2603 = vmatpush1.bf16.msra.mxu0 %v2594
  %2604 = vmatprep.subr.bf16.mxu0 0
  %2605 = vmatpush1.bf16.msra.mxu0 0
  %2606 = vmatprep.subr.bf16.mxu0 0
  %2607 = vmatpush1.bf16.msra.mxu0 0
  %2608 = vmatprep.subr.bf16.mxu0 0
  %2609 = vmatpush1.bf16.msra.mxu0 0
  %2610 = vmatprep.subr.bf16.mxu0 0
  %2611 = vmatpush1.bf16.msra.mxu0 0
  %2612 = vmatprep.subr.bf16.mxu0 0
  %2613 = vmatpush1.bf16.msra.mxu0 0
  %2614 = vmatprep.subr.bf16.mxu0 0
  %2615 = vmatpush1.bf16.msra.mxu0 0
  %2616 = vmatprep.subr.bf16.mxu0 0
  %2617 = vmatpush1.bf16.msra.mxu0 0
  %2618 = vmatprep.subr.bf16.mxu0 0
  %2619 = vmatpush1.bf16.msra.mxu0 0
  %2620 = vmatprep.subr.bf16.mxu0 0
  %2621 = vmatpush1.bf16.msra.mxu0 0
  %2622 = vmatprep.subr.bf16.mxu0 0
  %2623 = vmatpush1.bf16.msra.mxu0 0
  %2624 = vmatprep.subr.bf16.mxu0 0
  %2625 = vmatpush1.bf16.msra.mxu0 0
  %2626 = vmatprep.subr.bf16.mxu0 0
  %2627 = vmatpush1.bf16.msra.mxu0 0
  %2628 = vmatprep.subr.bf16.mxu0 0
  %2629 = vmatpush1.bf16.msra.mxu0 0
  %2630 = vmatprep.subr.bf16.mxu0 0
  %2631 = vmatpush1.bf16.msra.mxu0 0
  %2632 = vmatprep.subr.bf16.mxu0 0
  %2633 = vmatpush1.bf16.msra.mxu0 0
  %2634 = vmatprep.mubr.bf16.mxu0 0
  %2635 = vmatmul.mubr.bf16.gmra.mrb[0].mxu0 %v2591
  %v2636 = vpop.f32.mrb[0].mxu0
  %v2637 = vadd.f32 0.0, %v2636
  %v2638 = vpop.f32.mrb[0].mxu0
  %v2639 = vadd.f32 0.0, %v2638
  %v2640 = vpop.f32.mrb[0].mxu0
  %v2641 = vpop.f32.mrb[0].mxu0
  %2642 = vdwg.mxu0
  %2643 = vmatprep.subr.bf16.mxu0 0
  %2644 = vmatpush1.bf16.msra.mxu0 %v2600
  %2645 = vmatprep.subr.bf16.mxu0 0
  %2646 = vmatpush1.bf16.msra.mxu0 0
  %2647 = vmatprep.subr.bf16.mxu0 0
  %2648 = vmatpush1.bf16.msra.mxu0 0
  %2649 = vmatprep.subr.bf16.mxu0 0
  %2650 = vmatpush1.bf16.msra.mxu0 0
  %2651 = vmatprep.subr.bf16.mxu0 0
  %2652 = vmatpush1.bf16.msra.mxu0 0
  %2653 = vmatprep.subr.bf16.mxu0 0
  %2654 = vmatpush1.bf16.msra.mxu0 0
  %2655 = vmatprep.subr.bf16.mxu0 0
  %2656 = vmatpush1.bf16.msra.mxu0 0
  %2657 = vmatprep.subr.bf16.mxu0 0
  %2658 = vmatpush1.bf16.msra.mxu0 0
  %2659 = vmatprep.subr.bf16.mxu0 0
  %2660 = vmatpush1.bf16.msra.mxu0 0
  %2661 = vmatprep.subr.bf16.mxu0 0
  %2662 = vmatpush1.bf16.msra.mxu0 0
  %2663 = vmatprep.subr.bf16.mxu0 0
  %2664 = vmatpush1.bf16.msra.mxu0 0
  %2665 = vmatprep.subr.bf16.mxu0 0
  %2666 = vmatpush1.bf16.msra.mxu0 0
  %2667 = vmatprep.subr.bf16.mxu0 0
  %2668 = vmatpush1.bf16.msra.mxu0 0
  %2669 = vmatprep.subr.bf16.mxu0 0
  %2670 = vmatpush1.bf16.msra.mxu0 0
  %2671 = vmatprep.subr.bf16.mxu0 0
  %2672 = vmatpush1.bf16.msra.mxu0 0
  %2673 = vmatprep.subr.bf16.mxu0 0
  %2674 = vmatpush1.bf16.msra.mxu0 0
  %2675 = vmatprep.mubr.bf16.mxu0 0
  %2676 = vmatmul.mubr.bf16.gmra.mrb[0].mxu0 %v2591
  %v2677 = vpop.f32.mrb[0].mxu0
  %v2678 = vadd.f32 0.0, %v2677
  %v2679 = vpop.f32.mrb[0].mxu0
  %v2680 = vpop.f32.mrb[0].mxu0
  %v2681 = vpop.f32.mrb[0].mxu0
  %2682 = vdwg.mxu0
  %v2683 = vadd.f32 %v2575, %v2637
  %v2684 = vadd.f32 %v2576, %v2639
  %v2685 = vadd.f32 %v2577, %v2678
  %v2686 = vld [vmem:[%s479] sm:$0xf]
  %v2688 = vsel %vm59, %v2686, 0
  %v2691 = vsel %vm63, %v2260, 0
  %v2694 = vsel %vm63, %v2259, 0
  %v2697 = vsel %vm63, %v2261, 0
  %2699 = vmatprep.subr.bf16.mxu0 %v2694
  %2700 = vmatpush1.bf16.msra.mxu0 %v2691
  %2701 = vmatprep.subr.bf16.mxu0 0
  %2702 = vmatpush1.bf16.msra.mxu0 0
  %2703 = vmatprep.subr.bf16.mxu0 0
  %2704 = vmatpush1.bf16.msra.mxu0 0
  %2705 = vmatprep.subr.bf16.mxu0 0
  %2706 = vmatpush1.bf16.msra.mxu0 0
  %2707 = vmatprep.subr.bf16.mxu0 0
  %2708 = vmatpush1.bf16.msra.mxu0 0
  %2709 = vmatprep.subr.bf16.mxu0 0
  %2710 = vmatpush1.bf16.msra.mxu0 0
  %2711 = vmatprep.subr.bf16.mxu0 0
  %2712 = vmatpush1.bf16.msra.mxu0 0
  %2713 = vmatprep.subr.bf16.mxu0 0
  %2714 = vmatpush1.bf16.msra.mxu0 0
  %2715 = vmatprep.subr.bf16.mxu0 0
  %2716 = vmatpush1.bf16.msra.mxu0 0
  %2717 = vmatprep.subr.bf16.mxu0 0
  %2718 = vmatpush1.bf16.msra.mxu0 0
  %2719 = vmatprep.subr.bf16.mxu0 0
  %2720 = vmatpush1.bf16.msra.mxu0 0
  %2721 = vmatprep.subr.bf16.mxu0 0
  %2722 = vmatpush1.bf16.msra.mxu0 0
  %2723 = vmatprep.subr.bf16.mxu0 0
  %2724 = vmatpush1.bf16.msra.mxu0 0
  %2725 = vmatprep.subr.bf16.mxu0 0
  %2726 = vmatpush1.bf16.msra.mxu0 0
  %2727 = vmatprep.subr.bf16.mxu0 0
  %2728 = vmatpush1.bf16.msra.mxu0 0
  %2729 = vmatprep.subr.bf16.mxu0 0
  %2730 = vmatpush1.bf16.msra.mxu0 0
  %2731 = vmatprep.mubr.bf16.mxu0 0
  %2732 = vmatmul.mubr.bf16.gmra.mrb[0].mxu0 %v2688
  %v2733 = vpop.f32.mrb[0].mxu0
  %v2734 = vadd.f32 0.0, %v2733
  %v2735 = vpop.f32.mrb[0].mxu0
  %v2736 = vadd.f32 0.0, %v2735
  %v2737 = vpop.f32.mrb[0].mxu0
  %v2738 = vpop.f32.mrb[0].mxu0
  %2739 = vdwg.mxu0
  %2740 = vmatprep.subr.bf16.mxu0 0
  %2741 = vmatpush1.bf16.msra.mxu0 %v2697
  %2742 = vmatprep.subr.bf16.mxu0 0
  %2743 = vmatpush1.bf16.msra.mxu0 0
  %2744 = vmatprep.subr.bf16.mxu0 0
  %2745 = vmatpush1.bf16.msra.mxu0 0
  %2746 = vmatprep.subr.bf16.mxu0 0
  %2747 = vmatpush1.bf16.msra.mxu0 0
  %2748 = vmatprep.subr.bf16.mxu0 0
  %2749 = vmatpush1.bf16.msra.mxu0 0
  %2750 = vmatprep.subr.bf16.mxu0 0
  %2751 = vmatpush1.bf16.msra.mxu0 0
  %2752 = vmatprep.subr.bf16.mxu0 0
  %2753 = vmatpush1.bf16.msra.mxu0 0
  %2754 = vmatprep.subr.bf16.mxu0 0
  %2755 = vmatpush1.bf16.msra.mxu0 0
  %2756 = vmatprep.subr.bf16.mxu0 0
  %2757 = vmatpush1.bf16.msra.mxu0 0
  %2758 = vmatprep.subr.bf16.mxu0 0
  %2759 = vmatpush1.bf16.msra.mxu0 0
  %2760 = vmatprep.subr.bf16.mxu0 0
  %2761 = vmatpush1.bf16.msra.mxu0 0
  %2762 = vmatprep.subr.bf16.mxu0 0
  %2763 = vmatpush1.bf16.msra.mxu0 0
  %2764 = vmatprep.subr.bf16.mxu0 0
  %2765 = vmatpush1.bf16.msra.mxu0 0
  %2766 = vmatprep.subr.bf16.mxu0 0
  %2767 = vmatpush1.bf16.msra.mxu0 0
  %2768 = vmatprep.subr.bf16.mxu0 0
  %2769 = vmatpush1.bf16.msra.mxu0 0
  %2770 = vmatprep.subr.bf16.mxu0 0
  %2771 = vmatpush1.bf16.msra.mxu0 0
  %2772 = vmatprep.mubr.bf16.mxu0 0
  %2773 = vmatmul.mubr.bf16.gmra.mrb[0].mxu0 %v2688
  %v2774 = vpop.f32.mrb[0].mxu0
  %v2775 = vadd.f32 0.0, %v2774
  %v2776 = vpop.f32.mrb[0].mxu0
  %v2777 = vpop.f32.mrb[0].mxu0
  %v2778 = vpop.f32.mrb[0].mxu0
  %2779 = vdwg.mxu0
  %v2780 = vadd.f32 %v2683, %v2734
  %v2781 = vadd.f32 %v2684, %v2736
  %v2782 = vadd.f32 %v2685, %v2775
  %v2783 = vld [vmem:[%s577] sm:$0xf]
  %v2786 = vunpack.c.l.s4 1983009808
  %v2787 = vunpack.c.0.s8 %v2786
  %v2788 = vlaneseq
  %v2789 = vshrl.u32 %v2788, 7
  %v2790 = vsub.s32 %v2787, %v2789
  %v2791 = vrot.slane %v2241, %v2790
  %2792 = vrot.lane.b32.xlu0 %v2260, 127
  %v2793 = vpop.permute.xlu0 %2792
  %2794 = vrot.lane.b32.xlu0 %v2259, 127
  %v2795 = vpop.permute.xlu0 %2794
  %2796 = vrot.lane.b32.xlu0 %v2261, 127
  %v2797 = vpop.permute.xlu0 %2796
  %2798 = vrot.lane.b32.xlu0 %v2791, 127
  %v2799 = vpop.permute.xlu0 %2798
  %v2800 = vsel %vm595, %v2793, %v2795
  %v2801 = vsel %vm595, %v2795, %v2797
  %v2802 = vsel %vm595, %v2797, %v2799
  %v2804 = vsel %vm59, %v2783, 0
  %v2807 = vsel %vm63, %v2800, 0
  %v2810 = vsel %vm63, %v2801, 0
  %v2813 = vsel %vm63, %v2802, 0
  %2815 = vmatprep.subr.bf16.mxu0 %v2810
  %2816 = vmatpush1.bf16.msra.mxu0 %v2807
  %2817 = vmatprep.subr.bf16.mxu0 0
  %2818 = vmatpush1.bf16.msra.mxu0 0
  %2819 = vmatprep.subr.bf16.mxu0 0
  %2820 = vmatpush1.bf16.msra.mxu0 0
  %2821 = vmatprep.subr.bf16.mxu0 0
  %2822 = vmatpush1.bf16.msra.mxu0 0
  %2823 = vmatprep.subr.bf16.mxu0 0
  %2824 = vmatpush1.bf16.msra.mxu0 0
  %2825 = vmatprep.subr.bf16.mxu0 0
  %2826 = vmatpush1.bf16.msra.mxu0 0
  %2827 = vmatprep.subr.bf16.mxu0 0
  %2828 = vmatpush1.bf16.msra.mxu0 0
  %2829 = vmatprep.subr.bf16.mxu0 0
  %2830 = vmatpush1.bf16.msra.mxu0 0
  %2831 = vmatprep.subr.bf16.mxu0 0
  %2832 = vmatpush1.bf16.msra.mxu0 0
  %2833 = vmatprep.subr.bf16.mxu0 0
  %2834 = vmatpush1.bf16.msra.mxu0 0
  %2835 = vmatprep.subr.bf16.mxu0 0
  %2836 = vmatpush1.bf16.msra.mxu0 0
  %2837 = vmatprep.subr.bf16.mxu0 0
  %2838 = vmatpush1.bf16.msra.mxu0 0
  %2839 = vmatprep.subr.bf16.mxu0 0
  %2840 = vmatpush1.bf16.msra.mxu0 0
  %2841 = vmatprep.subr.bf16.mxu0 0
  %2842 = vmatpush1.bf16.msra.mxu0 0
  %2843 = vmatprep.subr.bf16.mxu0 0
  %2844 = vmatpush1.bf16.msra.mxu0 0
  %2845 = vmatprep.subr.bf16.mxu0 0
  %2846 = vmatpush1.bf16.msra.mxu0 0
  %2847 = vmatprep.mubr.bf16.mxu0 0
  %2848 = vmatmul.mubr.bf16.gmra.mrb[0].mxu0 %v2804
  %v2849 = vpop.f32.mrb[0].mxu0
  %v2850 = vadd.f32 0.0, %v2849
  %v2851 = vpop.f32.mrb[0].mxu0
  %v2852 = vadd.f32 0.0, %v2851
  %v2853 = vpop.f32.mrb[0].mxu0
  %v2854 = vpop.f32.mrb[0].mxu0
  %2855 = vdwg.mxu0
  %2856 = vmatprep.subr.bf16.mxu0 0
  %2857 = vmatpush1.bf16.msra.mxu0 %v2813
  %2858 = vmatprep.subr.bf16.mxu0 0
  %2859 = vmatpush1.bf16.msra.mxu0 0
  %2860 = vmatprep.subr.bf16.mxu0 0
  %2861 = vmatpush1.bf16.msra.mxu0 0
  %2862 = vmatprep.subr.bf16.mxu0 0
  %2863 = vmatpush1.bf16.msra.mxu0 0
  %2864 = vmatprep.subr.bf16.mxu0 0
  %2865 = vmatpush1.bf16.msra.mxu0 0
  %2866 = vmatprep.subr.bf16.mxu0 0
  %2867 = vmatpush1.bf16.msra.mxu0 0
  %2868 = vmatprep.subr.bf16.mxu0 0
  %2869 = vmatpush1.bf16.msra.mxu0 0
  %2870 = vmatprep.subr.bf16.mxu0 0
  %2871 = vmatpush1.bf16.msra.mxu0 0
  %2872 = vmatprep.subr.bf16.mxu0 0
  %2873 = vmatpush1.bf16.msra.mxu0 0
  %2874 = vmatprep.subr.bf16.mxu0 0
  %2875 = vmatpush1.bf16.msra.mxu0 0
  %2876 = vmatprep.subr.bf16.mxu0 0
  %2877 = vmatpush1.bf16.msra.mxu0 0
  %2878 = vmatprep.subr.bf16.mxu0 0
  %2879 = vmatpush1.bf16.msra.mxu0 0
  %2880 = vmatprep.subr.bf16.mxu0 0
  %2881 = vmatpush1.bf16.msra.mxu0 0
  %2882 = vmatprep.subr.bf16.mxu0 0
  %2883 = vmatpush1.bf16.msra.mxu0 0
  %2884 = vmatprep.subr.bf16.mxu0 0
  %2885 = vmatpush1.bf16.msra.mxu0 0
  %2886 = vmatprep.subr.bf16.mxu0 0
  %2887 = vmatpush1.bf16.msra.mxu0 0
  %2888 = vmatprep.mubr.bf16.mxu0 0
  %2889 = vmatmul.mubr.bf16.gmra.mrb[0].mxu0 %v2804
  %v2890 = vpop.f32.mrb[0].mxu0
  %v2891 = vadd.f32 0.0, %v2890
  %v2892 = vpop.f32.mrb[0].mxu0
  %v2893 = vpop.f32.mrb[0].mxu0
  %v2894 = vpop.f32.mrb[0].mxu0
  %2895 = vdwg.mxu0
  %v2896 = vadd.f32 %v2780, %v2850
  %v2897 = vadd.f32 %v2781, %v2852
  %v2898 = vadd.f32 %v2782, %v2891
  %v2899 = vld [vmem:[%s695] sm:$0xf]
  %2900 = vrot.lane.b32.xlu0 %v2260, 111
  %v2901 = vpop.permute.xlu0 %2900
  %2902 = vrot.lane.b32.xlu0 %v2259, 111
  %v2903 = vpop.permute.xlu0 %2902
  %2904 = vrot.lane.b32.xlu0 %v2261, 111
  %v2905 = vpop.permute.xlu0 %2904
  %2906 = vrot.lane.b32.xlu0 %v2791, 111
  %v2907 = vpop.permute.xlu0 %2906
  %v2908 = vsel %vm705, %v2901, %v2903
  %v2909 = vsel %vm705, %v2903, %v2905
  %v2910 = vsel %vm705, %v2905, %v2907
  %v2912 = vsel %vm59, %v2899, 0
  %v2915 = vsel %vm63, %v2908, 0
  %v2918 = vsel %vm63, %v2909, 0
  %v2921 = vsel %vm63, %v2910, 0
  %2923 = vmatprep.subr.bf16.mxu0 %v2918
  %2924 = vmatpush1.bf16.msra.mxu0 %v2915
  %2925 = vmatprep.subr.bf16.mxu0 0
  %2926 = vmatpush1.bf16.msra.mxu0 0
  %2927 = vmatprep.subr.bf16.mxu0 0
  %2928 = vmatpush1.bf16.msra.mxu0 0
  %2929 = vmatprep.subr.bf16.mxu0 0
  %2930 = vmatpush1.bf16.msra.mxu0 0
  %2931 = vmatprep.subr.bf16.mxu0 0
  %2932 = vmatpush1.bf16.msra.mxu0 0
  %2933 = vmatprep.subr.bf16.mxu0 0
  %2934 = vmatpush1.bf16.msra.mxu0 0
  %2935 = vmatprep.subr.bf16.mxu0 0
  %2936 = vmatpush1.bf16.msra.mxu0 0
  %2937 = vmatprep.subr.bf16.mxu0 0
  %2938 = vmatpush1.bf16.msra.mxu0 0
  %2939 = vmatprep.subr.bf16.mxu0 0
  %2940 = vmatpush1.bf16.msra.mxu0 0
  %2941 = vmatprep.subr.bf16.mxu0 0
  %2942 = vmatpush1.bf16.msra.mxu0 0
  %2943 = vmatprep.subr.bf16.mxu0 0
  %2944 = vmatpush1.bf16.msra.mxu0 0
  %2945 = vmatprep.subr.bf16.mxu0 0
  %2946 = vmatpush1.bf16.msra.mxu0 0
  %2947 = vmatprep.subr.bf16.mxu0 0
  %2948 = vmatpush1.bf16.msra.mxu0 0
  %2949 = vmatprep.subr.bf16.mxu0 0
  %2950 = vmatpush1.bf16.msra.mxu0 0
  %2951 = vmatprep.subr.bf16.mxu0 0
  %2952 = vmatpush1.bf16.msra.mxu0 0
  %2953 = vmatprep.subr.bf16.mxu0 0
  %2954 = vmatpush1.bf16.msra.mxu0 0
  %2955 = vmatprep.mubr.bf16.mxu0 0
  %2956 = vmatmul.mubr.bf16.gmra.mrb[0].mxu0 %v2912
  %v2957 = vpop.f32.mrb[0].mxu0
  %v2958 = vadd.f32 0.0, %v2957
  %v2959 = vpop.f32.mrb[0].mxu0
  %v2960 = vadd.f32 0.0, %v2959
  %v2961 = vpop.f32.mrb[0].mxu0
  %v2962 = vpop.f32.mrb[0].mxu0
  %2963 = vdwg.mxu0
  %2964 = vmatprep.subr.bf16.mxu0 0
  %2965 = vmatpush1.bf16.msra.mxu0 %v2921
  %2966 = vmatprep.subr.bf16.mxu0 0
  %2967 = vmatpush1.bf16.msra.mxu0 0
  %2968 = vmatprep.subr.bf16.mxu0 0
  %2969 = vmatpush1.bf16.msra.mxu0 0
  %2970 = vmatprep.subr.bf16.mxu0 0
  %2971 = vmatpush1.bf16.msra.mxu0 0
  %2972 = vmatprep.subr.bf16.mxu0 0
  %2973 = vmatpush1.bf16.msra.mxu0 0
  %2974 = vmatprep.subr.bf16.mxu0 0
  %2975 = vmatpush1.bf16.msra.mxu0 0
  %2976 = vmatprep.subr.bf16.mxu0 0
  %2977 = vmatpush1.bf16.msra.mxu0 0
  %2978 = vmatprep.subr.bf16.mxu0 0
  %2979 = vmatpush1.bf16.msra.mxu0 0
  %2980 = vmatprep.subr.bf16.mxu0 0
  %2981 = vmatpush1.bf16.msra.mxu0 0
  %2982 = vmatprep.subr.bf16.mxu0 0
  %2983 = vmatpush1.bf16.msra.mxu0 0
  %2984 = vmatprep.subr.bf16.mxu0 0
  %2985 = vmatpush1.bf16.msra.mxu0 0
  %2986 = vmatprep.subr.bf16.mxu0 0
  %2987 = vmatpush1.bf16.msra.mxu0 0
  %2988 = vmatprep.subr.bf16.mxu0 0
  %2989 = vmatpush1.bf16.msra.mxu0 0
  %2990 = vmatprep.subr.bf16.mxu0 0
  %2991 = vmatpush1.bf16.msra.mxu0 0
  %2992 = vmatprep.subr.bf16.mxu0 0
  %2993 = vmatpush1.bf16.msra.mxu0 0
  %2994 = vmatprep.subr.bf16.mxu0 0
  %2995 = vmatpush1.bf16.msra.mxu0 0
  %2996 = vmatprep.mubr.bf16.mxu0 0
  %2997 = vmatmul.mubr.bf16.gmra.mrb[0].mxu0 %v2912
  %v2998 = vpop.f32.mrb[0].mxu0
  %v2999 = vadd.f32 0.0, %v2998
  %v3000 = vpop.f32.mrb[0].mxu0
  %v3001 = vpop.f32.mrb[0].mxu0
  %v3002 = vpop.f32.mrb[0].mxu0
  %3003 = vdwg.mxu0
  %v3004 = vadd.f32 %v2896, %v2958
  %v3005 = vadd.f32 %v2897, %v2960
  %v3006 = vadd.f32 %v2898, %v2999
  %v3007 = vld [vmem:[%s805] sm:$0xf]
  %3008 = vrot.lane.b32.xlu0 %v2260, 110
  %v3009 = vpop.permute.xlu0 %3008
  %3010 = vrot.lane.b32.xlu0 %v2259, 110
  %v3011 = vpop.permute.xlu0 %3010
  %3012 = vrot.lane.b32.xlu0 %v2261, 110
  %v3013 = vpop.permute.xlu0 %3012
  %3014 = vrot.lane.b32.xlu0 %v2791, 110
  %v3015 = vpop.permute.xlu0 %3014
  %v3016 = vsel %vm815, %v3009, %v3011
  %v3017 = vsel %vm815, %v3011, %v3013
  %v3018 = vsel %vm815, %v3013, %v3015
  %v3020 = vsel %vm59, %v3007, 0
  %v3023 = vsel %vm63, %v3016, 0
  %v3026 = vsel %vm63, %v3017, 0
  %v3029 = vsel %vm63, %v3018, 0
  %3031 = vmatprep.subr.bf16.mxu0 %v3026
  %3032 = vmatpush1.bf16.msra.mxu0 %v3023
  %3033 = vmatprep.subr.bf16.mxu0 0
  %3034 = vmatpush1.bf16.msra.mxu0 0
  %3035 = vmatprep.subr.bf16.mxu0 0
  %3036 = vmatpush1.bf16.msra.mxu0 0
  %3037 = vmatprep.subr.bf16.mxu0 0
  %3038 = vmatpush1.bf16.msra.mxu0 0
  %3039 = vmatprep.subr.bf16.mxu0 0
  %3040 = vmatpush1.bf16.msra.mxu0 0
  %3041 = vmatprep.subr.bf16.mxu0 0
  %3042 = vmatpush1.bf16.msra.mxu0 0
  %3043 = vmatprep.subr.bf16.mxu0 0
  %3044 = vmatpush1.bf16.msra.mxu0 0
  %3045 = vmatprep.subr.bf16.mxu0 0
  %3046 = vmatpush1.bf16.msra.mxu0 0
  %3047 = vmatprep.subr.bf16.mxu0 0
  %3048 = vmatpush1.bf16.msra.mxu0 0
  %3049 = vmatprep.subr.bf16.mxu0 0
  %3050 = vmatpush1.bf16.msra.mxu0 0
  %3051 = vmatprep.subr.bf16.mxu0 0
  %3052 = vmatpush1.bf16.msra.mxu0 0
  %3053 = vmatprep.subr.bf16.mxu0 0
  %3054 = vmatpush1.bf16.msra.mxu0 0
  %3055 = vmatprep.subr.bf16.mxu0 0
  %3056 = vmatpush1.bf16.msra.mxu0 0
  %3057 = vmatprep.subr.bf16.mxu0 0
  %3058 = vmatpush1.bf16.msra.mxu0 0
  %3059 = vmatprep.subr.bf16.mxu0 0
  %3060 = vmatpush1.bf16.msra.mxu0 0
  %3061 = vmatprep.subr.bf16.mxu0 0
  %3062 = vmatpush1.bf16.msra.mxu0 0
  %3063 = vmatprep.mubr.bf16.mxu0 0
  %3064 = vmatmul.mubr.bf16.gmra.mrb[0].mxu0 %v3020
  %v3065 = vpop.f32.mrb[0].mxu0
  %v3066 = vadd.f32 0.0, %v3065
  %v3067 = vpop.f32.mrb[0].mxu0
  %v3068 = vadd.f32 0.0, %v3067
  %v3069 = vpop.f32.mrb[0].mxu0
  %v3070 = vpop.f32.mrb[0].mxu0
  %3071 = vdwg.mxu0
  %3072 = vmatprep.subr.bf16.mxu0 0
  %3073 = vmatpush1.bf16.msra.mxu0 %v3029
  %3074 = vmatprep.subr.bf16.mxu0 0
  %3075 = vmatpush1.bf16.msra.mxu0 0
  %3076 = vmatprep.subr.bf16.mxu0 0
  %3077 = vmatpush1.bf16.msra.mxu0 0
  %3078 = vmatprep.subr.bf16.mxu0 0
  %3079 = vmatpush1.bf16.msra.mxu0 0
  %3080 = vmatprep.subr.bf16.mxu0 0
  %3081 = vmatpush1.bf16.msra.mxu0 0
  %3082 = vmatprep.subr.bf16.mxu0 0
  %3083 = vmatpush1.bf16.msra.mxu0 0
  %3084 = vmatprep.subr.bf16.mxu0 0
  %3085 = vmatpush1.bf16.msra.mxu0 0
  %3086 = vmatprep.subr.bf16.mxu0 0
  %3087 = vmatpush1.bf16.msra.mxu0 0
  %3088 = vmatprep.subr.bf16.mxu0 0
  %3089 = vmatpush1.bf16.msra.mxu0 0
  %3090 = vmatprep.subr.bf16.mxu0 0
  %3091 = vmatpush1.bf16.msra.mxu0 0
  %3092 = vmatprep.subr.bf16.mxu0 0
  %3093 = vmatpush1.bf16.msra.mxu0 0
  %3094 = vmatprep.subr.bf16.mxu0 0
  %3095 = vmatpush1.bf16.msra.mxu0 0
  %3096 = vmatprep.subr.bf16.mxu0 0
  %3097 = vmatpush1.bf16.msra.mxu0 0
  %3098 = vmatprep.subr.bf16.mxu0 0
  %3099 = vmatpush1.bf16.msra.mxu0 0
  %3100 = vmatprep.subr.bf16.mxu0 0
  %3101 = vmatpush1.bf16.msra.mxu0 0
  %3102 = vmatprep.subr.bf16.mxu0 0
  %3103 = vmatpush1.bf16.msra.mxu0 0
  %3104 = vmatprep.mubr.bf16.mxu0 0
  %3105 = vmatmul.mubr.bf16.gmra.mrb[0].mxu0 %v3020
  %v3106 = vpop.f32.mrb[0].mxu0
  %v3107 = vadd.f32 0.0, %v3106
  %v3108 = vpop.f32.mrb[0].mxu0
  %v3109 = vpop.f32.mrb[0].mxu0
  %v3110 = vpop.f32.mrb[0].mxu0
  %3111 = vdwg.mxu0
  %v3112 = vadd.f32 %v3004, %v3066
  %v3113 = vadd.f32 %v3005, %v3068
  %v3114 = vadd.f32 %v3006, %v3107
  %v3115 = vld [vmem:[%s915] sm:$0xf]
  %3116 = vrot.lane.b32.xlu0 %v2260, 109
  %v3117 = vpop.permute.xlu0 %3116
  %3118 = vrot.lane.b32.xlu0 %v2259, 109
  %v3119 = vpop.permute.xlu0 %3118
  %3120 = vrot.lane.b32.xlu0 %v2261, 109
  %v3121 = vpop.permute.xlu0 %3120
  %3122 = vrot.lane.b32.xlu0 %v2791, 109
  %v3123 = vpop.permute.xlu0 %3122
  %v3124 = vsel %vm925, %v3117, %v3119
  %v3125 = vsel %vm925, %v3119, %v3121
  %v3126 = vsel %vm925, %v3121, %v3123
  %v3128 = vsel %vm59, %v3115, 0
  %v3131 = vsel %vm63, %v3124, 0
  %v3134 = vsel %vm63, %v3125, 0
  %v3137 = vsel %vm63, %v3126, 0
  %3139 = vmatprep.subr.bf16.mxu0 %v3134
  %3140 = vmatpush1.bf16.msra.mxu0 %v3131
  %3141 = vmatprep.subr.bf16.mxu0 0
  %3142 = vmatpush1.bf16.msra.mxu0 0
  %3143 = vmatprep.subr.bf16.mxu0 0
  %3144 = vmatpush1.bf16.msra.mxu0 0
  %3145 = vmatprep.subr.bf16.mxu0 0
  %3146 = vmatpush1.bf16.msra.mxu0 0
  %3147 = vmatprep.subr.bf16.mxu0 0
  %3148 = vmatpush1.bf16.msra.mxu0 0
  %3149 = vmatprep.subr.bf16.mxu0 0
  %3150 = vmatpush1.bf16.msra.mxu0 0
  %3151 = vmatprep.subr.bf16.mxu0 0
  %3152 = vmatpush1.bf16.msra.mxu0 0
  %3153 = vmatprep.subr.bf16.mxu0 0
  %3154 = vmatpush1.bf16.msra.mxu0 0
  %3155 = vmatprep.subr.bf16.mxu0 0
  %3156 = vmatpush1.bf16.msra.mxu0 0
  %3157 = vmatprep.subr.bf16.mxu0 0
  %3158 = vmatpush1.bf16.msra.mxu0 0
  %3159 = vmatprep.subr.bf16.mxu0 0
  %3160 = vmatpush1.bf16.msra.mxu0 0
  %3161 = vmatprep.subr.bf16.mxu0 0
  %3162 = vmatpush1.bf16.msra.mxu0 0
  %3163 = vmatprep.subr.bf16.mxu0 0
  %3164 = vmatpush1.bf16.msra.mxu0 0
  %3165 = vmatprep.subr.bf16.mxu0 0
  %3166 = vmatpush1.bf16.msra.mxu0 0
  %3167 = vmatprep.subr.bf16.mxu0 0
  %3168 = vmatpush1.bf16.msra.mxu0 0
  %3169 = vmatprep.subr.bf16.mxu0 0
  %3170 = vmatpush1.bf16.msra.mxu0 0
  %3171 = vmatprep.mubr.bf16.mxu0 0
  %3172 = vmatmul.mubr.bf16.gmra.mrb[0].mxu0 %v3128
  %v3173 = vpop.f32.mrb[0].mxu0
  %v3174 = vadd.f32 0.0, %v3173
  %v3175 = vpop.f32.mrb[0].mxu0
  %v3176 = vadd.f32 0.0, %v3175
  %v3177 = vpop.f32.mrb[0].mxu0
  %v3178 = vpop.f32.mrb[0].mxu0
  %3179 = vdwg.mxu0
  %3180 = vmatprep.subr.bf16.mxu0 0
  %3181 = vmatpush1.bf16.msra.mxu0 %v3137
  %3182 = vmatprep.subr.bf16.mxu0 0
  %3183 = vmatpush1.bf16.msra.mxu0 0
  %3184 = vmatprep.subr.bf16.mxu0 0
  %3185 = vmatpush1.bf16.msra.mxu0 0
  %3186 = vmatprep.subr.bf16.mxu0 0
  %3187 = vmatpush1.bf16.msra.mxu0 0
  %3188 = vmatprep.subr.bf16.mxu0 0
  %3189 = vmatpush1.bf16.msra.mxu0 0
  %3190 = vmatprep.subr.bf16.mxu0 0
  %3191 = vmatpush1.bf16.msra.mxu0 0
  %3192 = vmatprep.subr.bf16.mxu0 0
  %3193 = vmatpush1.bf16.msra.mxu0 0
  %3194 = vmatprep.subr.bf16.mxu0 0
  %3195 = vmatpush1.bf16.msra.mxu0 0
  %3196 = vmatprep.subr.bf16.mxu0 0
  %3197 = vmatpush1.bf16.msra.mxu0 0
  %3198 = vmatprep.subr.bf16.mxu0 0
  %3199 = vmatpush1.bf16.msra.mxu0 0
  %3200 = vmatprep.subr.bf16.mxu0 0
  %3201 = vmatpush1.bf16.msra.mxu0 0
  %3202 = vmatprep.subr.bf16.mxu0 0
  %3203 = vmatpush1.bf16.msra.mxu0 0
  %3204 = vmatprep.subr.bf16.mxu0 0
  %3205 = vmatpush1.bf16.msra.mxu0 0
  %3206 = vmatprep.subr.bf16.mxu0 0
  %3207 = vmatpush1.bf16.msra.mxu0 0
  %3208 = vmatprep.subr.bf16.mxu0 0
  %3209 = vmatpush1.bf16.msra.mxu0 0
  %3210 = vmatprep.subr.bf16.mxu0 0
  %3211 = vmatpush1.bf16.msra.mxu0 0
  %3212 = vmatprep.mubr.bf16.mxu0 0
  %3213 = vmatmul.mubr.bf16.gmra.mrb[0].mxu0 %v3128
  %v3214 = vpop.f32.mrb[0].mxu0
  %v3215 = vadd.f32 0.0, %v3214
  %v3216 = vpop.f32.mrb[0].mxu0
  %v3217 = vpop.f32.mrb[0].mxu0
  %v3218 = vpop.f32.mrb[0].mxu0
  %3219 = vdwg.mxu0
  %v3220 = vadd.f32 %v3112, %v3174
  %v3221 = vadd.f32 %v3113, %v3176
  %v3222 = vadd.f32 %v3114, %v3215
  %v3223 = vmul.f32 %v3220, %v1029
  %v3224 = vmul.f32 %v3221, %v1033
  %v3225 = vmul.f32 %v3222, %v1037
  %v3226 = vadd.f32 %v3223, %v3224
  %v3227 = vadd.f32 %v3226, %v3225
  %3228 = vadd.xlane.f32.xlu0 %v3227
  %v3229 = vpop.xlane.xlu0 %3228
  %v3230 = vmul.f32 %v3229, 0.00390625
  %v3231 = vsub.f32 %v3220, %v3230
  %v3232 = vsub.f32 %v3221, %v3230
  %v3233 = vsub.f32 %v3222, %v3230
  %v3234 = vmul.f32 %v3231, %v1029
  %v3235 = vmul.f32 %v3232, %v1033
  %v3236 = vmul.f32 %v3233, %v1037
  %v3237 = vmul.f32 %v3234, %v3234
  %v3238 = vmul.f32 %v3235, %v3235
  %v3239 = vmul.f32 %v3236, %v3236
  %v3240 = vadd.f32 %v3237, %v3238
  %v3241 = vadd.f32 %v3240, %v3239
  %3242 = vadd.xlane.f32.xlu0 %v3241
  %v3243 = vpop.xlane.xlu0 %3242
  %v3244 = vmul.f32 %v3243, 0.00390625
  %v3245 = vadd.f32 %v3244, 1e-05
  %v3246 = vrsqrt.pop %v3245
  %v3247 = vmul.f32 %v3234, %v3246
  %v3248 = vmul.f32 %v3235, %v3246
  %v3249 = vmul.f32 %v3236, %v3246
  %v3250 = vmul.f32 %v3247, 0.2
  %v3251 = vmul.f32 %v3248, 0.2
  %v3252 = vmul.f32 %v3249, 0.2
  %v3253 = vmax.f32 %v3247, %v3250
  %v3254 = vmax.f32 %v3248, %v3251
  %v3255 = vmax.f32 %v3249, %v3252
  %v3256 = vpack.c.bf16 %v3253, %v3253
  %v3257 = vpack.c.bf16 %v3254, %v3254
  %v3258 = vpack.c.bf16 %v3255, %v3255
  %v3262 = vunpack.c.l.b16 %v3256
  %v3263 = vunpack.c.l.b16 %v3257
  %v3264 = vunpack.c.l.b16 %v3258
  %v3265 = vpack.c.b16 %v3263, %v3262
  %v3266 = vpack.c.b16 %v3264, %v3264
  %3269 = vst [vmem:[#allocation2 + $0x4] sm:$0xff] %v3265
  %3270 = vst [vmem:[#allocation2 + $0xc] sm:$0xf] %v3266
  %v3271 = vld [vmem:[%s3] sm:$0xf]
  %v3272 = vld [vmem:[#allocation2] sm:$0xff]
  %v3273 = vld [vmem:[#allocation2 + $0x8] sm:$0xff]
  %v3274 = vld [vmem:[%s1092] sm:$0xf]
  %v3277 = vunpack.c.l.b16 %v3272
  %v3278 = vunpack.c.h.b16 %v3272
  %v3279 = vunpack.c.l.b16 %v3273
  %v3280 = vunpack.c.h.b16 %v3273
  %v3281 = vpack.c.b16 %v3277, %v3277
  %v3282 = vpack.c.b16 %v3278, %v3278
  %v3283 = vpack.c.b16 %v3279, %v3279
  %v3284 = vpack.c.b16 %v3280, %v3280
  %3285 = vrot.lane.b32.xlu0 %v3281, 18
  %v3286 = vpop.permute.xlu0 %3285
  %3287 = vrot.lane.b32.xlu0 %v3282, 18
  %v3288 = vpop.permute.xlu0 %3287
  %3289 = vrot.lane.b32.xlu0 %v3283, 18
  %v3290 = vpop.permute.xlu0 %3289
  %3291 = vrot.lane.b32.xlu0 %v3284, 18
  %v3292 = vpop.permute.xlu0 %3291
  %v3293 = vsel %vm55, %v3286, %v3288
  %v3294 = vsel %vm55, %v3288, %v3290
  %v3295 = vsel %vm55, %v3290, %v3292
  %v3297 = vsel %vm1115, %v3274, 0
  %v3300 = vsel %vm1119, %v3293, 0
  %v3303 = vsel %vm1119, %v3294, 0
  %v3306 = vsel %vm1119, %v3295, 0
  %3308 = vmatprep.subr.bf16.mxu0 %v3303
  %3309 = vmatpush1.bf16.msra.mxu0 %v3300
  %3310 = vmatprep.subr.bf16.mxu0 0
  %3311 = vmatpush1.bf16.msra.mxu0 0
  %3312 = vmatprep.subr.bf16.mxu0 0
  %3313 = vmatpush1.bf16.msra.mxu0 0
  %3314 = vmatprep.subr.bf16.mxu0 0
  %3315 = vmatpush1.bf16.msra.mxu0 0
  %3316 = vmatprep.subr.bf16.mxu0 0
  %3317 = vmatpush1.bf16.msra.mxu0 0
  %3318 = vmatprep.subr.bf16.mxu0 0
  %3319 = vmatpush1.bf16.msra.mxu0 0
  %3320 = vmatprep.subr.bf16.mxu0 0
  %3321 = vmatpush1.bf16.msra.mxu0 0
  %3322 = vmatprep.subr.bf16.mxu0 0
  %3323 = vmatpush1.bf16.msra.mxu0 0
  %3324 = vmatprep.subr.bf16.mxu0 0
  %3325 = vmatpush1.bf16.msra.mxu0 0
  %3326 = vmatprep.subr.bf16.mxu0 0
  %3327 = vmatpush1.bf16.msra.mxu0 0
  %3328 = vmatprep.subr.bf16.mxu0 0
  %3329 = vmatpush1.bf16.msra.mxu0 0
  %3330 = vmatprep.subr.bf16.mxu0 0
  %3331 = vmatpush1.bf16.msra.mxu0 0
  %3332 = vmatprep.subr.bf16.mxu0 0
  %3333 = vmatpush1.bf16.msra.mxu0 0
  %3334 = vmatprep.subr.bf16.mxu0 0
  %3335 = vmatpush1.bf16.msra.mxu0 0
  %3336 = vmatprep.subr.bf16.mxu0 0
  %3337 = vmatpush1.bf16.msra.mxu0 0
  %3338 = vmatprep.subr.bf16.mxu0 0
  %3339 = vmatpush1.bf16.msra.mxu0 0
  %3340 = vmatprep.mubr.bf16.mxu0 0
  %3341 = vmatmul.mubr.bf16.gmra.mrb[0].mxu0 %v3297
  %v3342 = vpop.f32.mrb[0].mxu0
  %v3343 = vadd.f32 0.0, %v3342
  %v3344 = vpop.f32.mrb[0].mxu0
  %v3345 = vadd.f32 0.0, %v3344
  %v3346 = vpop.f32.mrb[0].mxu0
  %v3347 = vpop.f32.mrb[0].mxu0
  %3348 = vdwg.mxu0
  %3349 = vmatprep.subr.bf16.mxu0 0
  %3350 = vmatpush1.bf16.msra.mxu0 %v3306
  %3351 = vmatprep.subr.bf16.mxu0 0
  %3352 = vmatpush1.bf16.msra.mxu0 0
  %3353 = vmatprep.subr.bf16.mxu0 0
  %3354 = vmatpush1.bf16.msra.mxu0 0
  %3355 = vmatprep.subr.bf16.mxu0 0
  %3356 = vmatpush1.bf16.msra.mxu0 0
  %3357 = vmatprep.subr.bf16.mxu0 0
  %3358 = vmatpush1.bf16.msra.mxu0 0
  %3359 = vmatprep.subr.bf16.mxu0 0
  %3360 = vmatpush1.bf16.msra.mxu0 0
  %3361 = vmatprep.subr.bf16.mxu0 0
  %3362 = vmatpush1.bf16.msra.mxu0 0
  %3363 = vmatprep.subr.bf16.mxu0 0
  %3364 = vmatpush1.bf16.msra.mxu0 0
  %3365 = vmatprep.subr.bf16.mxu0 0
  %3366 = vmatpush1.bf16.msra.mxu0 0
  %3367 = vmatprep.subr.bf16.mxu0 0
  %3368 = vmatpush1.bf16.msra.mxu0 0
  %3369 = vmatprep.subr.bf16.mxu0 0
  %3370 = vmatpush1.bf16.msra.mxu0 0
  %3371 = vmatprep.subr.bf16.mxu0 0
  %3372 = vmatpush1.bf16.msra.mxu0 0
  %3373 = vmatprep.subr.bf16.mxu0 0
  %3374 = vmatpush1.bf16.msra.mxu0 0
  %3375 = vmatprep.subr.bf16.mxu0 0
  %3376 = vmatpush1.bf16.msra.mxu0 0
  %3377 = vmatprep.subr.bf16.mxu0 0
  %3378 = vmatpush1.bf16.msra.mxu0 0
  %3379 = vmatprep.subr.bf16.mxu0 0
  %3380 = vmatpush1.bf16.msra.mxu0 0
  %3381 = vmatprep.mubr.bf16.mxu0 0
  %3382 = vmatmul.mubr.bf16.gmra.mrb[0].mxu0 %v3297
  %v3383 = vpop.f32.mrb[0].mxu0
  %v3384 = vadd.f32 0.0, %v3383
  %v3385 = vpop.f32.mrb[0].mxu0
  %v3386 = vpop.f32.mrb[0].mxu0
  %v3387 = vpop.f32.mrb[0].mxu0
  %3388 = vdwg.mxu0
  %3389 = vrot.lane.b32.xlu0 %v3281, 19
  %v3390 = vpop.permute.xlu0 %3389
  %3391 = vrot.lane.b32.xlu0 %v3282, 19
  %v3392 = vpop.permute.xlu0 %3391
  %3393 = vrot.lane.b32.xlu0 %v3283, 19
  %v3394 = vpop.permute.xlu0 %3393
  %3395 = vrot.lane.b32.xlu0 %v3284, 19
  %v3396 = vpop.permute.xlu0 %3395
  %v3397 = vsel %vm162, %v3390, %v3392
  %v3398 = vsel %vm162, %v3392, %v3394
  %v3399 = vsel %vm162, %v3394, %v3396
  %v3401 = vsel %vm1115, %v3271, 0
  %v3404 = vsel %vm1119, %v3397, 0
  %v3407 = vsel %vm1119, %v3398, 0
  %v3410 = vsel %vm1119, %v3399, 0
  %3412 = vmatprep.subr.bf16.mxu0 %v3407
  %3413 = vmatpush1.bf16.msra.mxu0 %v3404
  %3414 = vmatprep.subr.bf16.mxu0 0
  %3415 = vmatpush1.bf16.msra.mxu0 0
  %3416 = vmatprep.subr.bf16.mxu0 0
  %3417 = vmatpush1.bf16.msra.mxu0 0
  %3418 = vmatprep.subr.bf16.mxu0 0
  %3419 = vmatpush1.bf16.msra.mxu0 0
  %3420 = vmatprep.subr.bf16.mxu0 0
  %3421 = vmatpush1.bf16.msra.mxu0 0
  %3422 = vmatprep.subr.bf16.mxu0 0
  %3423 = vmatpush1.bf16.msra.mxu0 0
  %3424 = vmatprep.subr.bf16.mxu0 0
  %3425 = vmatpush1.bf16.msra.mxu0 0
  %3426 = vmatprep.subr.bf16.mxu0 0
  %3427 = vmatpush1.bf16.msra.mxu0 0
  %3428 = vmatprep.subr.bf16.mxu0 0
  %3429 = vmatpush1.bf16.msra.mxu0 0
  %3430 = vmatprep.subr.bf16.mxu0 0
  %3431 = vmatpush1.bf16.msra.mxu0 0
  %3432 = vmatprep.subr.bf16.mxu0 0
  %3433 = vmatpush1.bf16.msra.mxu0 0
  %3434 = vmatprep.subr.bf16.mxu0 0
  %3435 = vmatpush1.bf16.msra.mxu0 0
  %3436 = vmatprep.subr.bf16.mxu0 0
  %3437 = vmatpush1.bf16.msra.mxu0 0
  %3438 = vmatprep.subr.bf16.mxu0 0
  %3439 = vmatpush1.bf16.msra.mxu0 0
  %3440 = vmatprep.subr.bf16.mxu0 0
  %3441 = vmatpush1.bf16.msra.mxu0 0
  %3442 = vmatprep.subr.bf16.mxu0 0
  %3443 = vmatpush1.bf16.msra.mxu0 0
  %3444 = vmatprep.mubr.bf16.mxu0 0
  %3445 = vmatmul.mubr.bf16.gmra.mrb[0].mxu0 %v3401
  %v3446 = vpop.f32.mrb[0].mxu0
  %v3447 = vadd.f32 %v3343, %v3446
  %v3448 = vpop.f32.mrb[0].mxu0
  %v3449 = vadd.f32 %v3345, %v3448
  %v3450 = vpop.f32.mrb[0].mxu0
  %v3451 = vpop.f32.mrb[0].mxu0
  %3452 = vdwg.mxu0
  %3453 = vmatprep.subr.bf16.mxu0 0
  %3454 = vmatpush1.bf16.msra.mxu0 %v3410
  %3455 = vmatprep.subr.bf16.mxu0 0
  %3456 = vmatpush1.bf16.msra.mxu0 0
  %3457 = vmatprep.subr.bf16.mxu0 0
  %3458 = vmatpush1.bf16.msra.mxu0 0
  %3459 = vmatprep.subr.bf16.mxu0 0
  %3460 = vmatpush1.bf16.msra.mxu0 0
  %3461 = vmatprep.subr.bf16.mxu0 0
  %3462 = vmatpush1.bf16.msra.mxu0 0
  %3463 = vmatprep.subr.bf16.mxu0 0
  %3464 = vmatpush1.bf16.msra.mxu0 0
  %3465 = vmatprep.subr.bf16.mxu0 0
  %3466 = vmatpush1.bf16.msra.mxu0 0
  %3467 = vmatprep.subr.bf16.mxu0 0
  %3468 = vmatpush1.bf16.msra.mxu0 0
  %3469 = vmatprep.subr.bf16.mxu0 0
  %3470 = vmatpush1.bf16.msra.mxu0 0
  %3471 = vmatprep.subr.bf16.mxu0 0
  %3472 = vmatpush1.bf16.msra.mxu0 0
  %3473 = vmatprep.subr.bf16.mxu0 0
  %3474 = vmatpush1.bf16.msra.mxu0 0
  %3475 = vmatprep.subr.bf16.mxu0 0
  %3476 = vmatpush1.bf16.msra.mxu0 0
  %3477 = vmatprep.subr.bf16.mxu0 0
  %3478 = vmatpush1.bf16.msra.mxu0 0
  %3479 = vmatprep.subr.bf16.mxu0 0
  %3480 = vmatpush1.bf16.msra.mxu0 0
  %3481 = vmatprep.subr.bf16.mxu0 0
  %3482 = vmatpush1.bf16.msra.mxu0 0
  %3483 = vmatprep.subr.bf16.mxu0 0
  %3484 = vmatpush1.bf16.msra.mxu0 0
  %3485 = vmatprep.mubr.bf16.mxu0 0
  %3486 = vmatmul.mubr.bf16.gmra.mrb[0].mxu0 %v3401
  %v3487 = vpop.f32.mrb[0].mxu0
  %v3488 = vadd.f32 %v3384, %v3487
  %v3489 = vpop.f32.mrb[0].mxu0
  %v3490 = vpop.f32.mrb[0].mxu0
  %v3491 = vpop.f32.mrb[0].mxu0
  %3492 = vdwg.mxu0
  %v3493 = vld [vmem:[%s1314] sm:$0xf]
  %3494 = vrot.lane.b32.xlu0 %v3281, 17
  %v3495 = vpop.permute.xlu0 %3494
  %3496 = vrot.lane.b32.xlu0 %v3282, 17
  %v3497 = vpop.permute.xlu0 %3496
  %3498 = vrot.lane.b32.xlu0 %v3283, 17
  %v3499 = vpop.permute.xlu0 %3498
  %3500 = vrot.lane.b32.xlu0 %v3284, 17
  %v3501 = vpop.permute.xlu0 %3500
  %v3502 = vsel %vm269, %v3495, %v3497
  %v3503 = vsel %vm269, %v3497, %v3499
  %v3504 = vsel %vm269, %v3499, %v3501
  %v3506 = vsel %vm1115, %v3493, 0
  %v3509 = vsel %vm1119, %v3502, 0
  %v3512 = vsel %vm1119, %v3503, 0
  %v3515 = vsel %vm1119, %v3504, 0
  %3517 = vmatprep.subr.bf16.mxu0 %v3512
  %3518 = vmatpush1.bf16.msra.mxu0 %v3509
  %3519 = vmatprep.subr.bf16.mxu0 0
  %3520 = vmatpush1.bf16.msra.mxu0 0
  %3521 = vmatprep.subr.bf16.mxu0 0
  %3522 = vmatpush1.bf16.msra.mxu0 0
  %3523 = vmatprep.subr.bf16.mxu0 0
  %3524 = vmatpush1.bf16.msra.mxu0 0
  %3525 = vmatprep.subr.bf16.mxu0 0
  %3526 = vmatpush1.bf16.msra.mxu0 0
  %3527 = vmatprep.subr.bf16.mxu0 0
  %3528 = vmatpush1.bf16.msra.mxu0 0
  %3529 = vmatprep.subr.bf16.mxu0 0
  %3530 = vmatpush1.bf16.msra.mxu0 0
  %3531 = vmatprep.subr.bf16.mxu0 0
  %3532 = vmatpush1.bf16.msra.mxu0 0
  %3533 = vmatprep.subr.bf16.mxu0 0
  %3534 = vmatpush1.bf16.msra.mxu0 0
  %3535 = vmatprep.subr.bf16.mxu0 0
  %3536 = vmatpush1.bf16.msra.mxu0 0
  %3537 = vmatprep.subr.bf16.mxu0 0
  %3538 = vmatpush1.bf16.msra.mxu0 0
  %3539 = vmatprep.subr.bf16.mxu0 0
  %3540 = vmatpush1.bf16.msra.mxu0 0
  %3541 = vmatprep.subr.bf16.mxu0 0
  %3542 = vmatpush1.bf16.msra.mxu0 0
  %3543 = vmatprep.subr.bf16.mxu0 0
  %3544 = vmatpush1.bf16.msra.mxu0 0
  %3545 = vmatprep.subr.bf16.mxu0 0
  %3546 = vmatpush1.bf16.msra.mxu0 0
  %3547 = vmatprep.subr.bf16.mxu0 0
  %3548 = vmatpush1.bf16.msra.mxu0 0
  %3549 = vmatprep.mubr.bf16.mxu0 0
  %3550 = vmatmul.mubr.bf16.gmra.mrb[0].mxu0 %v3506
  %v3551 = vpop.f32.mrb[0].mxu0
  %v3552 = vadd.f32 0.0, %v3551
  %v3553 = vpop.f32.mrb[0].mxu0
  %v3554 = vadd.f32 0.0, %v3553
  %v3555 = vpop.f32.mrb[0].mxu0
  %v3556 = vpop.f32.mrb[0].mxu0
  %3557 = vdwg.mxu0
  %3558 = vmatprep.subr.bf16.mxu0 0
  %3559 = vmatpush1.bf16.msra.mxu0 %v3515
  %3560 = vmatprep.subr.bf16.mxu0 0
  %3561 = vmatpush1.bf16.msra.mxu0 0
  %3562 = vmatprep.subr.bf16.mxu0 0
  %3563 = vmatpush1.bf16.msra.mxu0 0
  %3564 = vmatprep.subr.bf16.mxu0 0
  %3565 = vmatpush1.bf16.msra.mxu0 0
  %3566 = vmatprep.subr.bf16.mxu0 0
  %3567 = vmatpush1.bf16.msra.mxu0 0
  %3568 = vmatprep.subr.bf16.mxu0 0
  %3569 = vmatpush1.bf16.msra.mxu0 0
  %3570 = vmatprep.subr.bf16.mxu0 0
  %3571 = vmatpush1.bf16.msra.mxu0 0
  %3572 = vmatprep.subr.bf16.mxu0 0
  %3573 = vmatpush1.bf16.msra.mxu0 0
  %3574 = vmatprep.subr.bf16.mxu0 0
  %3575 = vmatpush1.bf16.msra.mxu0 0
  %3576 = vmatprep.subr.bf16.mxu0 0
  %3577 = vmatpush1.bf16.msra.mxu0 0
  %3578 = vmatprep.subr.bf16.mxu0 0
  %3579 = vmatpush1.bf16.msra.mxu0 0
  %3580 = vmatprep.subr.bf16.mxu0 0
  %3581 = vmatpush1.bf16.msra.mxu0 0
  %3582 = vmatprep.subr.bf16.mxu0 0
  %3583 = vmatpush1.bf16.msra.mxu0 0
  %3584 = vmatprep.subr.bf16.mxu0 0
  %3585 = vmatpush1.bf16.msra.mxu0 0
  %3586 = vmatprep.subr.bf16.mxu0 0
  %3587 = vmatpush1.bf16.msra.mxu0 0
  %3588 = vmatprep.subr.bf16.mxu0 0
  %3589 = vmatpush1.bf16.msra.mxu0 0
  %3590 = vmatprep.mubr.bf16.mxu0 0
  %3591 = vmatmul.mubr.bf16.gmra.mrb[0].mxu0 %v3506
  %v3592 = vpop.f32.mrb[0].mxu0
  %v3593 = vadd.f32 0.0, %v3592
  %v3594 = vpop.f32.mrb[0].mxu0
  %v3595 = vpop.f32.mrb[0].mxu0
  %v3596 = vpop.f32.mrb[0].mxu0
  %3597 = vdwg.mxu0
  %v3598 = vadd.f32 %v3447, %v3552
  %v3599 = vadd.f32 %v3449, %v3554
  %v3600 = vadd.f32 %v3488, %v3593
  %v3601 = vld [vmem:[%s1423] sm:$0xf]
  %3602 = vrot.lane.b32.xlu0 %v3281, 1
  %v3603 = vpop.permute.xlu0 %3602
  %3604 = vrot.lane.b32.xlu0 %v3282, 1
  %v3605 = vpop.permute.xlu0 %3604
  %3606 = vrot.lane.b32.xlu0 %v3283, 1
  %v3607 = vpop.permute.xlu0 %3606
  %3608 = vrot.lane.b32.xlu0 %v3284, 1
  %v3609 = vpop.permute.xlu0 %3608
  %v3610 = vsel %vm379, %v3603, %v3605
  %v3611 = vsel %vm379, %v3605, %v3607
  %v3612 = vsel %vm379, %v3607, %v3609
  %v3614 = vsel %vm1115, %v3601, 0
  %v3617 = vsel %vm1119, %v3610, 0
  %v3620 = vsel %vm1119, %v3611, 0
  %v3623 = vsel %vm1119, %v3612, 0
  %3625 = vmatprep.subr.bf16.mxu0 %v3620
  %3626 = vmatpush1.bf16.msra.mxu0 %v3617
  %3627 = vmatprep.subr.bf16.mxu0 0
  %3628 = vmatpush1.bf16.msra.mxu0 0
  %3629 = vmatprep.subr.bf16.mxu0 0
  %3630 = vmatpush1.bf16.msra.mxu0 0
  %3631 = vmatprep.subr.bf16.mxu0 0
  %3632 = vmatpush1.bf16.msra.mxu0 0
  %3633 = vmatprep.subr.bf16.mxu0 0
  %3634 = vmatpush1.bf16.msra.mxu0 0
  %3635 = vmatprep.subr.bf16.mxu0 0
  %3636 = vmatpush1.bf16.msra.mxu0 0
  %3637 = vmatprep.subr.bf16.mxu0 0
  %3638 = vmatpush1.bf16.msra.mxu0 0
  %3639 = vmatprep.subr.bf16.mxu0 0
  %3640 = vmatpush1.bf16.msra.mxu0 0
  %3641 = vmatprep.subr.bf16.mxu0 0
  %3642 = vmatpush1.bf16.msra.mxu0 0
  %3643 = vmatprep.subr.bf16.mxu0 0
  %3644 = vmatpush1.bf16.msra.mxu0 0
  %3645 = vmatprep.subr.bf16.mxu0 0
  %3646 = vmatpush1.bf16.msra.mxu0 0
  %3647 = vmatprep.subr.bf16.mxu0 0
  %3648 = vmatpush1.bf16.msra.mxu0 0
  %3649 = vmatprep.subr.bf16.mxu0 0
  %3650 = vmatpush1.bf16.msra.mxu0 0
  %3651 = vmatprep.subr.bf16.mxu0 0
  %3652 = vmatpush1.bf16.msra.mxu0 0
  %3653 = vmatprep.subr.bf16.mxu0 0
  %3654 = vmatpush1.bf16.msra.mxu0 0
  %3655 = vmatprep.subr.bf16.mxu0 0
  %3656 = vmatpush1.bf16.msra.mxu0 0
  %3657 = vmatprep.mubr.bf16.mxu0 0
  %3658 = vmatmul.mubr.bf16.gmra.mrb[0].mxu0 %v3614
  %v3659 = vpop.f32.mrb[0].mxu0
  %v3660 = vadd.f32 0.0, %v3659
  %v3661 = vpop.f32.mrb[0].mxu0
  %v3662 = vadd.f32 0.0, %v3661
  %v3663 = vpop.f32.mrb[0].mxu0
  %v3664 = vpop.f32.mrb[0].mxu0
  %3665 = vdwg.mxu0
  %3666 = vmatprep.subr.bf16.mxu0 0
  %3667 = vmatpush1.bf16.msra.mxu0 %v3623
  %3668 = vmatprep.subr.bf16.mxu0 0
  %3669 = vmatpush1.bf16.msra.mxu0 0
  %3670 = vmatprep.subr.bf16.mxu0 0
  %3671 = vmatpush1.bf16.msra.mxu0 0
  %3672 = vmatprep.subr.bf16.mxu0 0
  %3673 = vmatpush1.bf16.msra.mxu0 0
  %3674 = vmatprep.subr.bf16.mxu0 0
  %3675 = vmatpush1.bf16.msra.mxu0 0
  %3676 = vmatprep.subr.bf16.mxu0 0
  %3677 = vmatpush1.bf16.msra.mxu0 0
  %3678 = vmatprep.subr.bf16.mxu0 0
  %3679 = vmatpush1.bf16.msra.mxu0 0
  %3680 = vmatprep.subr.bf16.mxu0 0
  %3681 = vmatpush1.bf16.msra.mxu0 0
  %3682 = vmatprep.subr.bf16.mxu0 0
  %3683 = vmatpush1.bf16.msra.mxu0 0
  %3684 = vmatprep.subr.bf16.mxu0 0
  %3685 = vmatpush1.bf16.msra.mxu0 0
  %3686 = vmatprep.subr.bf16.mxu0 0
  %3687 = vmatpush1.bf16.msra.mxu0 0
  %3688 = vmatprep.subr.bf16.mxu0 0
  %3689 = vmatpush1.bf16.msra.mxu0 0
  %3690 = vmatprep.subr.bf16.mxu0 0
  %3691 = vmatpush1.bf16.msra.mxu0 0
  %3692 = vmatprep.subr.bf16.mxu0 0
  %3693 = vmatpush1.bf16.msra.mxu0 0
  %3694 = vmatprep.subr.bf16.mxu0 0
  %3695 = vmatpush1.bf16.msra.mxu0 0
  %3696 = vmatprep.subr.bf16.mxu0 0
  %3697 = vmatpush1.bf16.msra.mxu0 0
  %3698 = vmatprep.mubr.bf16.mxu0 0
  %3699 = vmatmul.mubr.bf16.gmra.mrb[0].mxu0 %v3614
  %v3700 = vpop.f32.mrb[0].mxu0
  %v3701 = vadd.f32 0.0, %v3700
  %v3702 = vpop.f32.mrb[0].mxu0
  %v3703 = vpop.f32.mrb[0].mxu0
  %v3704 = vpop.f32.mrb[0].mxu0
  %3705 = vdwg.mxu0
  %v3706 = vadd.f32 %v3598, %v3660
  %v3707 = vadd.f32 %v3599, %v3662
  %v3708 = vadd.f32 %v3600, %v3701
  %v3709 = vld [vmem:[%s1532] sm:$0xf]
  %v3710 = vld [vmem:[#allocation2 + $0x4] sm:$0xff]
  %v3711 = vld [vmem:[#allocation2 + $0xc] sm:$0xf]
  %v3714 = vunpack.c.l.b16 %v3710
  %v3715 = vunpack.c.h.b16 %v3710
  %v3716 = vunpack.c.l.b16 %v3711
  %v3717 = vpack.c.b16 %v3714, %v3714
  %v3718 = vpack.c.b16 %v3715, %v3715
  %v3719 = vpack.c.b16 %v3716, %v3716
  %v3721 = vsel %vm1115, %v3709, 0
  %v3724 = vsel %vm1119, %v3717, 0
  %v3727 = vsel %vm1119, %v3718, 0
  %v3730 = vsel %vm1119, %v3719, 0
  %3732 = vmatprep.subr.bf16.mxu0 %v3727
  %3733 = vmatpush1.bf16.msra.mxu0 %v3724
  %3734 = vmatprep.subr.bf16.mxu0 0
  %3735 = vmatpush1.bf16.msra.mxu0 0
  %3736 = vmatprep.subr.bf16.mxu0 0
  %3737 = vmatpush1.bf16.msra.mxu0 0
  %3738 = vmatprep.subr.bf16.mxu0 0
  %3739 = vmatpush1.bf16.msra.mxu0 0
  %3740 = vmatprep.subr.bf16.mxu0 0
  %3741 = vmatpush1.bf16.msra.mxu0 0
  %3742 = vmatprep.subr.bf16.mxu0 0
  %3743 = vmatpush1.bf16.msra.mxu0 0
  %3744 = vmatprep.subr.bf16.mxu0 0
  %3745 = vmatpush1.bf16.msra.mxu0 0
  %3746 = vmatprep.subr.bf16.mxu0 0
  %3747 = vmatpush1.bf16.msra.mxu0 0
  %3748 = vmatprep.subr.bf16.mxu0 0
  %3749 = vmatpush1.bf16.msra.mxu0 0
  %3750 = vmatprep.subr.bf16.mxu0 0
  %3751 = vmatpush1.bf16.msra.mxu0 0
  %3752 = vmatprep.subr.bf16.mxu0 0
  %3753 = vmatpush1.bf16.msra.mxu0 0
  %3754 = vmatprep.subr.bf16.mxu0 0
  %3755 = vmatpush1.bf16.msra.mxu0 0
  %3756 = vmatprep.subr.bf16.mxu0 0
  %3757 = vmatpush1.bf16.msra.mxu0 0
  %3758 = vmatprep.subr.bf16.mxu0 0
  %3759 = vmatpush1.bf16.msra.mxu0 0
  %3760 = vmatprep.subr.bf16.mxu0 0
  %3761 = vmatpush1.bf16.msra.mxu0 0
  %3762 = vmatprep.subr.bf16.mxu0 0
  %3763 = vmatpush1.bf16.msra.mxu0 0
  %3764 = vmatprep.mubr.bf16.mxu0 0
  %3765 = vmatmul.mubr.bf16.gmra.mrb[0].mxu0 %v3721
  %v3766 = vpop.f32.mrb[0].mxu0
  %v3767 = vadd.f32 0.0, %v3766
  %v3768 = vpop.f32.mrb[0].mxu0
  %v3769 = vadd.f32 0.0, %v3768
  %v3770 = vpop.f32.mrb[0].mxu0
  %v3771 = vpop.f32.mrb[0].mxu0
  %3772 = vdwg.mxu0
  %3773 = vmatprep.subr.bf16.mxu0 0
  %3774 = vmatpush1.bf16.msra.mxu0 %v3730
  %3775 = vmatprep.subr.bf16.mxu0 0
  %3776 = vmatpush1.bf16.msra.mxu0 0
  %3777 = vmatprep.subr.bf16.mxu0 0
  %3778 = vmatpush1.bf16.msra.mxu0 0
  %3779 = vmatprep.subr.bf16.mxu0 0
  %3780 = vmatpush1.bf16.msra.mxu0 0
  %3781 = vmatprep.subr.bf16.mxu0 0
  %3782 = vmatpush1.bf16.msra.mxu0 0
  %3783 = vmatprep.subr.bf16.mxu0 0
  %3784 = vmatpush1.bf16.msra.mxu0 0
  %3785 = vmatprep.subr.bf16.mxu0 0
  %3786 = vmatpush1.bf16.msra.mxu0 0
  %3787 = vmatprep.subr.bf16.mxu0 0
  %3788 = vmatpush1.bf16.msra.mxu0 0
  %3789 = vmatprep.subr.bf16.mxu0 0
  %3790 = vmatpush1.bf16.msra.mxu0 0
  %3791 = vmatprep.subr.bf16.mxu0 0
  %3792 = vmatpush1.bf16.msra.mxu0 0
  %3793 = vmatprep.subr.bf16.mxu0 0
  %3794 = vmatpush1.bf16.msra.mxu0 0
  %3795 = vmatprep.subr.bf16.mxu0 0
  %3796 = vmatpush1.bf16.msra.mxu0 0
  %3797 = vmatprep.subr.bf16.mxu0 0
  %3798 = vmatpush1.bf16.msra.mxu0 0
  %3799 = vmatprep.subr.bf16.mxu0 0
  %3800 = vmatpush1.bf16.msra.mxu0 0
  %3801 = vmatprep.subr.bf16.mxu0 0
  %3802 = vmatpush1.bf16.msra.mxu0 0
  %3803 = vmatprep.subr.bf16.mxu0 0
  %3804 = vmatpush1.bf16.msra.mxu0 0
  %3805 = vmatprep.mubr.bf16.mxu0 0
  %3806 = vmatmul.mubr.bf16.gmra.mrb[0].mxu0 %v3721
  %v3807 = vpop.f32.mrb[0].mxu0
  %v3808 = vadd.f32 0.0, %v3807
  %v3809 = vpop.f32.mrb[0].mxu0
  %v3810 = vpop.f32.mrb[0].mxu0
  %v3811 = vpop.f32.mrb[0].mxu0
  %3812 = vdwg.mxu0
  %v3813 = vadd.f32 %v3706, %v3767
  %v3814 = vadd.f32 %v3707, %v3769
  %v3815 = vadd.f32 %v3708, %v3808
  %v3816 = vld [vmem:[%s1640] sm:$0xf]
  %v3817 = vld [vmem:[#allocation2 + $0x4] sm:$0xff]
  %v3818 = vld [vmem:[#allocation2 + $0xc] sm:$0xff]
  %v3821 = vunpack.c.l.b16 %v3817
  %v3822 = vunpack.c.h.b16 %v3817
  %v3823 = vunpack.c.l.b16 %v3818
  %v3824 = vunpack.c.h.b16 %v3818
  %v3825 = vpack.c.b16 %v3821, %v3821
  %v3826 = vpack.c.b16 %v3822, %v3822
  %v3827 = vpack.c.b16 %v3823, %v3823
  %v3828 = vpack.c.b16 %v3824, %v3824
  %3829 = vrot.lane.b32.xlu0 %v3825, 127
  %v3830 = vpop.permute.xlu0 %3829
  %3831 = vrot.lane.b32.xlu0 %v3826, 127
  %v3832 = vpop.permute.xlu0 %3831
  %3833 = vrot.lane.b32.xlu0 %v3827, 127
  %v3834 = vpop.permute.xlu0 %3833
  %3835 = vrot.lane.b32.xlu0 %v3828, 127
  %v3836 = vpop.permute.xlu0 %3835
  %v3837 = vsel %vm595, %v3830, %v3832
  %v3838 = vsel %vm595, %v3832, %v3834
  %v3839 = vsel %vm595, %v3834, %v3836
  %v3841 = vsel %vm1115, %v3816, 0
  %v3844 = vsel %vm1119, %v3837, 0
  %v3847 = vsel %vm1119, %v3838, 0
  %v3850 = vsel %vm1119, %v3839, 0
  %3852 = vmatprep.subr.bf16.mxu0 %v3847
  %3853 = vmatpush1.bf16.msra.mxu0 %v3844
  %3854 = vmatprep.subr.bf16.mxu0 0
  %3855 = vmatpush1.bf16.msra.mxu0 0
  %3856 = vmatprep.subr.bf16.mxu0 0
  %3857 = vmatpush1.bf16.msra.mxu0 0
  %3858 = vmatprep.subr.bf16.mxu0 0
  %3859 = vmatpush1.bf16.msra.mxu0 0
  %3860 = vmatprep.subr.bf16.mxu0 0
  %3861 = vmatpush1.bf16.msra.mxu0 0
  %3862 = vmatprep.subr.bf16.mxu0 0
  %3863 = vmatpush1.bf16.msra.mxu0 0
  %3864 = vmatprep.subr.bf16.mxu0 0
  %3865 = vmatpush1.bf16.msra.mxu0 0
  %3866 = vmatprep.subr.bf16.mxu0 0
  %3867 = vmatpush1.bf16.msra.mxu0 0
  %3868 = vmatprep.subr.bf16.mxu0 0
  %3869 = vmatpush1.bf16.msra.mxu0 0
  %3870 = vmatprep.subr.bf16.mxu0 0
  %3871 = vmatpush1.bf16.msra.mxu0 0
  %3872 = vmatprep.subr.bf16.mxu0 0
  %3873 = vmatpush1.bf16.msra.mxu0 0
  %3874 = vmatprep.subr.bf16.mxu0 0
  %3875 = vmatpush1.bf16.msra.mxu0 0
  %3876 = vmatprep.subr.bf16.mxu0 0
  %3877 = vmatpush1.bf16.msra.mxu0 0
  %3878 = vmatprep.subr.bf16.mxu0 0
  %3879 = vmatpush1.bf16.msra.mxu0 0
  %3880 = vmatprep.subr.bf16.mxu0 0
  %3881 = vmatpush1.bf16.msra.mxu0 0
  %3882 = vmatprep.subr.bf16.mxu0 0
  %3883 = vmatpush1.bf16.msra.mxu0 0
  %3884 = vmatprep.mubr.bf16.mxu0 0
  %3885 = vmatmul.mubr.bf16.gmra.mrb[0].mxu0 %v3841
  %v3886 = vpop.f32.mrb[0].mxu0
  %v3887 = vadd.f32 0.0, %v3886
  %v3888 = vpop.f32.mrb[0].mxu0
  %v3889 = vadd.f32 0.0, %v3888
  %v3890 = vpop.f32.mrb[0].mxu0
  %v3891 = vpop.f32.mrb[0].mxu0
  %3892 = vdwg.mxu0
  %3893 = vmatprep.subr.bf16.mxu0 0
  %3894 = vmatpush1.bf16.msra.mxu0 %v3850
  %3895 = vmatprep.subr.bf16.mxu0 0
  %3896 = vmatpush1.bf16.msra.mxu0 0
  %3897 = vmatprep.subr.bf16.mxu0 0
  %3898 = vmatpush1.bf16.msra.mxu0 0
  %3899 = vmatprep.subr.bf16.mxu0 0
  %3900 = vmatpush1.bf16.msra.mxu0 0
  %3901 = vmatprep.subr.bf16.mxu0 0
  %3902 = vmatpush1.bf16.msra.mxu0 0
  %3903 = vmatprep.subr.bf16.mxu0 0
  %3904 = vmatpush1.bf16.msra.mxu0 0
  %3905 = vmatprep.subr.bf16.mxu0 0
  %3906 = vmatpush1.bf16.msra.mxu0 0
  %3907 = vmatprep.subr.bf16.mxu0 0
  %3908 = vmatpush1.bf16.msra.mxu0 0
  %3909 = vmatprep.subr.bf16.mxu0 0
  %3910 = vmatpush1.bf16.msra.mxu0 0
  %3911 = vmatprep.subr.bf16.mxu0 0
  %3912 = vmatpush1.bf16.msra.mxu0 0
  %3913 = vmatprep.subr.bf16.mxu0 0
  %3914 = vmatpush1.bf16.msra.mxu0 0
  %3915 = vmatprep.subr.bf16.mxu0 0
  %3916 = vmatpush1.bf16.msra.mxu0 0
  %3917 = vmatprep.subr.bf16.mxu0 0
  %3918 = vmatpush1.bf16.msra.mxu0 0
  %3919 = vmatprep.subr.bf16.mxu0 0
  %3920 = vmatpush1.bf16.msra.mxu0 0
  %3921 = vmatprep.subr.bf16.mxu0 0
  %3922 = vmatpush1.bf16.msra.mxu0 0
  %3923 = vmatprep.subr.bf16.mxu0 0
  %3924 = vmatpush1.bf16.msra.mxu0 0
  %3925 = vmatprep.mubr.bf16.mxu0 0
  %3926 = vmatmul.mubr.bf16.gmra.mrb[0].mxu0 %v3841
  %v3927 = vpop.f32.mrb[0].mxu0
  %v3928 = vadd.f32 0.0, %v3927
  %v3929 = vpop.f32.mrb[0].mxu0
  %v3930 = vpop.f32.mrb[0].mxu0
  %v3931 = vpop.f32.mrb[0].mxu0
  %3932 = vdwg.mxu0
  %v3933 = vadd.f32 %v3813, %v3887
  %v3934 = vadd.f32 %v3814, %v3889
  %v3935 = vadd.f32 %v3815, %v3928
  %v3936 = vld [vmem:[%s1761] sm:$0xf]
  %3937 = vrot.lane.b32.xlu0 %v3825, 111
  %v3938 = vpop.permute.xlu0 %3937
  %3939 = vrot.lane.b32.xlu0 %v3826, 111
  %v3940 = vpop.permute.xlu0 %3939
  %3941 = vrot.lane.b32.xlu0 %v3827, 111
  %v3942 = vpop.permute.xlu0 %3941
  %3943 = vrot.lane.b32.xlu0 %v3828, 111
  %v3944 = vpop.permute.xlu0 %3943
  %v3945 = vsel %vm705, %v3938, %v3940
  %v3946 = vsel %vm705, %v3940, %v3942
  %v3947 = vsel %vm705, %v3942, %v3944
  %v3949 = vsel %vm1115, %v3936, 0
  %v3952 = vsel %vm1119, %v3945, 0
  %v3955 = vsel %vm1119, %v3946, 0
  %v3958 = vsel %vm1119, %v3947, 0
  %3960 = vmatprep.subr.bf16.mxu0 %v3955
  %3961 = vmatpush1.bf16.msra.mxu0 %v3952
  %3962 = vmatprep.subr.bf16.mxu0 0
  %3963 = vmatpush1.bf16.msra.mxu0 0
  %3964 = vmatprep.subr.bf16.mxu0 0
  %3965 = vmatpush1.bf16.msra.mxu0 0
  %3966 = vmatprep.subr.bf16.mxu0 0
  %3967 = vmatpush1.bf16.msra.mxu0 0
  %3968 = vmatprep.subr.bf16.mxu0 0
  %3969 = vmatpush1.bf16.msra.mxu0 0
  %3970 = vmatprep.subr.bf16.mxu0 0
  %3971 = vmatpush1.bf16.msra.mxu0 0
  %3972 = vmatprep.subr.bf16.mxu0 0
  %3973 = vmatpush1.bf16.msra.mxu0 0
  %3974 = vmatprep.subr.bf16.mxu0 0
  %3975 = vmatpush1.bf16.msra.mxu0 0
  %3976 = vmatprep.subr.bf16.mxu0 0
  %3977 = vmatpush1.bf16.msra.mxu0 0
  %3978 = vmatprep.subr.bf16.mxu0 0
  %3979 = vmatpush1.bf16.msra.mxu0 0
  %3980 = vmatprep.subr.bf16.mxu0 0
  %3981 = vmatpush1.bf16.msra.mxu0 0
  %3982 = vmatprep.subr.bf16.mxu0 0
  %3983 = vmatpush1.bf16.msra.mxu0 0
  %3984 = vmatprep.subr.bf16.mxu0 0
  %3985 = vmatpush1.bf16.msra.mxu0 0
  %3986 = vmatprep.subr.bf16.mxu0 0
  %3987 = vmatpush1.bf16.msra.mxu0 0
  %3988 = vmatprep.subr.bf16.mxu0 0
  %3989 = vmatpush1.bf16.msra.mxu0 0
  %3990 = vmatprep.subr.bf16.mxu0 0
  %3991 = vmatpush1.bf16.msra.mxu0 0
  %3992 = vmatprep.mubr.bf16.mxu0 0
  %3993 = vmatmul.mubr.bf16.gmra.mrb[0].mxu0 %v3949
  %v3994 = vpop.f32.mrb[0].mxu0
  %v3995 = vadd.f32 0.0, %v3994
  %v3996 = vpop.f32.mrb[0].mxu0
  %v3997 = vadd.f32 0.0, %v3996
  %v3998 = vpop.f32.mrb[0].mxu0
  %v3999 = vpop.f32.mrb[0].mxu0
  %4000 = vdwg.mxu0
  %4001 = vmatprep.subr.bf16.mxu0 0
  %4002 = vmatpush1.bf16.msra.mxu0 %v3958
  %4003 = vmatprep.subr.bf16.mxu0 0
  %4004 = vmatpush1.bf16.msra.mxu0 0
  %4005 = vmatprep.subr.bf16.mxu0 0
  %4006 = vmatpush1.bf16.msra.mxu0 0
  %4007 = vmatprep.subr.bf16.mxu0 0
  %4008 = vmatpush1.bf16.msra.mxu0 0
  %4009 = vmatprep.subr.bf16.mxu0 0
  %4010 = vmatpush1.bf16.msra.mxu0 0
  %4011 = vmatprep.subr.bf16.mxu0 0
  %4012 = vmatpush1.bf16.msra.mxu0 0
  %4013 = vmatprep.subr.bf16.mxu0 0
  %4014 = vmatpush1.bf16.msra.mxu0 0
  %4015 = vmatprep.subr.bf16.mxu0 0
  %4016 = vmatpush1.bf16.msra.mxu0 0
  %4017 = vmatprep.subr.bf16.mxu0 0
  %4018 = vmatpush1.bf16.msra.mxu0 0
  %4019 = vmatprep.subr.bf16.mxu0 0
  %4020 = vmatpush1.bf16.msra.mxu0 0
  %4021 = vmatprep.subr.bf16.mxu0 0
  %4022 = vmatpush1.bf16.msra.mxu0 0
  %4023 = vmatprep.subr.bf16.mxu0 0
  %4024 = vmatpush1.bf16.msra.mxu0 0
  %4025 = vmatprep.subr.bf16.mxu0 0
  %4026 = vmatpush1.bf16.msra.mxu0 0
  %4027 = vmatprep.subr.bf16.mxu0 0
  %4028 = vmatpush1.bf16.msra.mxu0 0
  %4029 = vmatprep.subr.bf16.mxu0 0
  %4030 = vmatpush1.bf16.msra.mxu0 0
  %4031 = vmatprep.subr.bf16.mxu0 0
  %4032 = vmatpush1.bf16.msra.mxu0 0
  %4033 = vmatprep.mubr.bf16.mxu0 0
  %4034 = vmatmul.mubr.bf16.gmra.mrb[0].mxu0 %v3949
  %v4035 = vpop.f32.mrb[0].mxu0
  %v4036 = vadd.f32 0.0, %v4035
  %v4037 = vpop.f32.mrb[0].mxu0
  %v4038 = vpop.f32.mrb[0].mxu0
  %v4039 = vpop.f32.mrb[0].mxu0
  %4040 = vdwg.mxu0
  %v4041 = vadd.f32 %v3933, %v3995
  %v4042 = vadd.f32 %v3934, %v3997
  %v4043 = vadd.f32 %v3935, %v4036
  %v4044 = vld [vmem:[%s1870] sm:$0xf]
  %4045 = vrot.lane.b32.xlu0 %v3825, 110
  %v4046 = vpop.permute.xlu0 %4045
  %4047 = vrot.lane.b32.xlu0 %v3826, 110
  %v4048 = vpop.permute.xlu0 %4047
  %4049 = vrot.lane.b32.xlu0 %v3827, 110
  %v4050 = vpop.permute.xlu0 %4049
  %4051 = vrot.lane.b32.xlu0 %v3828, 110
  %v4052 = vpop.permute.xlu0 %4051
  %v4053 = vsel %vm815, %v4046, %v4048
  %v4054 = vsel %vm815, %v4048, %v4050
  %v4055 = vsel %vm815, %v4050, %v4052
  %v4057 = vsel %vm1115, %v4044, 0
  %v4060 = vsel %vm1119, %v4053, 0
  %v4063 = vsel %vm1119, %v4054, 0
  %v4066 = vsel %vm1119, %v4055, 0
  %4068 = vmatprep.subr.bf16.mxu0 %v4063
  %4069 = vmatpush1.bf16.msra.mxu0 %v4060
  %4070 = vmatprep.subr.bf16.mxu0 0
  %4071 = vmatpush1.bf16.msra.mxu0 0
  %4072 = vmatprep.subr.bf16.mxu0 0
  %4073 = vmatpush1.bf16.msra.mxu0 0
  %4074 = vmatprep.subr.bf16.mxu0 0
  %4075 = vmatpush1.bf16.msra.mxu0 0
  %4076 = vmatprep.subr.bf16.mxu0 0
  %4077 = vmatpush1.bf16.msra.mxu0 0
  %4078 = vmatprep.subr.bf16.mxu0 0
  %4079 = vmatpush1.bf16.msra.mxu0 0
  %4080 = vmatprep.subr.bf16.mxu0 0
  %4081 = vmatpush1.bf16.msra.mxu0 0
  %4082 = vmatprep.subr.bf16.mxu0 0
  %4083 = vmatpush1.bf16.msra.mxu0 0
  %4084 = vmatprep.subr.bf16.mxu0 0
  %4085 = vmatpush1.bf16.msra.mxu0 0
  %4086 = vmatprep.subr.bf16.mxu0 0
  %4087 = vmatpush1.bf16.msra.mxu0 0
  %4088 = vmatprep.subr.bf16.mxu0 0
  %4089 = vmatpush1.bf16.msra.mxu0 0
  %4090 = vmatprep.subr.bf16.mxu0 0
  %4091 = vmatpush1.bf16.msra.mxu0 0
  %4092 = vmatprep.subr.bf16.mxu0 0
  %4093 = vmatpush1.bf16.msra.mxu0 0
  %4094 = vmatprep.subr.bf16.mxu0 0
  %4095 = vmatpush1.bf16.msra.mxu0 0
  %4096 = vmatprep.subr.bf16.mxu0 0
  %4097 = vmatpush1.bf16.msra.mxu0 0
  %4098 = vmatprep.subr.bf16.mxu0 0
  %4099 = vmatpush1.bf16.msra.mxu0 0
  %4100 = vmatprep.mubr.bf16.mxu0 0
  %4101 = vmatmul.mubr.bf16.gmra.mrb[0].mxu0 %v4057
  %v4102 = vpop.f32.mrb[0].mxu0
  %v4103 = vadd.f32 0.0, %v4102
  %v4104 = vpop.f32.mrb[0].mxu0
  %v4105 = vadd.f32 0.0, %v4104
  %v4106 = vpop.f32.mrb[0].mxu0
  %v4107 = vpop.f32.mrb[0].mxu0
  %4108 = vdwg.mxu0
  %4109 = vmatprep.subr.bf16.mxu0 0
  %4110 = vmatpush1.bf16.msra.mxu0 %v4066
  %4111 = vmatprep.subr.bf16.mxu0 0
  %4112 = vmatpush1.bf16.msra.mxu0 0
  %4113 = vmatprep.subr.bf16.mxu0 0
  %4114 = vmatpush1.bf16.msra.mxu0 0
  %4115 = vmatprep.subr.bf16.mxu0 0
  %4116 = vmatpush1.bf16.msra.mxu0 0
  %4117 = vmatprep.subr.bf16.mxu0 0
  %4118 = vmatpush1.bf16.msra.mxu0 0
  %4119 = vmatprep.subr.bf16.mxu0 0
  %4120 = vmatpush1.bf16.msra.mxu0 0
  %4121 = vmatprep.subr.bf16.mxu0 0
  %4122 = vmatpush1.bf16.msra.mxu0 0
  %4123 = vmatprep.subr.bf16.mxu0 0
  %4124 = vmatpush1.bf16.msra.mxu0 0
  %4125 = vmatprep.subr.bf16.mxu0 0
  %4126 = vmatpush1.bf16.msra.mxu0 0
  %4127 = vmatprep.subr.bf16.mxu0 0
  %4128 = vmatpush1.bf16.msra.mxu0 0
  %4129 = vmatprep.subr.bf16.mxu0 0
  %4130 = vmatpush1.bf16.msra.mxu0 0
  %4131 = vmatprep.subr.bf16.mxu0 0
  %4132 = vmatpush1.bf16.msra.mxu0 0
  %4133 = vmatprep.subr.bf16.mxu0 0
  %4134 = vmatpush1.bf16.msra.mxu0 0
  %4135 = vmatprep.subr.bf16.mxu0 0
  %4136 = vmatpush1.bf16.msra.mxu0 0
  %4137 = vmatprep.subr.bf16.mxu0 0
  %4138 = vmatpush1.bf16.msra.mxu0 0
  %4139 = vmatprep.subr.bf16.mxu0 0
  %4140 = vmatpush1.bf16.msra.mxu0 0
  %4141 = vmatprep.mubr.bf16.mxu0 0
  %4142 = vmatmul.mubr.bf16.gmra.mrb[0].mxu0 %v4057
  %v4143 = vpop.f32.mrb[0].mxu0
  %v4144 = vadd.f32 0.0, %v4143
  %v4145 = vpop.f32.mrb[0].mxu0
  %v4146 = vpop.f32.mrb[0].mxu0
  %v4147 = vpop.f32.mrb[0].mxu0
  %4148 = vdwg.mxu0
  %v4149 = vadd.f32 %v4041, %v4103
  %v4150 = vadd.f32 %v4042, %v4105
  %v4151 = vadd.f32 %v4043, %v4144
  %v4152 = vld [vmem:[%s1979] sm:$0xf]
  %4153 = vrot.lane.b32.xlu0 %v3825, 109
  %v4154 = vpop.permute.xlu0 %4153
  %4155 = vrot.lane.b32.xlu0 %v3826, 109
  %v4156 = vpop.permute.xlu0 %4155
  %4157 = vrot.lane.b32.xlu0 %v3827, 109
  %v4158 = vpop.permute.xlu0 %4157
  %4159 = vrot.lane.b32.xlu0 %v3828, 109
  %v4160 = vpop.permute.xlu0 %4159
  %v4161 = vsel %vm925, %v4154, %v4156
  %v4162 = vsel %vm925, %v4156, %v4158
  %v4163 = vsel %vm925, %v4158, %v4160
  %v4165 = vsel %vm1115, %v4152, 0
  %v4168 = vsel %vm1119, %v4161, 0
  %v4171 = vsel %vm1119, %v4162, 0
  %v4174 = vsel %vm1119, %v4163, 0
  %4176 = vmatprep.subr.bf16.mxu0 %v4171
  %4177 = vmatpush1.bf16.msra.mxu0 %v4168
  %4178 = vmatprep.subr.bf16.mxu0 0
  %4179 = vmatpush1.bf16.msra.mxu0 0
  %4180 = vmatprep.subr.bf16.mxu0 0
  %4181 = vmatpush1.bf16.msra.mxu0 0
  %4182 = vmatprep.subr.bf16.mxu0 0
  %4183 = vmatpush1.bf16.msra.mxu0 0
  %4184 = vmatprep.subr.bf16.mxu0 0
  %4185 = vmatpush1.bf16.msra.mxu0 0
  %4186 = vmatprep.subr.bf16.mxu0 0
  %4187 = vmatpush1.bf16.msra.mxu0 0
  %4188 = vmatprep.subr.bf16.mxu0 0
  %4189 = vmatpush1.bf16.msra.mxu0 0
  %4190 = vmatprep.subr.bf16.mxu0 0
  %4191 = vmatpush1.bf16.msra.mxu0 0
  %4192 = vmatprep.subr.bf16.mxu0 0
  %4193 = vmatpush1.bf16.msra.mxu0 0
  %4194 = vmatprep.subr.bf16.mxu0 0
  %4195 = vmatpush1.bf16.msra.mxu0 0
  %4196 = vmatprep.subr.bf16.mxu0 0
  %4197 = vmatpush1.bf16.msra.mxu0 0
  %4198 = vmatprep.subr.bf16.mxu0 0
  %4199 = vmatpush1.bf16.msra.mxu0 0
  %4200 = vmatprep.subr.bf16.mxu0 0
  %4201 = vmatpush1.bf16.msra.mxu0 0
  %4202 = vmatprep.subr.bf16.mxu0 0
  %4203 = vmatpush1.bf16.msra.mxu0 0
  %4204 = vmatprep.subr.bf16.mxu0 0
  %4205 = vmatpush1.bf16.msra.mxu0 0
  %4206 = vmatprep.subr.bf16.mxu0 0
  %4207 = vmatpush1.bf16.msra.mxu0 0
  %4208 = vmatprep.mubr.bf16.mxu0 0
  %4209 = vmatmul.mubr.bf16.gmra.mrb[0].mxu0 %v4165
  %v4210 = vpop.f32.mrb[0].mxu0
  %v4211 = vadd.f32 0.0, %v4210
  %v4212 = vpop.f32.mrb[0].mxu0
  %v4213 = vadd.f32 0.0, %v4212
  %v4214 = vpop.f32.mrb[0].mxu0
  %v4215 = vpop.f32.mrb[0].mxu0
  %4216 = vdwg.mxu0
  %4217 = vmatprep.subr.bf16.mxu0 0
  %4218 = vmatpush1.bf16.msra.mxu0 %v4174
  %4219 = vmatprep.subr.bf16.mxu0 0
  %4220 = vmatpush1.bf16.msra.mxu0 0
  %4221 = vmatprep.subr.bf16.mxu0 0
  %4222 = vmatpush1.bf16.msra.mxu0 0
  %4223 = vmatprep.subr.bf16.mxu0 0
  %4224 = vmatpush1.bf16.msra.mxu0 0
  %4225 = vmatprep.subr.bf16.mxu0 0
  %4226 = vmatpush1.bf16.msra.mxu0 0
  %4227 = vmatprep.subr.bf16.mxu0 0
  %4228 = vmatpush1.bf16.msra.mxu0 0
  %4229 = vmatprep.subr.bf16.mxu0 0
  %4230 = vmatpush1.bf16.msra.mxu0 0
  %4231 = vmatprep.subr.bf16.mxu0 0
  %4232 = vmatpush1.bf16.msra.mxu0 0
  %4233 = vmatprep.subr.bf16.mxu0 0
  %4234 = vmatpush1.bf16.msra.mxu0 0
  %4235 = vmatprep.subr.bf16.mxu0 0
  %4236 = vmatpush1.bf16.msra.mxu0 0
  %4237 = vmatprep.subr.bf16.mxu0 0
  %4238 = vmatpush1.bf16.msra.mxu0 0
  %4239 = vmatprep.subr.bf16.mxu0 0
  %4240 = vmatpush1.bf16.msra.mxu0 0
  %4241 = vmatprep.subr.bf16.mxu0 0
  %4242 = vmatpush1.bf16.msra.mxu0 0
  %4243 = vmatprep.subr.bf16.mxu0 0
  %4244 = vmatpush1.bf16.msra.mxu0 0
  %4245 = vmatprep.subr.bf16.mxu0 0
  %4246 = vmatpush1.bf16.msra.mxu0 0
  %4247 = vmatprep.subr.bf16.mxu0 0
  %4248 = vmatpush1.bf16.msra.mxu0 0
  %4249 = vmatprep.mubr.bf16.mxu0 0
  %4250 = vmatmul.mubr.bf16.gmra.mrb[0].mxu0 %v4165
  %v4251 = vpop.f32.mrb[0].mxu0
  %v4252 = vadd.f32 0.0, %v4251
  %v4253 = vpop.f32.mrb[0].mxu0
  %v4254 = vpop.f32.mrb[0].mxu0
  %v4255 = vpop.f32.mrb[0].mxu0
  %4256 = vdwg.mxu0
  %v4257 = vadd.f32 %v4149, %v4211
  %v4258 = vadd.f32 %v4150, %v4213
  %v4259 = vadd.f32 %v4151, %v4252
  %v4260 = vld [vmem:[%s4] sm:$0xf]
  %v4262 = vsel %vm59, %v4260, 0
  %4264 = vmatprep.subr.bf16.mxu0 %v2694
  %4265 = vmatpush1.bf16.msra.mxu0 %v2691
  %4266 = vmatprep.subr.bf16.mxu0 0
  %4267 = vmatpush1.bf16.msra.mxu0 0
  %4268 = vmatprep.subr.bf16.mxu0 0
  %4269 = vmatpush1.bf16.msra.mxu0 0
  %4270 = vmatprep.subr.bf16.mxu0 0
  %4271 = vmatpush1.bf16.msra.mxu0 0
  %4272 = vmatprep.subr.bf16.mxu0 0
  %4273 = vmatpush1.bf16.msra.mxu0 0
  %4274 = vmatprep.subr.bf16.mxu0 0
  %4275 = vmatpush1.bf16.msra.mxu0 0
  %4276 = vmatprep.subr.bf16.mxu0 0
  %4277 = vmatpush1.bf16.msra.mxu0 0
  %4278 = vmatprep.subr.bf16.mxu0 0
  %4279 = vmatpush1.bf16.msra.mxu0 0
  %4280 = vmatprep.subr.bf16.mxu0 0
  %4281 = vmatpush1.bf16.msra.mxu0 0
  %4282 = vmatprep.subr.bf16.mxu0 0
  %4283 = vmatpush1.bf16.msra.mxu0 0
  %4284 = vmatprep.subr.bf16.mxu0 0
  %4285 = vmatpush1.bf16.msra.mxu0 0
  %4286 = vmatprep.subr.bf16.mxu0 0
  %4287 = vmatpush1.bf16.msra.mxu0 0
  %4288 = vmatprep.subr.bf16.mxu0 0
  %4289 = vmatpush1.bf16.msra.mxu0 0
  %4290 = vmatprep.subr.bf16.mxu0 0
  %4291 = vmatpush1.bf16.msra.mxu0 0
  %4292 = vmatprep.subr.bf16.mxu0 0
  %4293 = vmatpush1.bf16.msra.mxu0 0
  %4294 = vmatprep.subr.bf16.mxu0 0
  %4295 = vmatpush1.bf16.msra.mxu0 0
  %4296 = vmatprep.mubr.bf16.mxu0 0
  %4297 = vmatmul.mubr.bf16.gmra.mrb[0].mxu0 %v4262
  %v4298 = vpop.f32.mrb[0].mxu0
  %v4299 = vadd.f32 0.0, %v4298
  %v4300 = vpop.f32.mrb[0].mxu0
  %v4301 = vadd.f32 0.0, %v4300
  %v4302 = vpop.f32.mrb[0].mxu0
  %v4303 = vpop.f32.mrb[0].mxu0
  %4304 = vdwg.mxu0
  %4305 = vmatprep.subr.bf16.mxu0 0
  %4306 = vmatpush1.bf16.msra.mxu0 %v2697
  %4307 = vmatprep.subr.bf16.mxu0 0
  %4308 = vmatpush1.bf16.msra.mxu0 0
  %4309 = vmatprep.subr.bf16.mxu0 0
  %4310 = vmatpush1.bf16.msra.mxu0 0
  %4311 = vmatprep.subr.bf16.mxu0 0
  %4312 = vmatpush1.bf16.msra.mxu0 0
  %4313 = vmatprep.subr.bf16.mxu0 0
  %4314 = vmatpush1.bf16.msra.mxu0 0
  %4315 = vmatprep.subr.bf16.mxu0 0
  %4316 = vmatpush1.bf16.msra.mxu0 0
  %4317 = vmatprep.subr.bf16.mxu0 0
  %4318 = vmatpush1.bf16.msra.mxu0 0
  %4319 = vmatprep.subr.bf16.mxu0 0
  %4320 = vmatpush1.bf16.msra.mxu0 0
  %4321 = vmatprep.subr.bf16.mxu0 0
  %4322 = vmatpush1.bf16.msra.mxu0 0
  %4323 = vmatprep.subr.bf16.mxu0 0
  %4324 = vmatpush1.bf16.msra.mxu0 0
  %4325 = vmatprep.subr.bf16.mxu0 0
  %4326 = vmatpush1.bf16.msra.mxu0 0
  %4327 = vmatprep.subr.bf16.mxu0 0
  %4328 = vmatpush1.bf16.msra.mxu0 0
  %4329 = vmatprep.subr.bf16.mxu0 0
  %4330 = vmatpush1.bf16.msra.mxu0 0
  %4331 = vmatprep.subr.bf16.mxu0 0
  %4332 = vmatpush1.bf16.msra.mxu0 0
  %4333 = vmatprep.subr.bf16.mxu0 0
  %4334 = vmatpush1.bf16.msra.mxu0 0
  %4335 = vmatprep.subr.bf16.mxu0 0
  %4336 = vmatpush1.bf16.msra.mxu0 0
  %4337 = vmatprep.mubr.bf16.mxu0 0
  %4338 = vmatmul.mubr.bf16.gmra.mrb[0].mxu0 %v4262
  %v4339 = vpop.f32.mrb[0].mxu0
  %v4340 = vadd.f32 0.0, %v4339
  %v4341 = vpop.f32.mrb[0].mxu0
  %v4342 = vpop.f32.mrb[0].mxu0
  %v4343 = vpop.f32.mrb[0].mxu0
  %4344 = vdwg.mxu0
  %v4345 = vmul.f32 %v4299, %v1029
  %v4346 = vmul.f32 %v4301, %v1033
  %v4347 = vmul.f32 %v4340, %v1037
  %v4348 = vadd.f32 %v4345, %v4346
  %v4349 = vadd.f32 %v4348, %v4347
  %4350 = vadd.xlane.f32.xlu0 %v4349
  %v4351 = vpop.xlane.xlu0 %4350
  %v4352 = vmul.f32 %v4351, 0.00390625
  %v4353 = vsub.f32 %v4299, %v4352
  %v4354 = vsub.f32 %v4301, %v4352
  %v4355 = vsub.f32 %v4340, %v4352
  %v4356 = vmul.f32 %v4353, %v1029
  %v4357 = vmul.f32 %v4354, %v1033
  %v4358 = vmul.f32 %v4355, %v1037
  %v4359 = vmul.f32 %v4356, %v4356
  %v4360 = vmul.f32 %v4357, %v4357
  %v4361 = vmul.f32 %v4358, %v4358
  %v4362 = vadd.f32 %v4359, %v4360
  %v4363 = vadd.f32 %v4362, %v4361
  %4364 = vadd.xlane.f32.xlu0 %v4363
  %v4365 = vpop.xlane.xlu0 %4364
  %v4366 = vmul.f32 %v4365, 0.00390625
  %v4367 = vadd.f32 %v4366, 1e-05
  %v4368 = vrsqrt.pop %v4367
  %v4369 = vmul.f32 %v4356, %v4368
  %v4370 = vmul.f32 %v4357, %v4368
  %v4371 = vmul.f32 %v4358, %v4368
  %v4372 = vadd.f32 %v4257, %v4369
  %v4373 = vadd.f32 %v4258, %v4370
  %v4374 = vadd.f32 %v4259, %v4371
  %v4375 = vmul.f32 %v4372, %v1029
  %v4376 = vmul.f32 %v4373, %v1033
  %v4377 = vmul.f32 %v4374, %v1037
  %v4378 = vadd.f32 %v4375, %v4376
  %v4379 = vadd.f32 %v4378, %v4377
  %4380 = vadd.xlane.f32.xlu0 %v4379
  %v4381 = vpop.xlane.xlu0 %4380
  %v4382 = vmul.f32 %v4381, 0.00390625
  %v4383 = vsub.f32 %v4372, %v4382
  %v4384 = vsub.f32 %v4373, %v4382
  %v4385 = vsub.f32 %v4374, %v4382
  %v4386 = vmul.f32 %v4383, %v1029
  %v4387 = vmul.f32 %v4384, %v1033
  %v4388 = vmul.f32 %v4385, %v1037
  %v4389 = vmul.f32 %v4386, %v4386
  %v4390 = vmul.f32 %v4387, %v4387
  %v4391 = vmul.f32 %v4388, %v4388
  %v4392 = vadd.f32 %v4389, %v4390
  %v4393 = vadd.f32 %v4392, %v4391
  %4394 = vadd.xlane.f32.xlu0 %v4393
  %v4395 = vpop.xlane.xlu0 %4394
  %v4396 = vmul.f32 %v4395, 0.00390625
  %v4397 = vadd.f32 %v4396, 1e-05
  %v4398 = vrsqrt.pop %v4397
  %v4399 = vmul.f32 %v4386, %v4398
  %v4400 = vmul.f32 %v4387, %v4398
  %v4401 = vmul.f32 %v4388, %v4398
  %v4402 = vmul.f32 %v4399, 0.2
  %v4403 = vmul.f32 %v4400, 0.2
  %v4404 = vmul.f32 %v4401, 0.2
  %v4405 = vmax.f32 %v4399, %v4402
  %v4406 = vmax.f32 %v4400, %v4403
  %v4407 = vmax.f32 %v4401, %v4404
  %s4408 = scalar_lea.vmem %s5, 24
  %4409 = vst [vmem:[%s4408] sm:$0xff] %v4405
  %4410 = vst [vmem:[%s4408 + $0x8] sm:$0xff] %v4406
  %4411 = vst [vmem:[%s4408 + $0x10] sm:$0xff] %v4407
  // Predicated region
  $region22: #{conv_block_forward.1} parent=0 // pred_check
    _
  $region23: #{conv_block_forward.1} parent=0 // pred_check_branch
    %4413 = sbr.rel (0) target = $region25
  $region24: #{conv_block_forward.1} parent=0 // pred_region
    _
  $region25: #{conv_block_forward.1} parent=0 // pred_fallthru
    _
  // Predicated region
  $region26: #{conv_block_forward.1} parent=0 // pred_check
    _
  $region27: #{conv_block_forward.1} parent=0 // pred_check_branch
    %4415 = sbr.rel (0) target = $region29
  $region28: #{conv_block_forward.1} parent=0 // pred_region
    _
  $region29: #{conv_block_forward.1} parent=0 // pred_fallthru
    _

</llo_original>
